<compile_context>
chip_gen: v7x
topology: tpu7x:2x2x1
jax: 0.10.0
libtpu: 0.0.40
codegen_flags: <defaults>
</compile_context>

<pallas_src>
import jax
import jax.numpy as jnp
import numpy as np
from jax.experimental import pallas as pl
from jax.experimental.pallas import tpu as pltpu

EPS = 1e-5                     # nn.BatchNorm2d default eps
MM_DTYPE = jnp.bfloat16        # MXU operand / intermediate storage dtype


def _round_up(x, m):
    return (x + m - 1) // m * m


def _vmem_limit_bytes():
    # Generation-aware VMEM budget: ~3/4 of the part's VMEM (96 MiB on 128-MiB
    # v5e/v6e, 48 MiB on 64-MiB v7x).  Conservative fallback if the query fails.
    try:
        cap = int(pltpu.get_tpu_info().vmem_capacity_bytes)
    except Exception:
        cap = 64 * 1024 * 1024
    return max(32 * 1024 * 1024, (3 * cap) // 4)


VMEM_LIMIT = _vmem_limit_bytes()
TILE_BUDGET = VMEM_LIMIT // 2   # double-buffered blocks must fit comfortably


def _choose_tile_m(m, bytes_per_row, fixed_bytes):
    """Largest M tile whose (double-buffered) blocks fit the budget.

    Counts the resident weight block via fixed_bytes; rounds TM to a multiple of
    128 (16 when tiny); no forced multi-step split for small M.
    """
    avail = max(TILE_BUDGET - fixed_bytes, 1 << 20)
    tm = min(avail // max(1, bytes_per_row), 4096)
    if tm >= 128:
        tm = (tm // 128) * 128
    else:
        tm = max(16, (tm // 16) * 16)
    m_req = _round_up(m, 16)
    if tm >= m_req:
        tm = m_req if m_req < 128 else _round_up(m, 128)
    return tm


# ---------------- Pallas kernels -----------------------------------------------------

def _gemm_stats_kernel(p_ref, w_ref, y_ref, stats_ref):
    """conv1 tile: im2col-GEMM on the MXU + per-tile (sum, sumsq) partial BN stats."""
    y = jnp.dot(p_ref[...], w_ref[...], preferred_element_type=jnp.float32)
    y_ref[...] = y.astype(y_ref.dtype)
    stats_ref[0, 0:1, :] = jnp.sum(y, axis=0, keepdims=True)
    stats_ref[0, 1:2, :] = jnp.sum(y * y, axis=0, keepdims=True)


def _make_conv3x3_s1_kernel(wo_valid):
    """Implicit-GEMM 3x3 / stride-1 conv over one sample's halo-padded NHWC block.

    Emits the conv output (pre-BN2, bf16) plus per-sample (sum, sumsq) BN2 stats.
    """
    def kernel(xp_ref, w_ref, y_ref, stats_ref):
        _, hp, wp, cp = xp_ref.shape
        ho, wo = hp - 2, wp - 2
        acc = jnp.zeros((ho * wo, cp), jnp.float32)
        for dy in range(3):
            for dx in range(3):
                # cast to f32 before collapsing (ho, wo) -> ho*wo so the reshape is a
                # pure layout no-op (wo is padded to a multiple of 8 by the wrapper),
                # then back to bf16 (exact) for the MXU.
                tap = xp_ref[0, dy:dy + ho, dx:dx + wo, :].astype(jnp.float32)
                tap = tap.reshape(ho * wo, cp).astype(MM_DTYPE)
                acc = acc + jnp.dot(tap, w_ref[dy * 3 + dx],
                                    preferred_element_type=jnp.float32)
        y_ref[0] = acc.astype(y_ref.dtype)
        if wo_valid == wo:
            a = acc
        else:  # exclude width-padding columns from the BN2 statistics
            col = jax.lax.broadcasted_iota(jnp.int32, (ho * wo, cp), 0) % wo
            a = jnp.where(col < wo_valid, acc, 0.0)
        stats_ref[0, 0:1, :] = jnp.sum(a, axis=0, keepdims=True)
        stats_ref[0, 1:2, :] = jnp.sum(a * a, axis=0, keepdims=True)
    return kernel


def _bn_relu_kernel(y_ref, scale_ref, shift_ref, o_ref):
    """BN1 apply (single fma per element) + ReLU, bf16 in / bf16 out."""
    o_ref[...] = jnp.maximum(
        y_ref[...].astype(jnp.float32) * scale_ref[...] + shift_ref[...],
        0.0).astype(o_ref.dtype)


def _bn2_ds_residual_relu_kernel(y_ref, ds_ref, wd_ref, scale_ref, shift_ref, o_ref):
    """BN2 apply + fused 1x1-strided downsample GEMM (+ bias in shift) + add + ReLU."""
    res = jnp.dot(ds_ref[0], wd_ref[...], preferred_element_type=jnp.float32)
    o_ref[0] = jnp.maximum(
        y_ref[0].astype(jnp.float32) * scale_ref[...] + shift_ref[...] + res,
        0.0).astype(o_ref.dtype)


# ---------------- pallas_call wrappers ------------------------------------------------

def _conv1_gemm(p, w, tm):
    mp, k = p.shape
    _, cp = w.shape
    nt = mp // tm
    y, stats = pl.pallas_call(
        _gemm_stats_kernel,
        out_shape=(jax.ShapeDtypeStruct((mp, cp), MM_DTYPE),
                   jax.ShapeDtypeStruct((nt, 2, cp), jnp.float32)),
        grid_spec=pltpu.PrefetchScalarGridSpec(
            num_scalar_prefetch=0,
            grid=(nt,),
            in_specs=[pl.BlockSpec((tm, k), lambda i: (i, 0)),
                      pl.BlockSpec((k, cp), lambda i: (0, 0))],
            out_specs=(pl.BlockSpec((tm, cp), lambda i: (i, 0)),
                       pl.BlockSpec((1, 2, cp), lambda i: (i, 0, 0)))),
        compiler_params=pltpu.CompilerParams(
            dimension_semantics=("parallel",),     # per-tile partial stats -> no reduction axis
            vmem_limit_bytes=VMEM_LIMIT),
    )(p, w)
    return y, jnp.sum(stats, axis=0)


def _bn_relu(y, scale, shift, tm):
    mp, cp = y.shape
    return pl.pallas_call(
        _bn_relu_kernel,
        out_shape=jax.ShapeDtypeStruct((mp, cp), MM_DTYPE),
        grid_spec=pltpu.PrefetchScalarGridSpec(
            num_scalar_prefetch=0,
            grid=(mp // tm,),
            in_specs=[pl.BlockSpec((tm, cp), lambda i: (i, 0)),
                      pl.BlockSpec((1, cp), lambda i: (0, 0)),
                      pl.BlockSpec((1, cp), lambda i: (0, 0))],
            out_specs=pl.BlockSpec((tm, cp), lambda i: (i, 0))),
        compiler_params=pltpu.CompilerParams(
            dimension_semantics=("parallel",),
            vmem_limit_bytes=VMEM_LIMIT),
    )(y, scale, shift)


def _conv2_implicit(xp, w2, wo_valid):
    n, hp, wp, cp = xp.shape
    ho, wo_p = hp - 2, wp - 2
    hw = ho * wo_p
    y2, stats = pl.pallas_call(
        _make_conv3x3_s1_kernel(wo_valid),
        out_shape=(jax.ShapeDtypeStruct((n, hw, cp), MM_DTYPE),
                   jax.ShapeDtypeStruct((n, 2, cp), jnp.float32)),
        grid_spec=pltpu.PrefetchScalarGridSpec(
            num_scalar_prefetch=0,
            grid=(n,),
            in_specs=[pl.BlockSpec((1, hp, wp, cp), lambda i: (i, 0, 0, 0)),
                      pl.BlockSpec((9, cp, cp), lambda i: (0, 0, 0))],
            out_specs=(pl.BlockSpec((1, hw, cp), lambda i: (i, 0, 0)),
                       pl.BlockSpec((1, 2, cp), lambda i: (i, 0, 0)))),
        compiler_params=pltpu.CompilerParams(
            dimension_semantics=("parallel",),
            vmem_limit_bytes=VMEM_LIMIT),
    )(xp, w2)
    return y2, jnp.sum(stats, axis=0)


def _bn2_residual_relu(y2, ds, wd, scale, shift):
    n, hw, cp = y2.shape
    kd = ds.shape[-1]
    return pl.pallas_call(
        _bn2_ds_residual_relu_kernel,
        out_shape=jax.ShapeDtypeStruct((n, hw, cp), jnp.float32),
        grid_spec=pltpu.PrefetchScalarGridSpec(
            num_scalar_prefetch=0,
            grid=(n,),
            in_specs=[pl.BlockSpec((1, hw, cp), lambda i: (i, 0, 0)),
                      pl.BlockSpec((1, hw, kd), lambda i: (i, 0, 0)),
                      pl.BlockSpec((kd, cp), lambda i: (0, 0)),
                      pl.BlockSpec((1, cp), lambda i: (0, 0)),
                      pl.BlockSpec((1, cp), lambda i: (0, 0))],
            out_specs=pl.BlockSpec((1, hw, cp), lambda i: (i, 0, 0))),
        compiler_params=pltpu.CompilerParams(
            dimension_semantics=("parallel",),
            vmem_limit_bytes=VMEM_LIMIT),
    )(y2, ds, wd, scale, shift)


# ---------------- JAX glue (layout plumbing only) -------------------------------------

def _im2col(x_nhwc, ksize, stride, pad):
    n, h, w, c = x_nhwc.shape
    xp = jnp.pad(x_nhwc, ((0, 0), (pad, pad), (pad, pad), (0, 0)))
    ho = (h + 2 * pad - ksize) // stride + 1
    wo = (w + 2 * pad - ksize) // stride + 1
    cols = []
    for dy in range(ksize):
        for dx in range(ksize):
            patch = jax.lax.slice(
                xp, (0, dy, dx, 0),
                (n, dy + (ho - 1) * stride + 1, dx + (wo - 1) * stride + 1, c),
                (1, stride, stride, 1))
            cols.append(patch)
    patches = jnp.concatenate(cols, axis=-1)          # (N, Ho, Wo, k*k*C), tap-major
    return patches.reshape(n * ho * wo, ksize * ksize * c), ho, wo


def _to_gemm_weight(w_oihw, c_pad):
    co, ci, kh, kw = w_oihw.shape
    wm = jnp.transpose(w_oihw, (2, 3, 1, 0)).reshape(kh * kw * ci, co)
    return jnp.pad(wm, ((0, 0), (0, c_pad - co))).astype(MM_DTYPE)   # K left unpadded


def _to_tap_weight(w_oihw, c_pad):
    co, ci, kh, kw = w_oihw.shape
    wt = jnp.transpose(w_oihw, (2, 3, 1, 0))                         # (kh, kw, ci, co)
    wt = jnp.pad(wt, ((0, 0), (0, 0), (0, c_pad - ci), (0, c_pad - co)))
    return wt.reshape(kh * kw, c_pad, c_pad).astype(MM_DTYPE)        # tap-major


def _bn_scale_shift(stats, m_true, gamma, beta, c_pad):
    cout = gamma.shape[0]
    mean = stats[0] / m_true
    # TODO(synk): shifted/Welford-style accumulation if M gets large enough for
    #             E[x^2]-E[x]^2 cancellation to matter.
    var = jnp.maximum(stats[1] / m_true - mean * mean, 0.0)          # biased var (training BN)
    g = jnp.pad(gamma, (0, c_pad - cout))
    b = jnp.pad(beta, (0, c_pad - cout))
    scale = g * jax.lax.rsqrt(var + EPS)
    shift = b - mean * scale
    return scale.reshape(1, c_pad), shift.reshape(1, c_pad)


def encoder2d_block(x_nchw, params, stride):
    n, cin, h, w = x_nchw.shape
    cout = params["w1"].shape[0]
    cp = _round_up(cout, 128)

    x = jnp.transpose(x_nchw, (0, 2, 3, 1)).astype(MM_DTYPE)        # NHWC, bf16 before im2col

    # ---- conv1 (3x3, stride s, pad 1): tiled im2col-GEMM + per-tile BN1 stats ----
    p1, ho, wo = _im2col(x, 3, stride, 1)                            # (M, 9*Cin) bf16
    m = n * ho * wo
    k1 = p1.shape[1]
    tm1 = _choose_tile_m(
        m,
        bytes_per_row=2 * 2 * k1 + 2 * 2 * cp,       # bf16 patches + bf16 y1, double-buffered
        fixed_bytes=2 * 2 * k1 * cp + 4 * 1024)      # resident weight block (x2) + stats
    mp = _round_up(m, tm1)
    p1 = jnp.pad(p1, ((0, mp - m), (0, 0)))
    w1m = _to_gemm_weight(params["w1"], cp)
    y1, stats1 = _conv1_gemm(p1, w1m, tm1)                           # (Mp, Cp) bf16, (2, Cp) f32
    scale1, shift1 = _bn_scale_shift(stats1, m, params["g1"], params["b1"], cp)

    # ---- BN1 apply + ReLU (elementwise pass with its own, larger row tile) ----
    tm_e = tm1
    while tm_e * 2 <= min(mp, 4096) and mp % (tm_e * 2) == 0:
        tm_e *= 2
    y1_act = _bn_relu(y1, scale1, shift1, tm_e)                      # (Mp, Cp) bf16

    # ---- conv2 (3x3, stride 1, pad 1): implicit GEMM over the halo-padded NHWC map ----
    wo_p = _round_up(wo, 8)        # keep the in-kernel (Ho,Wo)->(Ho*Wo) collapse layout-trivial
    y1_img = y1_act[:m].reshape(n, ho, wo, cp)
    xp2 = jnp.pad(y1_img, ((0, 0), (1, 1), (1, 1 + wo_p - wo), (0, 0)))   # zero halo (post-ReLU)
    w2m = _to_tap_weight(params["w2"], cp)
    y2, stats2 = _conv2_implicit(xp2, w2m, wo)                       # (N, Ho*Wo_p, Cp) bf16
    scale2, shift2 = _bn_scale_shift(stats2, m, params["g2"], params["b2"], cp)
    shift2 = shift2 + jnp.pad(params["bd"], (0, cp - cout)).reshape(1, cp)   # fold ds bias

    # ---- downsample (1x1 conv, stride s) fused into the BN2/residual/ReLU epilogue ----
    ds = jax.lax.slice(
        x, (0, 0, 0, 0),
        (n, (ho - 1) * stride + 1, (wo - 1) * stride + 1, cin),
        (1, stride, stride, 1))                                      # (N, Ho, Wo, Cin) bf16
    ds = jnp.pad(ds, ((0, 0), (0, 0), (0, wo_p - wo), (0, 0))).reshape(n, ho * wo_p, cin)
    wdm = jnp.pad(params["wd"].reshape(cout, cin).T,
                  ((0, 0), (0, cp - cout))).astype(MM_DTYPE)         # (Cin, Cp), K unpadded

    out = _bn2_residual_relu(y2, ds, wdm, scale2, shift2)            # (N, Ho*Wo_p, Cp) f32
    out = out.reshape(n, ho, wo_p, cp)[:, :, :wo, :cout]
    return jnp.transpose(out, (0, 3, 1, 2))                          # back to NCHW


# ---------------- pure-JAX reference --------------------------------------------------

def _reference(x, params, stride):
    def conv(x, w, s, p):
        return jax.lax.conv_general_dilated(
            x, w, (s, s), ((p, p), (p, p)),
            dimension_numbers=("NCHW", "OIHW", "NCHW"))

    def bn(x, g, b):
        mean = jnp.mean(x, axis=(0, 2, 3), keepdims=True)
        var = jnp.mean(jnp.square(x - mean), axis=(0, 2, 3), keepdims=True)
        return ((x - mean) * jax.lax.rsqrt(var + EPS) * g[None, :, None, None]
                + b[None, :, None, None])

    y = jax.nn.relu(bn(conv(x, params["w1"], stride, 1), params["g1"], params["b1"]))
    y = bn(conv(y, params["w2"], 1, 1), params["g2"], params["b2"])
    ds = conv(x, params["wd"], stride, 0) + params["bd"][None, :, None, None]
    return jax.nn.relu(y + ds)


if __name__ == "__main__":
    N, Cin, Cout, H, W, stride = 2, 4, 8, 16, 16, 2

    key = jax.random.PRNGKey(0)
    ks = jax.random.split(key, 9)
    params = {
        "w1": 0.1 * jax.random.normal(ks[0], (Cout, Cin, 3, 3), jnp.float32),
        "g1": 1.0 + 0.1 * jax.random.normal(ks[1], (Cout,), jnp.float32),
        "b1": 0.1 * jax.random.normal(ks[2], (Cout,), jnp.float32),
        "w2": 0.1 * jax.random.normal(ks[3], (Cout, Cout, 3, 3), jnp.float32),
        "g2": 1.0 + 0.1 * jax.random.normal(ks[4], (Cout,), jnp.float32),
        "b2": 0.1 * jax.random.normal(ks[5], (Cout,), jnp.float32),
        "wd": 0.1 * jax.random.normal(ks[6], (Cout, Cin, 1, 1), jnp.float32),
        "bd": 0.1 * jax.random.normal(ks[7], (Cout,), jnp.float32),
    }
    x = jax.random.normal(ks[8], (N, Cin, H, W), jnp.float32)

    fn = jax.jit(encoder2d_block, static_argnums=2)
    out = jax.block_until_ready(fn(x, params, stride))
    ref = jax.block_until_ready(_reference(x, params, stride))
    # bf16 MXU operands and bf16-stored intermediates (y1, y1_act, y2) -> relaxed
    # tolerance; BN statistics and matmul accumulation stay f32.
    np.testing.assert_allclose(np.asarray(out), np.asarray(ref), rtol=3e-2, atol=3e-2)
    print("KERNEL_OK")
</pallas_src>

<mosaic_0001>
module attributes {stable_mosaic.version = 11 : i64} {
  func.func @_gemm_stats_kernel(%arg0: i32, %arg1: memref<128x36xbf16, #tpu.memory_space<vmem>>, %arg2: memref<36x128xbf16, #tpu.memory_space<vmem>>, %arg3: memref<128x128xbf16, #tpu.memory_space<vmem>>, %arg4: memref<1x2x128xf32, #tpu.memory_space<vmem>>) attributes {dimension_semantics = [#tpu.dimension_semantics<parallel>], iteration_bounds = array<i64: 1>, scalar_prefetch = 0 : i64, scratch_operands = 0 : i64, tpu.core_type = #tpu.core_type<tc>, window_params = [{transform_indices = @transform_0, window_bounds = array<i64: 128, 36>}, {pipeline_mode = #tpu.pipeline_mode<synchronous>, transform_indices = @transform_1, window_bounds = array<i64: 36, 128>}, {transform_indices = @transform_2, window_bounds = array<i64: 128, 128>}, {transform_indices = @transform_3, window_bounds = array<i64: 1, 2, 128>}]} {
    %c0 = arith.constant 0 : index
    %c0_0 = arith.constant 0 : index
    %0 = vector.load %arg1[%c0, %c0_0] : memref<128x36xbf16, #tpu.memory_space<vmem>>, vector<128x36xbf16>
    %c0_1 = arith.constant 0 : index
    %c0_2 = arith.constant 0 : index
    %1 = vector.load %arg2[%c0_1, %c0_2] : memref<36x128xbf16, #tpu.memory_space<vmem>>, vector<36x128xbf16>
    %cst = arith.constant dense<0.000000e+00> : vector<128x128xf32>
    %2 = tpu.matmul %0, %1, %cst {dimension_numbers = #tpu.dot_dimension_numbers<[1], [0], [0], [1], [0, 0, 1, 1], [], []>} : vector<128x36xbf16>, vector<36x128xbf16>, vector<128x128xf32> -> vector<128x128xf32>
    %3 = arith.truncf %2 : vector<128x128xf32> to vector<128x128xbf16>
    %c0_3 = arith.constant 0 : index
    %c0_4 = arith.constant 0 : index
    %4 = vector.load %arg3[%c0_3, %c0_4] : memref<128x128xbf16, #tpu.memory_space<vmem>>, vector<128x128xbf16>
    tpu.vector_store %arg3[%c0_3, %c0_4], %3 {strides = array<i32>} : memref<128x128xbf16, #tpu.memory_space<vmem>>, vector<128x128xbf16>,
    %cst_5 = arith.constant dense<0.000000e+00> : vector<128xf32>
    %5 = vector.multi_reduction <add>, %2, %cst_5 [0] : vector<128x128xf32> to vector<128xf32>
    %6 = vector.shape_cast %5 : vector<128xf32> to vector<1x128xf32>
    %c0_6 = arith.constant 0 : index
    %c0_7 = arith.constant 0 : index
    %c0_8 = arith.constant 0 : index
    %7 = vector.load %arg4[%c0_6, %c0_7, %c0_8] : memref<1x2x128xf32, #tpu.memory_space<vmem>>, vector<1x1x128xf32>
    %8 = vector.shape_cast %7 : vector<1x1x128xf32> to vector<1x128xf32>
    %9 = vector.shape_cast %6 : vector<1x128xf32> to vector<1x1x128xf32>
    tpu.vector_store %arg4[%c0_6, %c0_7, %c0_8], %9 {strides = array<i32>} : memref<1x2x128xf32, #tpu.memory_space<vmem>>, vector<1x1x128xf32>,
    %10 = arith.mulf %2, %2 : vector<128x128xf32>
    %cst_9 = arith.constant dense<0.000000e+00> : vector<128xf32>
    %11 = vector.multi_reduction <add>, %10, %cst_9 [0] : vector<128x128xf32> to vector<128xf32>
    %12 = vector.shape_cast %11 : vector<128xf32> to vector<1x128xf32>
    %c0_10 = arith.constant 0 : index
    %c1 = arith.constant 1 : index
    %c0_11 = arith.constant 0 : index
    %13 = vector.load %arg4[%c0_10, %c1, %c0_11] : memref<1x2x128xf32, #tpu.memory_space<vmem>>, vector<1x1x128xf32>
    %14 = vector.shape_cast %13 : vector<1x1x128xf32> to vector<1x128xf32>
    %15 = vector.shape_cast %12 : vector<1x128xf32> to vector<1x1x128xf32>
    tpu.vector_store %arg4[%c0_10, %c1, %c0_11], %15 {strides = array<i32>} : memref<1x2x128xf32, #tpu.memory_space<vmem>>, vector<1x1x128xf32>,
    return
  }
  func.func @transform_0(%arg0: i32) -> (i32, i32) {
    %c0_i32 = arith.constant 0 : i32
    %c0_i32_0 = arith.constant 0 : i32
    return %arg0, %c0_i32 : i32, i32
  }
  func.func @transform_1(%arg0: i32) -> (i32, i32) {
    %c0_i32 = arith.constant 0 : i32
    %c0_i32_0 = arith.constant 0 : i32
    %c0_i32_1 = arith.constant 0 : i32
    return %c0_i32, %c0_i32_0 : i32, i32
  }
  func.func @transform_2(%arg0: i32) -> (i32, i32) {
    %c0_i32 = arith.constant 0 : i32
    %c0_i32_0 = arith.constant 0 : i32
    return %arg0, %c0_i32 : i32, i32
  }
  func.func @transform_3(%arg0: i32) -> (i32, i32, i32) {
    %c0_i32 = arith.constant 0 : i32
    %c0_i32_0 = arith.constant 0 : i32
    %c0_i32_1 = arith.constant 0 : i32
    return %arg0, %c0_i32, %c0_i32_0 : i32, i32, i32
  }
}

module attributes {stable_mosaic.version = 11 : i64} {
  func.func @_bn_relu_kernel(%arg0: i32, %arg1: memref<128x128xbf16, #tpu.memory_space<vmem>>, %arg2: memref<1x128xf32, #tpu.memory_space<vmem>>, %arg3: memref<1x128xf32, #tpu.memory_space<vmem>>, %arg4: memref<128x128xbf16, #tpu.memory_space<vmem>>) attributes {dimension_semantics = [#tpu.dimension_semantics<parallel>], iteration_bounds = array<i64: 1>, scalar_prefetch = 0 : i64, scratch_operands = 0 : i64, tpu.core_type = #tpu.core_type<tc>, window_params = [{transform_indices = @transform_0, window_bounds = array<i64: 128, 128>}, {pipeline_mode = #tpu.pipeline_mode<synchronous>, transform_indices = @transform_1, window_bounds = array<i64: 1, 128>}, {pipeline_mode = #tpu.pipeline_mode<synchronous>, transform_indices = @transform_2, window_bounds = array<i64: 1, 128>}, {transform_indices = @transform_3, window_bounds = array<i64: 128, 128>}]} {
    %c0 = arith.constant 0 : index
    %c0_0 = arith.constant 0 : index
    %0 = vector.load %arg1[%c0, %c0_0] : memref<128x128xbf16, #tpu.memory_space<vmem>>, vector<128x128xbf16>
    %1 = arith.extf %0 : vector<128x128xbf16> to vector<128x128xf32>
    %c0_1 = arith.constant 0 : index
    %c0_2 = arith.constant 0 : index
    %2 = vector.load %arg2[%c0_1, %c0_2] : memref<1x128xf32, #tpu.memory_space<vmem>>, vector<1x128xf32>
    %3 = vector.broadcast %2 : vector<1x128xf32> to vector<128x128xf32>
    %4 = arith.mulf %1, %3 : vector<128x128xf32>
    %c0_3 = arith.constant 0 : index
    %c0_4 = arith.constant 0 : index
    %5 = vector.load %arg3[%c0_3, %c0_4] : memref<1x128xf32, #tpu.memory_space<vmem>>, vector<1x128xf32>
    %6 = vector.broadcast %5 : vector<1x128xf32> to vector<128x128xf32>
    %7 = arith.addf %4, %6 : vector<128x128xf32>
    %cst = arith.constant 0.000000e+00 : f32
    %8 = vector.broadcast %cst : f32 to vector<128x128xf32>
    %9 = arith.maximumf %7, %8 : vector<128x128xf32>
    %10 = arith.truncf %9 : vector<128x128xf32> to vector<128x128xbf16>
    %c0_5 = arith.constant 0 : index
    %c0_6 = arith.constant 0 : index
    %11 = vector.load %arg4[%c0_5, %c0_6] : memref<128x128xbf16, #tpu.memory_space<vmem>>, vector<128x128xbf16>
    tpu.vector_store %arg4[%c0_5, %c0_6], %10 {strides = array<i32>} : memref<128x128xbf16, #tpu.memory_space<vmem>>, vector<128x128xbf16>,
    return
  }
  func.func @transform_0(%arg0: i32) -> (i32, i32) {
    %c0_i32 = arith.constant 0 : i32
    %c0_i32_0 = arith.constant 0 : i32
    return %arg0, %c0_i32 : i32, i32
  }
  func.func @transform_1(%arg0: i32) -> (i32, i32) {
    %c0_i32 = arith.constant 0 : i32
    %c0_i32_0 = arith.constant 0 : i32
    %c0_i32_1 = arith.constant 0 : i32
    return %c0_i32, %c0_i32_0 : i32, i32
  }
  func.func @transform_2(%arg0: i32) -> (i32, i32) {
    %c0_i32 = arith.constant 0 : i32
    %c0_i32_0 = arith.constant 0 : i32
    %c0_i32_1 = arith.constant 0 : i32
    return %c0_i32, %c0_i32_0 : i32, i32
  }
  func.func @transform_3(%arg0: i32) -> (i32, i32) {
    %c0_i32 = arith.constant 0 : i32
    %c0_i32_0 = arith.constant 0 : i32
    return %arg0, %c0_i32 : i32, i32
  }
}

module attributes {stable_mosaic.version = 11 : i64} {
  func.func @kernel(%arg0: i32, %arg1: memref<1x10x10x128xbf16, #tpu.memory_space<vmem>>, %arg2: memref<9x128x128xbf16, #tpu.memory_space<vmem>>, %arg3: memref<1x64x128xbf16, #tpu.memory_space<vmem>>, %arg4: memref<1x2x128xf32, #tpu.memory_space<vmem>>) attributes {dimension_semantics = [#tpu.dimension_semantics<parallel>], iteration_bounds = array<i64: 2>, scalar_prefetch = 0 : i64, scratch_operands = 0 : i64, tpu.core_type = #tpu.core_type<tc>, window_params = [{transform_indices = @transform_0, window_bounds = array<i64: 1, 10, 10, 128>}, {pipeline_mode = #tpu.pipeline_mode<synchronous>, transform_indices = @transform_1, window_bounds = array<i64: 9, 128, 128>}, {transform_indices = @transform_2, window_bounds = array<i64: 1, 64, 128>}, {transform_indices = @transform_3, window_bounds = array<i64: 1, 2, 128>}]} {
    %cst = arith.constant 0.000000e+00 : f32
    %0 = vector.broadcast %cst : f32 to vector<64x128xf32>
    %c0 = arith.constant 0 : index
    %c0_0 = arith.constant 0 : index
    %c0_1 = arith.constant 0 : index
    %c0_2 = arith.constant 0 : index
    %1 = vector.load %arg1[%c0, %c0_0, %c0_1, %c0_2] : memref<1x10x10x128xbf16, #tpu.memory_space<vmem>>, vector<1x8x8x128xbf16>
    %2 = vector.shape_cast %1 : vector<1x8x8x128xbf16> to vector<8x8x128xbf16>
    %3 = arith.extf %2 : vector<8x8x128xbf16> to vector<8x8x128xf32>
    %4 = vector.shape_cast %3 : vector<8x8x128xf32> to vector<64x128xf32>
    %5 = arith.truncf %4 : vector<64x128xf32> to vector<64x128xbf16>
    %c0_3 = arith.constant 0 : index
    %c0_4 = arith.constant 0 : index
    %c0_5 = arith.constant 0 : index
    %6 = vector.load %arg2[%c0_3, %c0_4, %c0_5] : memref<9x128x128xbf16, #tpu.memory_space<vmem>>, vector<1x128x128xbf16>
    %7 = vector.shape_cast %6 : vector<1x128x128xbf16> to vector<128x128xbf16>
    %cst_6 = arith.constant dense<0.000000e+00> : vector<64x128xf32>
    %8 = tpu.matmul %5, %7, %cst_6 {dimension_numbers = #tpu.dot_dimension_numbers<[1], [0], [0], [1], [0, 0, 1, 1], [], []>} : vector<64x128xbf16>, vector<128x128xbf16>, vector<64x128xf32> -> vector<64x128xf32>
    %9 = arith.addf %0, %8 : vector<64x128xf32>
    %c0_7 = arith.constant 0 : index
    %c0_8 = arith.constant 0 : index
    %c1 = arith.constant 1 : index
    %c0_9 = arith.constant 0 : index
    %10 = vector.load %arg1[%c0_7, %c0_8, %c1, %c0_9] : memref<1x10x10x128xbf16, #tpu.memory_space<vmem>>, vector<1x8x8x128xbf16>
    %11 = vector.shape_cast %10 : vector<1x8x8x128xbf16> to vector<8x8x128xbf16>
    %12 = arith.extf %11 : vector<8x8x128xbf16> to vector<8x8x128xf32>
    %13 = vector.shape_cast %12 : vector<8x8x128xf32> to vector<64x128xf32>
    %14 = arith.truncf %13 : vector<64x128xf32> to vector<64x128xbf16>
    %c1_10 = arith.constant 1 : index
    %c0_11 = arith.constant 0 : index
    %c0_12 = arith.constant 0 : index
    %15 = vector.load %arg2[%c1_10, %c0_11, %c0_12] : memref<9x128x128xbf16, #tpu.memory_space<vmem>>, vector<1x128x128xbf16>
    %16 = vector.shape_cast %15 : vector<1x128x128xbf16> to vector<128x128xbf16>
    %cst_13 = arith.constant dense<0.000000e+00> : vector<64x128xf32>
    %17 = tpu.matmul %14, %16, %cst_13 {dimension_numbers = #tpu.dot_dimension_numbers<[1], [0], [0], [1], [0, 0, 1, 1], [], []>} : vector<64x128xbf16>, vector<128x128xbf16>, vector<64x128xf32> -> vector<64x128xf32>
    %18 = arith.addf %9, %17 : vector<64x128xf32>
    %c0_14 = arith.constant 0 : index
    %c0_15 = arith.constant 0 : index
    %c2 = arith.constant 2 : index
    %c0_16 = arith.constant 0 : index
    %19 = vector.load %arg1[%c0_14, %c0_15, %c2, %c0_16] : memref<1x10x10x128xbf16, #tpu.memory_space<vmem>>, vector<1x8x8x128xbf16>
    %20 = vector.shape_cast %19 : vector<1x8x8x128xbf16> to vector<8x8x128xbf16>
    %21 = arith.extf %20 : vector<8x8x128xbf16> to vector<8x8x128xf32>
    %22 = vector.shape_cast %21 : vector<8x8x128xf32> to vector<64x128xf32>
    %23 = arith.truncf %22 : vector<64x128xf32> to vector<64x128xbf16>
    %c2_17 = arith.constant 2 : index
    %c0_18 = arith.constant 0 : index
    %c0_19 = arith.constant 0 : index
    %24 = vector.load %arg2[%c2_17, %c0_18, %c0_19] : memref<9x128x128xbf16, #tpu.memory_space<vmem>>, vector<1x128x128xbf16>
    %25 = vector.shape_cast %24 : vector<1x128x128xbf16> to vector<128x128xbf16>
    %cst_20 = arith.constant dense<0.000000e+00> : vector<64x128xf32>
    %26 = tpu.matmul %23, %25, %cst_20 {dimension_numbers = #tpu.dot_dimension_numbers<[1], [0], [0], [1], [0, 0, 1, 1], [], []>} : vector<64x128xbf16>, vector<128x128xbf16>, vector<64x128xf32> -> vector<64x128xf32>
    %27 = arith.addf %18, %26 : vector<64x128xf32>
    %c0_21 = arith.constant 0 : index
    %c1_22 = arith.constant 1 : index
    %c0_23 = arith.constant 0 : index
    %c0_24 = arith.constant 0 : index
    %28 = vector.load %arg1[%c0_21, %c1_22, %c0_23, %c0_24] : memref<1x10x10x128xbf16, #tpu.memory_space<vmem>>, vector<1x8x8x128xbf16>
    %29 = vector.shape_cast %28 : vector<1x8x8x128xbf16> to vector<8x8x128xbf16>
    %30 = arith.extf %29 : vector<8x8x128xbf16> to vector<8x8x128xf32>
    %31 = vector.shape_cast %30 : vector<8x8x128xf32> to vector<64x128xf32>
    %32 = arith.truncf %31 : vector<64x128xf32> to vector<64x128xbf16>
    %c3 = arith.constant 3 : index
    %c0_25 = arith.constant 0 : index
    %c0_26 = arith.constant 0 : index
    %33 = vector.load %arg2[%c3, %c0_25, %c0_26] : memref<9x128x128xbf16, #tpu.memory_space<vmem>>, vector<1x128x128xbf16>
    %34 = vector.shape_cast %33 : vector<1x128x128xbf16> to vector<128x128xbf16>
    %cst_27 = arith.constant dense<0.000000e+00> : vector<64x128xf32>
    %35 = tpu.matmul %32, %34, %cst_27 {dimension_numbers = #tpu.dot_dimension_numbers<[1], [0], [0], [1], [0, 0, 1, 1], [], []>} : vector<64x128xbf16>, vector<128x128xbf16>, vector<64x128xf32> -> vector<64x128xf32>
    %36 = arith.addf %27, %35 : vector<64x128xf32>
    %c0_28 = arith.constant 0 : index
    %c1_29 = arith.constant 1 : index
    %c1_30 = arith.constant 1 : index
    %c0_31 = arith.constant 0 : index
    %37 = vector.load %arg1[%c0_28, %c1_29, %c1_30, %c0_31] : memref<1x10x10x128xbf16, #tpu.memory_space<vmem>>, vector<1x8x8x128xbf16>
    %38 = vector.shape_cast %37 : vector<1x8x8x128xbf16> to vector<8x8x128xbf16>
    %39 = arith.extf %38 : vector<8x8x128xbf16> to vector<8x8x128xf32>
    %40 = vector.shape_cast %39 : vector<8x8x128xf32> to vector<64x128xf32>
    %41 = arith.truncf %40 : vector<64x128xf32> to vector<64x128xbf16>
    %c4 = arith.constant 4 : index
    %c0_32 = arith.constant 0 : index
    %c0_33 = arith.constant 0 : index
    %42 = vector.load %arg2[%c4, %c0_32, %c0_33] : memref<9x128x128xbf16, #tpu.memory_space<vmem>>, vector<1x128x128xbf16>
    %43 = vector.shape_cast %42 : vector<1x128x128xbf16> to vector<128x128xbf16>
    %cst_34 = arith.constant dense<0.000000e+00> : vector<64x128xf32>
    %44 = tpu.matmul %41, %43, %cst_34 {dimension_numbers = #tpu.dot_dimension_numbers<[1], [0], [0], [1], [0, 0, 1, 1], [], []>} : vector<64x128xbf16>, vector<128x128xbf16>, vector<64x128xf32> -> vector<64x128xf32>
    %45 = arith.addf %36, %44 : vector<64x128xf32>
    %c0_35 = arith.constant 0 : index
    %c1_36 = arith.constant 1 : index
    %c2_37 = arith.constant 2 : index
    %c0_38 = arith.constant 0 : index
    %46 = vector.load %arg1[%c0_35, %c1_36, %c2_37, %c0_38] : memref<1x10x10x128xbf16, #tpu.memory_space<vmem>>, vector<1x8x8x128xbf16>
    %47 = vector.shape_cast %46 : vector<1x8x8x128xbf16> to vector<8x8x128xbf16>
    %48 = arith.extf %47 : vector<8x8x128xbf16> to vector<8x8x128xf32>
    %49 = vector.shape_cast %48 : vector<8x8x128xf32> to vector<64x128xf32>
    %50 = arith.truncf %49 : vector<64x128xf32> to vector<64x128xbf16>
    %c5 = arith.constant 5 : index
    %c0_39 = arith.constant 0 : index
    %c0_40 = arith.constant 0 : index
    %51 = vector.load %arg2[%c5, %c0_39, %c0_40] : memref<9x128x128xbf16, #tpu.memory_space<vmem>>, vector<1x128x128xbf16>
    %52 = vector.shape_cast %51 : vector<1x128x128xbf16> to vector<128x128xbf16>
    %cst_41 = arith.constant dense<0.000000e+00> : vector<64x128xf32>
    %53 = tpu.matmul %50, %52, %cst_41 {dimension_numbers = #tpu.dot_dimension_numbers<[1], [0], [0], [1], [0, 0, 1, 1], [], []>} : vector<64x128xbf16>, vector<128x128xbf16>, vector<64x128xf32> -> vector<64x128xf32>
    %54 = arith.addf %45, %53 : vector<64x128xf32>
    %c0_42 = arith.constant 0 : index
    %c2_43 = arith.constant 2 : index
    %c0_44 = arith.constant 0 : index
    %c0_45 = arith.constant 0 : index
    %55 = vector.load %arg1[%c0_42, %c2_43, %c0_44, %c0_45] : memref<1x10x10x128xbf16, #tpu.memory_space<vmem>>, vector<1x8x8x128xbf16>
    %56 = vector.shape_cast %55 : vector<1x8x8x128xbf16> to vector<8x8x128xbf16>
    %57 = arith.extf %56 : vector<8x8x128xbf16> to vector<8x8x128xf32>
    %58 = vector.shape_cast %57 : vector<8x8x128xf32> to vector<64x128xf32>
    %59 = arith.truncf %58 : vector<64x128xf32> to vector<64x128xbf16>
    %c6 = arith.constant 6 : index
    %c0_46 = arith.constant 0 : index
    %c0_47 = arith.constant 0 : index
    %60 = vector.load %arg2[%c6, %c0_46, %c0_47] : memref<9x128x128xbf16, #tpu.memory_space<vmem>>, vector<1x128x128xbf16>
    %61 = vector.shape_cast %60 : vector<1x128x128xbf16> to vector<128x128xbf16>
    %cst_48 = arith.constant dense<0.000000e+00> : vector<64x128xf32>
    %62 = tpu.matmul %59, %61, %cst_48 {dimension_numbers = #tpu.dot_dimension_numbers<[1], [0], [0], [1], [0, 0, 1, 1], [], []>} : vector<64x128xbf16>, vector<128x128xbf16>, vector<64x128xf32> -> vector<64x128xf32>
    %63 = arith.addf %54, %62 : vector<64x128xf32>
    %c0_49 = arith.constant 0 : index
    %c2_50 = arith.constant 2 : index
    %c1_51 = arith.constant 1 : index
    %c0_52 = arith.constant 0 : index
    %64 = vector.load %arg1[%c0_49, %c2_50, %c1_51, %c0_52] : memref<1x10x10x128xbf16, #tpu.memory_space<vmem>>, vector<1x8x8x128xbf16>
    %65 = vector.shape_cast %64 : vector<1x8x8x128xbf16> to vector<8x8x128xbf16>
    %66 = arith.extf %65 : vector<8x8x128xbf16> to vector<8x8x128xf32>
    %67 = vector.shape_cast %66 : vector<8x8x128xf32> to vector<64x128xf32>
    %68 = arith.truncf %67 : vector<64x128xf32> to vector<64x128xbf16>
    %c7 = arith.constant 7 : index
    %c0_53 = arith.constant 0 : index
    %c0_54 = arith.constant 0 : index
    %69 = vector.load %arg2[%c7, %c0_53, %c0_54] : memref<9x128x128xbf16, #tpu.memory_space<vmem>>, vector<1x128x128xbf16>
    %70 = vector.shape_cast %69 : vector<1x128x128xbf16> to vector<128x128xbf16>
    %cst_55 = arith.constant dense<0.000000e+00> : vector<64x128xf32>
    %71 = tpu.matmul %68, %70, %cst_55 {dimension_numbers = #tpu.dot_dimension_numbers<[1], [0], [0], [1], [0, 0, 1, 1], [], []>} : vector<64x128xbf16>, vector<128x128xbf16>, vector<64x128xf32> -> vector<64x128xf32>
    %72 = arith.addf %63, %71 : vector<64x128xf32>
    %c0_56 = arith.constant 0 : index
    %c2_57 = arith.constant 2 : index
    %c2_58 = arith.constant 2 : index
    %c0_59 = arith.constant 0 : index
    %73 = vector.load %arg1[%c0_56, %c2_57, %c2_58, %c0_59] : memref<1x10x10x128xbf16, #tpu.memory_space<vmem>>, vector<1x8x8x128xbf16>
    %74 = vector.shape_cast %73 : vector<1x8x8x128xbf16> to vector<8x8x128xbf16>
    %75 = arith.extf %74 : vector<8x8x128xbf16> to vector<8x8x128xf32>
    %76 = vector.shape_cast %75 : vector<8x8x128xf32> to vector<64x128xf32>
    %77 = arith.truncf %76 : vector<64x128xf32> to vector<64x128xbf16>
    %c8 = arith.constant 8 : index
    %c0_60 = arith.constant 0 : index
    %c0_61 = arith.constant 0 : index
    %78 = vector.load %arg2[%c8, %c0_60, %c0_61] : memref<9x128x128xbf16, #tpu.memory_space<vmem>>, vector<1x128x128xbf16>
    %79 = vector.shape_cast %78 : vector<1x128x128xbf16> to vector<128x128xbf16>
    %cst_62 = arith.constant dense<0.000000e+00> : vector<64x128xf32>
    %80 = tpu.matmul %77, %79, %cst_62 {dimension_numbers = #tpu.dot_dimension_numbers<[1], [0], [0], [1], [0, 0, 1, 1], [], []>} : vector<64x128xbf16>, vector<128x128xbf16>, vector<64x128xf32> -> vector<64x128xf32>
    %81 = arith.addf %72, %80 : vector<64x128xf32>
    %82 = arith.truncf %81 : vector<64x128xf32> to vector<64x128xbf16>
    %c0_63 = arith.constant 0 : index
    %c0_64 = arith.constant 0 : index
    %c0_65 = arith.constant 0 : index
    %83 = vector.load %arg3[%c0_63, %c0_64, %c0_65] : memref<1x64x128xbf16, #tpu.memory_space<vmem>>, vector<1x64x128xbf16>
    %84 = vector.shape_cast %83 : vector<1x64x128xbf16> to vector<64x128xbf16>
    %85 = vector.shape_cast %82 : vector<64x128xbf16> to vector<1x64x128xbf16>
    tpu.vector_store %arg3[%c0_63, %c0_64, %c0_65], %85 {strides = array<i32>} : memref<1x64x128xbf16, #tpu.memory_space<vmem>>, vector<1x64x128xbf16>,
    %cst_66 = arith.constant dense<0.000000e+00> : vector<128xf32>
    %86 = vector.multi_reduction <add>, %81, %cst_66 [0] : vector<64x128xf32> to vector<128xf32>
    %87 = vector.shape_cast %86 : vector<128xf32> to vector<1x128xf32>
    %c0_67 = arith.constant 0 : index
    %c0_68 = arith.constant 0 : index
    %c0_69 = arith.constant 0 : index
    %88 = vector.load %arg4[%c0_67, %c0_68, %c0_69] : memref<1x2x128xf32, #tpu.memory_space<vmem>>, vector<1x1x128xf32>
    %89 = vector.shape_cast %88 : vector<1x1x128xf32> to vector<1x128xf32>
    %90 = vector.shape_cast %87 : vector<1x128xf32> to vector<1x1x128xf32>
    tpu.vector_store %arg4[%c0_67, %c0_68, %c0_69], %90 {strides = array<i32>} : memref<1x2x128xf32, #tpu.memory_space<vmem>>, vector<1x1x128xf32>,
    %91 = arith.mulf %81, %81 : vector<64x128xf32>
    %cst_70 = arith.constant dense<0.000000e+00> : vector<128xf32>
    %92 = vector.multi_reduction <add>, %91, %cst_70 [0] : vector<64x128xf32> to vector<128xf32>
    %93 = vector.shape_cast %92 : vector<128xf32> to vector<1x128xf32>
    %c0_71 = arith.constant 0 : index
    %c1_72 = arith.constant 1 : index
    %c0_73 = arith.constant 0 : index
    %94 = vector.load %arg4[%c0_71, %c1_72, %c0_73] : memref<1x2x128xf32, #tpu.memory_space<vmem>>, vector<1x1x128xf32>
    %95 = vector.shape_cast %94 : vector<1x1x128xf32> to vector<1x128xf32>
    %96 = vector.shape_cast %93 : vector<1x128xf32> to vector<1x1x128xf32>
    tpu.vector_store %arg4[%c0_71, %c1_72, %c0_73], %96 {strides = array<i32>} : memref<1x2x128xf32, #tpu.memory_space<vmem>>, vector<1x1x128xf32>,
    return
  }
  func.func @transform_0(%arg0: i32) -> (i32, i32, i32, i32) {
    %c0_i32 = arith.constant 0 : i32
    %c0_i32_0 = arith.constant 0 : i32
    %c0_i32_1 = arith.constant 0 : i32
    %c0_i32_2 = arith.constant 0 : i32
    return %arg0, %c0_i32, %c0_i32_0, %c0_i32_1 : i32, i32, i32, i32
  }
  func.func @transform_1(%arg0: i32) -> (i32, i32, i32) {
    %c0_i32 = arith.constant 0 : i32
    %c0_i32_0 = arith.constant 0 : i32
    %c0_i32_1 = arith.constant 0 : i32
    %c0_i32_2 = arith.constant 0 : i32
    return %c0_i32, %c0_i32_0, %c0_i32_1 : i32, i32, i32
  }
  func.func @transform_2(%arg0: i32) -> (i32, i32, i32) {
    %c0_i32 = arith.constant 0 : i32
    %c0_i32_0 = arith.constant 0 : i32
    %c0_i32_1 = arith.constant 0 : i32
    return %arg0, %c0_i32, %c0_i32_0 : i32, i32, i32
  }
  func.func @transform_3(%arg0: i32) -> (i32, i32, i32) {
    %c0_i32 = arith.constant 0 : i32
    %c0_i32_0 = arith.constant 0 : i32
    %c0_i32_1 = arith.constant 0 : i32
    return %arg0, %c0_i32, %c0_i32_0 : i32, i32, i32
  }
}

module attributes {stable_mosaic.version = 11 : i64} {
  func.func @_bn2_ds_residual_relu_kernel(%arg0: i32, %arg1: memref<1x64x128xbf16, #tpu.memory_space<vmem>>, %arg2: memref<1x64x4xbf16, #tpu.memory_space<vmem>>, %arg3: memref<4x128xbf16, #tpu.memory_space<vmem>>, %arg4: memref<1x128xf32, #tpu.memory_space<vmem>>, %arg5: memref<1x128xf32, #tpu.memory_space<vmem>>, %arg6: memref<1x64x128xf32, #tpu.memory_space<vmem>>) attributes {dimension_semantics = [#tpu.dimension_semantics<parallel>], iteration_bounds = array<i64: 2>, scalar_prefetch = 0 : i64, scratch_operands = 0 : i64, tpu.core_type = #tpu.core_type<tc>, window_params = [{transform_indices = @transform_0, window_bounds = array<i64: 1, 64, 128>}, {transform_indices = @transform_1, window_bounds = array<i64: 1, 64, 4>}, {pipeline_mode = #tpu.pipeline_mode<synchronous>, transform_indices = @transform_2, window_bounds = array<i64: 4, 128>}, {pipeline_mode = #tpu.pipeline_mode<synchronous>, transform_indices = @transform_3, window_bounds = array<i64: 1, 128>}, {pipeline_mode = #tpu.pipeline_mode<synchronous>, transform_indices = @transform_4, window_bounds = array<i64: 1, 128>}, {transform_indices = @transform_5, window_bounds = array<i64: 1, 64, 128>}]} {
    %c0 = arith.constant 0 : index
    %c0_0 = arith.constant 0 : index
    %c0_1 = arith.constant 0 : index
    %0 = vector.load %arg2[%c0, %c0_0, %c0_1] : memref<1x64x4xbf16, #tpu.memory_space<vmem>>, vector<1x64x4xbf16>
    %1 = vector.shape_cast %0 : vector<1x64x4xbf16> to vector<64x4xbf16>
    %c0_2 = arith.constant 0 : index
    %c0_3 = arith.constant 0 : index
    %2 = vector.load %arg3[%c0_2, %c0_3] : memref<4x128xbf16, #tpu.memory_space<vmem>>, vector<4x128xbf16>
    %cst = arith.constant dense<0.000000e+00> : vector<64x128xf32>
    %3 = tpu.matmul %1, %2, %cst {dimension_numbers = #tpu.dot_dimension_numbers<[1], [0], [0], [1], [0, 0, 1, 1], [], []>} : vector<64x4xbf16>, vector<4x128xbf16>, vector<64x128xf32> -> vector<64x128xf32>
    %c0_4 = arith.constant 0 : index
    %c0_5 = arith.constant 0 : index
    %c0_6 = arith.constant 0 : index
    %4 = vector.load %arg1[%c0_4, %c0_5, %c0_6] : memref<1x64x128xbf16, #tpu.memory_space<vmem>>, vector<1x64x128xbf16>
    %5 = vector.shape_cast %4 : vector<1x64x128xbf16> to vector<64x128xbf16>
    %6 = arith.extf %5 : vector<64x128xbf16> to vector<64x128xf32>
    %c0_7 = arith.constant 0 : index
    %c0_8 = arith.constant 0 : index
    %7 = vector.load %arg4[%c0_7, %c0_8] : memref<1x128xf32, #tpu.memory_space<vmem>>, vector<1x128xf32>
    %8 = vector.broadcast %7 : vector<1x128xf32> to vector<64x128xf32>
    %9 = arith.mulf %6, %8 : vector<64x128xf32>
    %c0_9 = arith.constant 0 : index
    %c0_10 = arith.constant 0 : index
    %10 = vector.load %arg5[%c0_9, %c0_10] : memref<1x128xf32, #tpu.memory_space<vmem>>, vector<1x128xf32>
    %11 = vector.broadcast %10 : vector<1x128xf32> to vector<64x128xf32>
    %12 = arith.addf %9, %11 : vector<64x128xf32>
    %13 = arith.addf %12, %3 : vector<64x128xf32>
    %cst_11 = arith.constant 0.000000e+00 : f32
    %14 = vector.broadcast %cst_11 : f32 to vector<64x128xf32>
    %15 = arith.maximumf %13, %14 : vector<64x128xf32>
    %c0_12 = arith.constant 0 : index
    %c0_13 = arith.constant 0 : index
    %c0_14 = arith.constant 0 : index
    %16 = vector.load %arg6[%c0_12, %c0_13, %c0_14] : memref<1x64x128xf32, #tpu.memory_space<vmem>>, vector<1x64x128xf32>
    %17 = vector.shape_cast %16 : vector<1x64x128xf32> to vector<64x128xf32>
    %18 = vector.shape_cast %15 : vector<64x128xf32> to vector<1x64x128xf32>
    tpu.vector_store %arg6[%c0_12, %c0_13, %c0_14], %18 {strides = array<i32>} : memref<1x64x128xf32, #tpu.memory_space<vmem>>, vector<1x64x128xf32>,
    return
  }
  func.func @transform_0(%arg0: i32) -> (i32, i32, i32) {
    %c0_i32 = arith.constant 0 : i32
    %c0_i32_0 = arith.constant 0 : i32
    %c0_i32_1 = arith.constant 0 : i32
    return %arg0, %c0_i32, %c0_i32_0 : i32, i32, i32
  }
  func.func @transform_1(%arg0: i32) -> (i32, i32, i32) {
    %c0_i32 = arith.constant 0 : i32
    %c0_i32_0 = arith.constant 0 : i32
    %c0_i32_1 = arith.constant 0 : i32
    return %arg0, %c0_i32, %c0_i32_0 : i32, i32, i32
  }
  func.func @transform_2(%arg0: i32) -> (i32, i32) {
    %c0_i32 = arith.constant 0 : i32
    %c0_i32_0 = arith.constant 0 : i32
    %c0_i32_1 = arith.constant 0 : i32
    return %c0_i32, %c0_i32_0 : i32, i32
  }
  func.func @transform_3(%arg0: i32) -> (i32, i32) {
    %c0_i32 = arith.constant 0 : i32
    %c0_i32_0 = arith.constant 0 : i32
    %c0_i32_1 = arith.constant 0 : i32
    return %c0_i32, %c0_i32_0 : i32, i32
  }
  func.func @transform_4(%arg0: i32) -> (i32, i32) {
    %c0_i32 = arith.constant 0 : i32
    %c0_i32_0 = arith.constant 0 : i32
    %c0_i32_1 = arith.constant 0 : i32
    return %c0_i32, %c0_i32_0 : i32, i32
  }
  func.func @transform_5(%arg0: i32) -> (i32, i32, i32) {
    %c0_i32 = arith.constant 0 : i32
    %c0_i32_0 = arith.constant 0 : i32
    %c0_i32_1 = arith.constant 0 : i32
    return %arg0, %c0_i32, %c0_i32_0 : i32, i32, i32
  }
}

</mosaic_0001>

<llo_original>
// kernel: encoder2d_block.4
$region0: #{encoder2d_block.4}
  #allocation0 [shape = 'u32[]', space=smem, size = 0x4, offset = 0x4, fixed_abs, tag = 'smem constant byte address 0x4 - core index']
  #allocation1 [shape = 'u32[144,128]{1,0:T(1,128)}', space=vmem, size = 0x12000, scoped, tag = 'internal scratch']
  %s0 = inlined_call_operand.vmem [shape: bf16[128,36], index: 0, kind: input, shape index: {}]
  %s1 = inlined_call_operand.vmem [shape: bf16[36,128], index: 1, kind: input, shape index: {}]
  %s2 = inlined_call_operand.vmem [shape: bf16[128,128], index: 2, kind: output, shape index: {0}]
  %s3 = inlined_call_operand.vmem [shape: f32[1,2,128], index: 3, kind: output, shape index: {1}]
  %4 = xla_tuple %s2, %s3
  %s5 = sld [smem:[#allocation0]]
  $region26: #{encoder2d_block.4} parent=0
    _
  %s7 = ssub.s32 1, %s5
  %s8 = scalar_select 0, %s7, %s5
  // Predicated region
  $region2: #{encoder2d_block.4} parent=0 // pred_check
    _
  $region3: #{encoder2d_block.4} parent=0 // pred_check_branch
    %10 = sbr.rel (0) target = $region5
  $region4: #{encoder2d_block.4} parent=0 // pred_region
    _
  $region5: #{encoder2d_block.4} parent=0 // pred_fallthru
    _
  // Predicated region
  $region6: #{encoder2d_block.4} parent=0 // pred_check
    _
  $region7: #{encoder2d_block.4} parent=0 // pred_check_branch
    %12 = sbr.rel (0) target = $region9
  $region8: #{encoder2d_block.4} parent=0 // pred_region
    _
  $region9: #{encoder2d_block.4} parent=0 // pred_fallthru
    _
  %v14 = vld [vmem:[%s0] sm:$0xf]
  %v15 = vld [vmem:[%s0 + $0x4] sm:$0xf]
  %v16 = vld [vmem:[%s0 + $0x8] sm:$0xf]
  %v17 = vld [vmem:[%s0 + $0xc] sm:$0xf]
  %v18 = vld [vmem:[%s0 + $0x10] sm:$0xf]
  %v19 = vld [vmem:[%s0 + $0x14] sm:$0xf]
  %v20 = vld [vmem:[%s0 + $0x18] sm:$0xf]
  %v21 = vld [vmem:[%s0 + $0x1c] sm:$0xf]
  %v22 = vld [vmem:[%s0 + $0x20] sm:$0xf]
  %v23 = vld [vmem:[%s0 + $0x24] sm:$0xf]
  %v24 = vld [vmem:[%s0 + $0x28] sm:$0xf]
  %v25 = vld [vmem:[%s0 + $0x2c] sm:$0xf]
  %v26 = vld [vmem:[%s0 + $0x30] sm:$0xf]
  %v27 = vld [vmem:[%s0 + $0x34] sm:$0xf]
  %v28 = vld [vmem:[%s0 + $0x38] sm:$0xf]
  %v29 = vld [vmem:[%s0 + $0x3c] sm:$0xf]
  %v30 = vld [vmem:[%s1] sm:$0xf]
  %v31 = vld [vmem:[%s1 + $0x4] sm:$0xf]
  %v32 = vld [vmem:[%s1 + $0x8] sm:$0xf]
  %v33 = vld [vmem:[%s1 + $0xc] sm:$0xf]
  %v34 = vld [vmem:[%s1 + $0x10] sm:$0x3]
  %v51 = vunpack.c.l.b16 %v14
  %v52 = vunpack.c.l.b16 %v15
  %v53 = vunpack.c.l.b16 %v16
  %v54 = vunpack.c.l.b16 %v17
  %v55 = vunpack.c.l.b16 %v18
  %v56 = vunpack.c.l.b16 %v19
  %v57 = vunpack.c.l.b16 %v20
  %v58 = vunpack.c.l.b16 %v21
  %v59 = vunpack.c.l.b16 %v22
  %v60 = vunpack.c.l.b16 %v23
  %v61 = vunpack.c.l.b16 %v24
  %v62 = vunpack.c.l.b16 %v25
  %v63 = vunpack.c.l.b16 %v26
  %v64 = vunpack.c.l.b16 %v27
  %v65 = vunpack.c.l.b16 %v28
  %v66 = vunpack.c.l.b16 %v29
  %v67 = vpack.c.b16 %v52, %v51
  %v68 = vpack.c.b16 %v54, %v53
  %v69 = vpack.c.b16 %v56, %v55
  %v70 = vpack.c.b16 %v58, %v57
  %v71 = vpack.c.b16 %v60, %v59
  %v72 = vpack.c.b16 %v62, %v61
  %v73 = vpack.c.b16 %v64, %v63
  %v74 = vpack.c.b16 %v66, %v65
  %v80 = vunpack.c.l.b16 %v30
  %v81 = vunpack.c.l.b16 %v31
  %v82 = vunpack.c.l.b16 %v32
  %v83 = vunpack.c.l.b16 %v33
  %v84 = vunpack.c.l.b16 %v34
  %v85 = vpack.c.b16 %v81, %v80
  %v86 = vpack.c.b16 %v83, %v82
  %v87 = vpack.c.b16 %v84, %v84
  %vm90 = vcmask 293888
  %v92 = vsel %vm90, %v67, 0
  %v95 = vsel %vm90, %v68, 0
  %v98 = vsel %vm90, %v69, 0
  %v101 = vsel %vm90, %v70, 0
  %v104 = vsel %vm90, %v71, 0
  %v107 = vsel %vm90, %v72, 0
  %v110 = vsel %vm90, %v73, 0
  %v113 = vsel %vm90, %v74, 0
  %vm115 = vcmask 1041408
  %v117 = vsel %vm115, %v87, 0
  %119 = vmatprep.subr.bf16.mxu0 0
  %120 = vmatpush1.bf16.msra.mxu0 %v85
  %121 = vmatprep.subr.bf16.mxu0 0
  %122 = vmatpush1.bf16.msra.mxu0 %v86
  %123 = vmatprep.subr.bf16.mxu0 0
  %124 = vmatpush1.bf16.msra.mxu0 %v117
  %125 = vmatprep.subr.bf16.mxu0 0
  %126 = vmatpush1.bf16.msra.mxu0 0
  %127 = vmatprep.subr.bf16.mxu0 0
  %128 = vmatpush1.bf16.msra.mxu0 0
  %129 = vmatprep.subr.bf16.mxu0 0
  %130 = vmatpush1.bf16.msra.mxu0 0
  %131 = vmatprep.subr.bf16.mxu0 0
  %132 = vmatpush1.bf16.msra.mxu0 0
  %133 = vmatprep.subr.bf16.mxu0 0
  %134 = vmatpush1.bf16.msra.mxu0 0
  %135 = vmatprep.subr.bf16.mxu0 0
  %136 = vmatpush1.bf16.msra.mxu0 0
  %137 = vmatprep.subr.bf16.mxu0 0
  %138 = vmatpush1.bf16.msra.mxu0 0
  %139 = vmatprep.subr.bf16.mxu0 0
  %140 = vmatpush1.bf16.msra.mxu0 0
  %141 = vmatprep.subr.bf16.mxu0 0
  %142 = vmatpush1.bf16.msra.mxu0 0
  %143 = vmatprep.subr.bf16.mxu0 0
  %144 = vmatpush1.bf16.msra.mxu0 0
  %145 = vmatprep.subr.bf16.mxu0 0
  %146 = vmatpush1.bf16.msra.mxu0 0
  %147 = vmatprep.subr.bf16.mxu0 0
  %148 = vmatpush1.bf16.msra.mxu0 0
  %149 = vmatprep.subr.bf16.mxu0 0
  %150 = vmatpush1.bf16.msra.mxu0 0
  %151 = vmatprep.mubr.bf16.mxu0 0
  %152 = vmatmul.mubr.bf16.gmra.mrb[0].mxu0 %v92
  %v153 = vpop.f32.mrb[0].mxu0
  %v154 = vadd.f32 0.0, %v153
  %v155 = vpop.f32.mrb[0].mxu0
  %v156 = vpop.f32.mrb[0].mxu0
  %v157 = vadd.f32 0.0, %v156
  %v158 = vpop.f32.mrb[0].mxu0
  %159 = vmatprep.mubr.bf16.mxu0 0
  %160 = vmatmul.mubr.bf16.gmra.mrb[0].mxu0 %v95
  %v161 = vpop.f32.mrb[0].mxu0
  %v162 = vadd.f32 0.0, %v161
  %v163 = vpop.f32.mrb[0].mxu0
  %v164 = vpop.f32.mrb[0].mxu0
  %v165 = vadd.f32 0.0, %v164
  %v166 = vpop.f32.mrb[0].mxu0
  %167 = vmatprep.mubr.bf16.mxu0 0
  %168 = vmatmul.mubr.bf16.gmra.mrb[0].mxu0 %v98
  %v169 = vpop.f32.mrb[0].mxu0
  %v170 = vadd.f32 0.0, %v169
  %v171 = vpop.f32.mrb[0].mxu0
  %v172 = vpop.f32.mrb[0].mxu0
  %v173 = vadd.f32 0.0, %v172
  %v174 = vpop.f32.mrb[0].mxu0
  %175 = vmatprep.mubr.bf16.mxu0 0
  %176 = vmatmul.mubr.bf16.gmra.mrb[0].mxu0 %v101
  %v177 = vpop.f32.mrb[0].mxu0
  %v178 = vadd.f32 0.0, %v177
  %v179 = vpop.f32.mrb[0].mxu0
  %v180 = vpop.f32.mrb[0].mxu0
  %v181 = vadd.f32 0.0, %v180
  %v182 = vpop.f32.mrb[0].mxu0
  %183 = vmatprep.mubr.bf16.mxu0 0
  %184 = vmatmul.mubr.bf16.gmra.mrb[0].mxu0 %v104
  %v185 = vpop.f32.mrb[0].mxu0
  %v186 = vadd.f32 0.0, %v185
  %v187 = vpop.f32.mrb[0].mxu0
  %v188 = vpop.f32.mrb[0].mxu0
  %v189 = vadd.f32 0.0, %v188
  %v190 = vpop.f32.mrb[0].mxu0
  %191 = vmatprep.mubr.bf16.mxu0 0
  %192 = vmatmul.mubr.bf16.gmra.mrb[0].mxu0 %v107
  %v193 = vpop.f32.mrb[0].mxu0
  %v194 = vadd.f32 0.0, %v193
  %v195 = vpop.f32.mrb[0].mxu0
  %v196 = vpop.f32.mrb[0].mxu0
  %v197 = vadd.f32 0.0, %v196
  %v198 = vpop.f32.mrb[0].mxu0
  %199 = vmatprep.mubr.bf16.mxu0 0
  %200 = vmatmul.mubr.bf16.gmra.mrb[0].mxu0 %v110
  %v201 = vpop.f32.mrb[0].mxu0
  %v202 = vadd.f32 0.0, %v201
  %v203 = vpop.f32.mrb[0].mxu0
  %v204 = vpop.f32.mrb[0].mxu0
  %v205 = vadd.f32 0.0, %v204
  %v206 = vpop.f32.mrb[0].mxu0
  %207 = vmatprep.mubr.bf16.mxu0 0
  %208 = vmatmul.mubr.bf16.gmra.mrb[0].mxu0 %v113
  %v209 = vpop.f32.mrb[0].mxu0
  %v210 = vadd.f32 0.0, %v209
  %v211 = vpop.f32.mrb[0].mxu0
  %v212 = vpop.f32.mrb[0].mxu0
  %v213 = vadd.f32 0.0, %v212
  %v214 = vpop.f32.mrb[0].mxu0
  %215 = vdwg.mxu0
  %v216 = vpack.c.bf16 %v157, %v154
  %v217 = vpack.c.bf16 %v165, %v162
  %v218 = vpack.c.bf16 %v173, %v170
  %v219 = vpack.c.bf16 %v181, %v178
  %v220 = vpack.c.bf16 %v189, %v186
  %v221 = vpack.c.bf16 %v197, %v194
  %v222 = vpack.c.bf16 %v205, %v202
  %v223 = vpack.c.bf16 %v213, %v210
  %v232 = vunpack.c.l.b16 %v216
  %v233 = vunpack.c.h.b16 %v216
  %v234 = vunpack.c.l.b16 %v217
  %v235 = vunpack.c.h.b16 %v217
  %v236 = vunpack.c.l.b16 %v218
  %v237 = vunpack.c.h.b16 %v218
  %v238 = vunpack.c.l.b16 %v219
  %v239 = vunpack.c.h.b16 %v219
  %v240 = vunpack.c.l.b16 %v220
  %v241 = vunpack.c.h.b16 %v220
  %v242 = vunpack.c.l.b16 %v221
  %v243 = vunpack.c.h.b16 %v221
  %v244 = vunpack.c.l.b16 %v222
  %v245 = vunpack.c.h.b16 %v222
  %v246 = vunpack.c.l.b16 %v223
  %v247 = vunpack.c.h.b16 %v223
  %v248 = vpack.c.b16 %v232, %v232
  %v249 = vpack.c.b16 %v233, %v233
  %v250 = vpack.c.b16 %v234, %v234
  %v251 = vpack.c.b16 %v235, %v235
  %v252 = vpack.c.b16 %v236, %v236
  %v253 = vpack.c.b16 %v237, %v237
  %v254 = vpack.c.b16 %v238, %v238
  %v255 = vpack.c.b16 %v239, %v239
  %v256 = vpack.c.b16 %v240, %v240
  %v257 = vpack.c.b16 %v241, %v241
  %v258 = vpack.c.b16 %v242, %v242
  %v259 = vpack.c.b16 %v243, %v243
  %v260 = vpack.c.b16 %v244, %v244
  %v261 = vpack.c.b16 %v245, %v245
  %v262 = vpack.c.b16 %v246, %v246
  %v263 = vpack.c.b16 %v247, %v247
  %280 = vst [vmem:[%s2] sm:$0xf] %v248
  %281 = vst [vmem:[%s2 + $0x4] sm:$0xf] %v249
  %282 = vst [vmem:[%s2 + $0x8] sm:$0xf] %v250
  %283 = vst [vmem:[%s2 + $0xc] sm:$0xf] %v251
  %284 = vst [vmem:[%s2 + $0x10] sm:$0xf] %v252
  %285 = vst [vmem:[%s2 + $0x14] sm:$0xf] %v253
  %286 = vst [vmem:[%s2 + $0x18] sm:$0xf] %v254
  %287 = vst [vmem:[%s2 + $0x1c] sm:$0xf] %v255
  %288 = vst [vmem:[%s2 + $0x20] sm:$0xf] %v256
  %289 = vst [vmem:[%s2 + $0x24] sm:$0xf] %v257
  %290 = vst [vmem:[%s2 + $0x28] sm:$0xf] %v258
  %291 = vst [vmem:[%s2 + $0x2c] sm:$0xf] %v259
  %292 = vst [vmem:[%s2 + $0x30] sm:$0xf] %v260
  %293 = vst [vmem:[%s2 + $0x34] sm:$0xf] %v261
  %294 = vst [vmem:[%s2 + $0x38] sm:$0xf] %v262
  %295 = vst [vmem:[%s2 + $0x3c] sm:$0xf] %v263
  %v296 = vadd.f32 %v154, %v157
  %v297 = vadd.f32 %v296, %v162
  %v298 = vadd.f32 %v297, %v165
  %v299 = vadd.f32 %v298, %v170
  %v300 = vadd.f32 %v299, %v173
  %v301 = vadd.f32 %v300, %v178
  %v302 = vadd.f32 %v301, %v181
  %v303 = vadd.f32 %v302, %v186
  %v304 = vadd.f32 %v303, %v189
  %v305 = vadd.f32 %v304, %v194
  %v306 = vadd.f32 %v305, %v197
  %v307 = vadd.f32 %v306, %v202
  %v308 = vadd.f32 %v307, %v205
  %v309 = vadd.f32 %v308, %v210
  %v310 = vadd.f32 %v309, %v213
  %v311 = vrot.slane %v310, 4
  %v312 = vadd.f32 %v310, %v311
  %v313 = vrot.slane %v312, 2
  %v314 = vadd.f32 %v312, %v313
  %v315 = vrot.slane %v314, 1
  %v316 = vadd.f32 %v314, %v315
  %317 = vst [vmem:[%s3] sm:$0x1] %v316
  %v318 = vmul.f32 %v154, %v154
  %v319 = vmul.f32 %v157, %v157
  %v320 = vmul.f32 %v162, %v162
  %v321 = vmul.f32 %v165, %v165
  %v322 = vmul.f32 %v170, %v170
  %v323 = vmul.f32 %v173, %v173
  %v324 = vmul.f32 %v178, %v178
  %v325 = vmul.f32 %v181, %v181
  %v326 = vmul.f32 %v186, %v186
  %v327 = vmul.f32 %v189, %v189
  %v328 = vmul.f32 %v194, %v194
  %v329 = vmul.f32 %v197, %v197
  %v330 = vmul.f32 %v202, %v202
  %v331 = vmul.f32 %v205, %v205
  %v332 = vmul.f32 %v210, %v210
  %v333 = vmul.f32 %v213, %v213
  %v334 = vadd.f32 %v318, %v319
  %v335 = vadd.f32 %v334, %v320
  %v336 = vadd.f32 %v335, %v321
  %v337 = vadd.f32 %v336, %v322
  %v338 = vadd.f32 %v337, %v323
  %v339 = vadd.f32 %v338, %v324
  %v340 = vadd.f32 %v339, %v325
  %v341 = vadd.f32 %v340, %v326
  %v342 = vadd.f32 %v341, %v327
  %v343 = vadd.f32 %v342, %v328
  %v344 = vadd.f32 %v343, %v329
  %v345 = vadd.f32 %v344, %v330
  %v346 = vadd.f32 %v345, %v331
  %v347 = vadd.f32 %v346, %v332
  %v348 = vadd.f32 %v347, %v333
  %v349 = vrot.slane %v348, 4
  %v350 = vadd.f32 %v348, %v349
  %v351 = vrot.slane %v350, 2
  %v352 = vadd.f32 %v350, %v351
  %v353 = vrot.slane %v352, 1
  %v354 = vadd.f32 %v352, %v353
  %355 = vst [vmem:[%s3 + $0x1] sm:$0x1] %v354
  // Predicated region
  $region10: #{encoder2d_block.4} parent=0 // pred_check
    _
  $region11: #{encoder2d_block.4} parent=0 // pred_check_branch
    %357 = sbr.rel (0) target = $region13
  $region12: #{encoder2d_block.4} parent=0 // pred_region
    _
  $region13: #{encoder2d_block.4} parent=0 // pred_fallthru
    _
  // Predicated region
  $region14: #{encoder2d_block.4} parent=0 // pred_check
    _
  $region15: #{encoder2d_block.4} parent=0 // pred_check_branch
    %359 = sbr.rel (0) target = $region17
  $region16: #{encoder2d_block.4} parent=0 // pred_region
    _
  $region17: #{encoder2d_block.4} parent=0 // pred_fallthru
    _
  // Predicated region
  $region18: #{encoder2d_block.4} parent=0 // pred_check
    _
  $region19: #{encoder2d_block.4} parent=0 // pred_check_branch
    %361 = sbr.rel (0) target = $region21
  $region20: #{encoder2d_block.4} parent=0 // pred_region
    _
  $region21: #{encoder2d_block.4} parent=0 // pred_fallthru
    _
  // Predicated region
  $region22: #{encoder2d_block.4} parent=0 // pred_check
    _
  $region23: #{encoder2d_block.4} parent=0 // pred_check_branch
    %363 = sbr.rel (0) target = $region25
  $region24: #{encoder2d_block.4} parent=0 // pred_region
    _
  $region25: #{encoder2d_block.4} parent=0 // pred_fallthru
    _

// kernel: encoder2d_block.5
$region0: #{encoder2d_block.5}
  #allocation0 [shape = 'u32[]', space=smem, size = 0x4, offset = 0x4, fixed_abs, tag = 'smem constant byte address 0x4 - core index']
  #allocation1 [shape = 'u32[144,128]{1,0:T(1,128)}', space=vmem, size = 0x12000, scoped, tag = 'internal scratch']
  %s0 = inlined_call_operand.vmem [shape: bf16[128,128], index: 0, kind: input, shape index: {}]
  %s1 = inlined_call_operand.vmem [shape: f32[1,128], index: 1, kind: input, shape index: {}]
  %s2 = inlined_call_operand.vmem [shape: f32[1,128], index: 2, kind: input, shape index: {}]
  %s3 = inlined_call_operand.vmem [shape: bf16[128,128], index: 3, kind: output, shape index: {}]
  %s4 = sld [smem:[#allocation0]]
  $region22: #{encoder2d_block.5} parent=0
    _
  %s6 = ssub.s32 1, %s4
  %s7 = scalar_select 0, %s6, %s4
  // Predicated region
  $region2: #{encoder2d_block.5} parent=0 // pred_check
    _
  $region3: #{encoder2d_block.5} parent=0 // pred_check_branch
    %9 = sbr.rel (0) target = $region5
  $region4: #{encoder2d_block.5} parent=0 // pred_region
    _
  $region5: #{encoder2d_block.5} parent=0 // pred_fallthru
    _
  // Predicated region
  $region6: #{encoder2d_block.5} parent=0 // pred_check
    _
  $region7: #{encoder2d_block.5} parent=0 // pred_check_branch
    %11 = sbr.rel (0) target = $region9
  $region8: #{encoder2d_block.5} parent=0 // pred_region
    _
  $region9: #{encoder2d_block.5} parent=0 // pred_fallthru
    _
  // Predicated region
  $region10: #{encoder2d_block.5} parent=0 // pred_check
    _
  $region11: #{encoder2d_block.5} parent=0 // pred_check_branch
    %13 = sbr.rel (0) target = $region13
  $region12: #{encoder2d_block.5} parent=0 // pred_region
    _
  $region13: #{encoder2d_block.5} parent=0 // pred_fallthru
    _
  %v14 = vld [vmem:[%s0] sm:$0xf]
  %v15 = vld [vmem:[%s0 + $0x4] sm:$0xf]
  %v16 = vld [vmem:[%s0 + $0x8] sm:$0xf]
  %v17 = vld [vmem:[%s0 + $0xc] sm:$0xf]
  %v18 = vld [vmem:[%s0 + $0x10] sm:$0xf]
  %v19 = vld [vmem:[%s0 + $0x14] sm:$0xf]
  %v20 = vld [vmem:[%s0 + $0x18] sm:$0xf]
  %v21 = vld [vmem:[%s0 + $0x1c] sm:$0xf]
  %v22 = vld [vmem:[%s0 + $0x20] sm:$0xf]
  %v23 = vld [vmem:[%s0 + $0x24] sm:$0xf]
  %v24 = vld [vmem:[%s0 + $0x28] sm:$0xf]
  %v25 = vld [vmem:[%s0 + $0x2c] sm:$0xf]
  %v26 = vld [vmem:[%s0 + $0x30] sm:$0xf]
  %v27 = vld [vmem:[%s0 + $0x34] sm:$0xf]
  %v28 = vld [vmem:[%s0 + $0x38] sm:$0xf]
  %v29 = vld [vmem:[%s0 + $0x3c] sm:$0xf]
  %v30 = vunpack.c.l.bf16 %v14
  %v31 = vunpack.c.l.bf16 %v15
  %v32 = vunpack.c.l.bf16 %v16
  %v33 = vunpack.c.l.bf16 %v17
  %v34 = vunpack.c.l.bf16 %v18
  %v35 = vunpack.c.l.bf16 %v19
  %v36 = vunpack.c.l.bf16 %v20
  %v37 = vunpack.c.l.bf16 %v21
  %v38 = vunpack.c.l.bf16 %v22
  %v39 = vunpack.c.l.bf16 %v23
  %v40 = vunpack.c.l.bf16 %v24
  %v41 = vunpack.c.l.bf16 %v25
  %v42 = vunpack.c.l.bf16 %v26
  %v43 = vunpack.c.l.bf16 %v27
  %v44 = vunpack.c.l.bf16 %v28
  %v45 = vunpack.c.l.bf16 %v29
  %v46 = vld [vmem:[%s1] sm:$0x1]
  %v48 = vlaneseq
  %v49 = vshrl.u32 %v48, 7
  %v50 = vsub.s32 0, %v49
  %v51 = vrot.slane %v46, %v50
  %v53 = vmul.f32 %v30, %v51
  %v54 = vmul.f32 %v31, %v51
  %v55 = vmul.f32 %v32, %v51
  %v56 = vmul.f32 %v33, %v51
  %v57 = vmul.f32 %v34, %v51
  %v58 = vmul.f32 %v35, %v51
  %v59 = vmul.f32 %v36, %v51
  %v60 = vmul.f32 %v37, %v51
  %v61 = vmul.f32 %v38, %v51
  %v62 = vmul.f32 %v39, %v51
  %v63 = vmul.f32 %v40, %v51
  %v64 = vmul.f32 %v41, %v51
  %v65 = vmul.f32 %v42, %v51
  %v66 = vmul.f32 %v43, %v51
  %v67 = vmul.f32 %v44, %v51
  %v68 = vmul.f32 %v45, %v51
  %v69 = vld [vmem:[%s2] sm:$0x1]
  %v71 = vlaneseq
  %v72 = vshrl.u32 %v71, 7
  %v73 = vsub.s32 0, %v72
  %v74 = vrot.slane %v69, %v73
  %v76 = vadd.f32 %v53, %v74
  %v77 = vadd.f32 %v54, %v74
  %v78 = vadd.f32 %v55, %v74
  %v79 = vadd.f32 %v56, %v74
  %v80 = vadd.f32 %v57, %v74
  %v81 = vadd.f32 %v58, %v74
  %v82 = vadd.f32 %v59, %v74
  %v83 = vadd.f32 %v60, %v74
  %v84 = vadd.f32 %v61, %v74
  %v85 = vadd.f32 %v62, %v74
  %v86 = vadd.f32 %v63, %v74
  %v87 = vadd.f32 %v64, %v74
  %v88 = vadd.f32 %v65, %v74
  %v89 = vadd.f32 %v66, %v74
  %v90 = vadd.f32 %v67, %v74
  %v91 = vadd.f32 %v68, %v74
  %v92 = vmax.f32 %v76, 0.0
  %v93 = vmax.f32 %v77, 0.0
  %v94 = vmax.f32 %v78, 0.0
  %v95 = vmax.f32 %v79, 0.0
  %v96 = vmax.f32 %v80, 0.0
  %v97 = vmax.f32 %v81, 0.0
  %v98 = vmax.f32 %v82, 0.0
  %v99 = vmax.f32 %v83, 0.0
  %v100 = vmax.f32 %v84, 0.0
  %v101 = vmax.f32 %v85, 0.0
  %v102 = vmax.f32 %v86, 0.0
  %v103 = vmax.f32 %v87, 0.0
  %v104 = vmax.f32 %v88, 0.0
  %v105 = vmax.f32 %v89, 0.0
  %v106 = vmax.f32 %v90, 0.0
  %v107 = vmax.f32 %v91, 0.0
  %v108 = vpack.c.bf16 %v93, %v92
  %v109 = vpack.c.bf16 %v95, %v94
  %v110 = vpack.c.bf16 %v97, %v96
  %v111 = vpack.c.bf16 %v99, %v98
  %v112 = vpack.c.bf16 %v101, %v100
  %v113 = vpack.c.bf16 %v103, %v102
  %v114 = vpack.c.bf16 %v105, %v104
  %v115 = vpack.c.bf16 %v107, %v106
  %v124 = vunpack.c.l.b16 %v108
  %v125 = vunpack.c.h.b16 %v108
  %v126 = vunpack.c.l.b16 %v109
  %v127 = vunpack.c.h.b16 %v109
  %v128 = vunpack.c.l.b16 %v110
  %v129 = vunpack.c.h.b16 %v110
  %v130 = vunpack.c.l.b16 %v111
  %v131 = vunpack.c.h.b16 %v111
  %v132 = vunpack.c.l.b16 %v112
  %v133 = vunpack.c.h.b16 %v112
  %v134 = vunpack.c.l.b16 %v113
  %v135 = vunpack.c.h.b16 %v113
  %v136 = vunpack.c.l.b16 %v114
  %v137 = vunpack.c.h.b16 %v114
  %v138 = vunpack.c.l.b16 %v115
  %v139 = vunpack.c.h.b16 %v115
  %v140 = vpack.c.b16 %v124, %v124
  %v141 = vpack.c.b16 %v125, %v125
  %v142 = vpack.c.b16 %v126, %v126
  %v143 = vpack.c.b16 %v127, %v127
  %v144 = vpack.c.b16 %v128, %v128
  %v145 = vpack.c.b16 %v129, %v129
  %v146 = vpack.c.b16 %v130, %v130
  %v147 = vpack.c.b16 %v131, %v131
  %v148 = vpack.c.b16 %v132, %v132
  %v149 = vpack.c.b16 %v133, %v133
  %v150 = vpack.c.b16 %v134, %v134
  %v151 = vpack.c.b16 %v135, %v135
  %v152 = vpack.c.b16 %v136, %v136
  %v153 = vpack.c.b16 %v137, %v137
  %v154 = vpack.c.b16 %v138, %v138
  %v155 = vpack.c.b16 %v139, %v139
  %172 = vst [vmem:[%s3] sm:$0xf] %v140
  %173 = vst [vmem:[%s3 + $0x4] sm:$0xf] %v141
  %174 = vst [vmem:[%s3 + $0x8] sm:$0xf] %v142
  %175 = vst [vmem:[%s3 + $0xc] sm:$0xf] %v143
  %176 = vst [vmem:[%s3 + $0x10] sm:$0xf] %v144
  %177 = vst [vmem:[%s3 + $0x14] sm:$0xf] %v145
  %178 = vst [vmem:[%s3 + $0x18] sm:$0xf] %v146
  %179 = vst [vmem:[%s3 + $0x1c] sm:$0xf] %v147
  %180 = vst [vmem:[%s3 + $0x20] sm:$0xf] %v148
  %181 = vst [vmem:[%s3 + $0x24] sm:$0xf] %v149
  %182 = vst [vmem:[%s3 + $0x28] sm:$0xf] %v150
  %183 = vst [vmem:[%s3 + $0x2c] sm:$0xf] %v151
  %184 = vst [vmem:[%s3 + $0x30] sm:$0xf] %v152
  %185 = vst [vmem:[%s3 + $0x34] sm:$0xf] %v153
  %186 = vst [vmem:[%s3 + $0x38] sm:$0xf] %v154
  %187 = vst [vmem:[%s3 + $0x3c] sm:$0xf] %v155
  // Predicated region
  $region14: #{encoder2d_block.5} parent=0 // pred_check
    _
  $region15: #{encoder2d_block.5} parent=0 // pred_check_branch
    %189 = sbr.rel (0) target = $region17
  $region16: #{encoder2d_block.5} parent=0 // pred_region
    _
  $region17: #{encoder2d_block.5} parent=0 // pred_fallthru
    _
  // Predicated region
  $region18: #{encoder2d_block.5} parent=0 // pred_check
    _
  $region19: #{encoder2d_block.5} parent=0 // pred_check_branch
    %191 = sbr.rel (0) target = $region21
  $region20: #{encoder2d_block.5} parent=0 // pred_region
    _
  $region21: #{encoder2d_block.5} parent=0 // pred_fallthru
    _

// kernel: encoder2d_block.7
$region0: #{encoder2d_block.7}
  #allocation0 [shape = 'u32[]', space=smem, size = 0x4, offset = 0x4, fixed_abs, tag = 'smem constant byte address 0x4 - core index']
  #allocation1 [shape = 'u32[144,128]{1,0:T(1,128)}', space=vmem, size = 0x12000, scoped, tag = 'internal scratch']
  %s0 = inlined_call_operand.vmem [shape: bf16[2,64,128], index: 0, kind: input, shape index: {}]
  %s1 = inlined_call_operand.vmem [shape: bf16[2,64,4], index: 1, kind: input, shape index: {}]
  %s2 = inlined_call_operand.vmem [shape: bf16[4,128], index: 2, kind: input, shape index: {}]
  %s3 = inlined_call_operand.vmem [shape: f32[1,128], index: 3, kind: input, shape index: {}]
  %s4 = inlined_call_operand.vmem [shape: f32[1,128], index: 4, kind: input, shape index: {}]
  %s5 = inlined_call_operand.vmem [shape: f32[2,64,128], index: 5, kind: output, shape index: {}]
  %s6 = sld [smem:[#allocation0]]
  $region53: #{encoder2d_block.7} parent=0
    _
  %s8 = ssub.s32 1, %s6
  %s9 = scalar_select 0, %s8, %s6
  loop: start=0, step=1, limit=4
  $region2: #{encoder2d_block.7} parent=0 // loop_pre_header
    _
  $region3: #{encoder2d_block.7} parent=0 // loop_header
    %s11 = sphi 0, %s15
    %p12 = scmp.ge.s32.totalorder %s11, 4
    %s21 = sphi 0, %s23
    %s24 = sphi 0, %s21
    %s25 = sphi 0, %s24
    %s41 = sphi 0, %s25
    %s47 = sphi 0, %s49
    %s50 = sphi 0, %s47
    %s51 = sphi 0, %s50
    %s67 = sphi 0, %s51
    %s71 = sphi 0, %s71
    %s73 = sphi 0, %s71
    %s74 = sphi 0, %s73
    %s88 = sphi 0, %s74
    %s92 = sphi 0, %s92
    %s94 = sphi 0, %s92
    %s95 = sphi 0, %s94
    %s109 = sphi 0, %s95
    %s113 = sphi 0, %s113
    %s115 = sphi 0, %s113
    %s116 = sphi 0, %s115
    %s130 = sphi 0, %s116
    %s136 = sphi 0, %s138
    %s139 = sphi 0, %s136
    %s140 = sphi 0, %s139
    %s156 = sphi 0, %s140
  $region4: #{encoder2d_block.7} parent=0 // loop_header_branch
    %14 = sbr.rel (%p12) target = $region8
  $region5: #{encoder2d_block.7} parent=0 // loop_body
    %s16 = ssub.s32 %s11, 1
    %s17 = ssub.s32 %s11, 2
    %s18 = sadd.s32 %s11, 1
    %s19 = ssub.s32 %s11, %s18
    %p20 = scmp.eq.s32.totalorder %s19, 0
    %s22 = sadd.s32 %s21, 1
    %s23 = scalar_select %p20, %s21, %s22
    %p26 = pneg %p20
    %p27 = scmp.eq.s32.totalorder %s11, 1
    %p28 = por %p26, %p27
    %p29 = scmp.ne.s32.totalorder %s21, %s24
    %p30 = scmp.eq.s32.totalorder %s11, 0
    %p31 = por %p29, %p30
    %p32 = scmp.ne.s32.totalorder %s21, %s24
    %p33 = scmp.eq.s32.totalorder %s16, 1
    %p34 = por %p32, %p33
    %p35 = scmp.ne.s32.totalorder %s24, %s25
    %p36 = scmp.eq.s32.totalorder %s16, 0
    %p37 = por %p35, %p36
    %p38 = scmp.ne.s32.totalorder %s24, %s25
    %p39 = scmp.eq.s32.totalorder %s17, 1
    %p40 = por %p38, %p39
    %p42 = scmp.ne.s32.totalorder %s25, %s41
    %p43 = scmp.eq.s32.totalorder %s17, 0
    %p44 = por %p42, %p43
    %s45 = ssub.s32 %s11, %s18
    %p46 = scmp.eq.s32.totalorder %s45, 0
    %s48 = sadd.s32 %s47, 1
    %s49 = scalar_select %p46, %s47, %s48
    %p52 = pneg %p46
    %p53 = scmp.eq.s32.totalorder %s11, 1
    %p54 = por %p52, %p53
    %p55 = scmp.ne.s32.totalorder %s47, %s50
    %p56 = scmp.eq.s32.totalorder %s11, 0
    %p57 = por %p55, %p56
    %p58 = scmp.ne.s32.totalorder %s47, %s50
    %p59 = scmp.eq.s32.totalorder %s16, 1
    %p60 = por %p58, %p59
    %p61 = scmp.ne.s32.totalorder %s50, %s51
    %p62 = scmp.eq.s32.totalorder %s16, 0
    %p63 = por %p61, %p62
    %p64 = scmp.ne.s32.totalorder %s50, %s51
    %p65 = scmp.eq.s32.totalorder %s17, 1
    %p66 = por %p64, %p65
    %p68 = scmp.ne.s32.totalorder %s51, %s67
    %p69 = scmp.eq.s32.totalorder %s17, 0
    %p70 = por %p68, %p69
    %s72 = sadd.s32 %s71, 1
    %p75 = scmp.eq.s32.totalorder %s11, 1
    %p76 = scmp.ne.s32.totalorder %s71, %s73
    %p77 = scmp.eq.s32.totalorder %s11, 0
    %p78 = por %p76, %p77
    %p79 = scmp.ne.s32.totalorder %s71, %s73
    %p80 = scmp.eq.s32.totalorder %s16, 1
    %p81 = por %p79, %p80
    %p82 = scmp.ne.s32.totalorder %s73, %s74
    %p83 = scmp.eq.s32.totalorder %s16, 0
    %p84 = por %p82, %p83
    %p85 = scmp.ne.s32.totalorder %s73, %s74
    %p86 = scmp.eq.s32.totalorder %s17, 1
    %p87 = por %p85, %p86
    %p89 = scmp.ne.s32.totalorder %s74, %s88
    %p90 = scmp.eq.s32.totalorder %s17, 0
    %p91 = por %p89, %p90
    %s93 = sadd.s32 %s92, 1
    %p96 = scmp.eq.s32.totalorder %s11, 1
    %p97 = scmp.ne.s32.totalorder %s92, %s94
    %p98 = scmp.eq.s32.totalorder %s11, 0
    %p99 = por %p97, %p98
    %p100 = scmp.ne.s32.totalorder %s92, %s94
    %p101 = scmp.eq.s32.totalorder %s16, 1
    %p102 = por %p100, %p101
    %p103 = scmp.ne.s32.totalorder %s94, %s95
    %p104 = scmp.eq.s32.totalorder %s16, 0
    %p105 = por %p103, %p104
    %p106 = scmp.ne.s32.totalorder %s94, %s95
    %p107 = scmp.eq.s32.totalorder %s17, 1
    %p108 = por %p106, %p107
    %p110 = scmp.ne.s32.totalorder %s95, %s109
    %p111 = scmp.eq.s32.totalorder %s17, 0
    %p112 = por %p110, %p111
    %s114 = sadd.s32 %s113, 1
    %p117 = scmp.eq.s32.totalorder %s11, 1
    %p118 = scmp.ne.s32.totalorder %s113, %s115
    %p119 = scmp.eq.s32.totalorder %s11, 0
    %p120 = por %p118, %p119
    %p121 = scmp.ne.s32.totalorder %s113, %s115
    %p122 = scmp.eq.s32.totalorder %s16, 1
    %p123 = por %p121, %p122
    %p124 = scmp.ne.s32.totalorder %s115, %s116
    %p125 = scmp.eq.s32.totalorder %s16, 0
    %p126 = por %p124, %p125
    %p127 = scmp.ne.s32.totalorder %s115, %s116
    %p128 = scmp.eq.s32.totalorder %s17, 1
    %p129 = por %p127, %p128
    %p131 = scmp.ne.s32.totalorder %s116, %s130
    %p132 = scmp.eq.s32.totalorder %s17, 0
    %p133 = por %p131, %p132
    %s134 = ssub.s32 %s11, %s18
    %p135 = scmp.eq.s32.totalorder %s134, 0
    %s137 = sadd.s32 %s136, 1
    %s138 = scalar_select %p135, %s136, %s137
    %p141 = pneg %p135
    %p142 = scmp.eq.s32.totalorder %s11, 1
    %p143 = por %p141, %p142
    %p144 = scmp.ne.s32.totalorder %s136, %s139
    %p145 = scmp.eq.s32.totalorder %s11, 0
    %p146 = por %p144, %p145
    %p147 = scmp.ne.s32.totalorder %s136, %s139
    %p148 = scmp.eq.s32.totalorder %s16, 1
    %p149 = por %p147, %p148
    %p150 = scmp.ne.s32.totalorder %s139, %s140
    %p151 = scmp.eq.s32.totalorder %s16, 0
    %p152 = por %p150, %p151
    %p153 = scmp.ne.s32.totalorder %s139, %s140
    %p154 = scmp.eq.s32.totalorder %s17, 1
    %p155 = por %p153, %p154
    %p157 = scmp.ne.s32.totalorder %s140, %s156
    %p158 = scmp.eq.s32.totalorder %s17, 0
    %p159 = por %p157, %p158
    %p160 = scmp.le.s32.totalorder 1, %s11
    %p161 = scmp.lt.s32.totalorder %s11, 3
    %p162 = pnand %p160, %p161
    %p163 = pneg %p162
    // Predicated region
    $region9: #{encoder2d_block.7} parent=5 // pred_check
      _
    $region10: #{encoder2d_block.7} parent=5 // pred_check_branch
      %165 = sbr.rel (%p162) target = $region12
    $region11: #{encoder2d_block.7} parent=5 // pred_region
      %s166 = ssub.s32 %s11, 1
      // Predicated region
      $region13: #{encoder2d_block.7} parent=11 // pred_check
        %p167 = pneg %p84
      $region14: #{encoder2d_block.7} parent=11 // pred_check_branch
        %169 = sbr.rel (%p167) target = $region16
      $region15: #{encoder2d_block.7} parent=11 // pred_region
        _
      $region16: #{encoder2d_block.7} parent=11 // pred_fallthru
        _
      // Predicated region
      $region17: #{encoder2d_block.7} parent=11 // pred_check
        %p170 = pneg %p105
      $region18: #{encoder2d_block.7} parent=11 // pred_check_branch
        %172 = sbr.rel (%p170) target = $region20
      $region19: #{encoder2d_block.7} parent=11 // pred_region
        _
      $region20: #{encoder2d_block.7} parent=11 // pred_fallthru
        _
      // Predicated region
      $region21: #{encoder2d_block.7} parent=11 // pred_check
        %p173 = pneg %p126
      $region22: #{encoder2d_block.7} parent=11 // pred_check_branch
        %175 = sbr.rel (%p173) target = $region24
      $region23: #{encoder2d_block.7} parent=11 // pred_region
        _
      $region24: #{encoder2d_block.7} parent=11 // pred_fallthru
        _
    $region12: #{encoder2d_block.7} parent=5 // pred_fallthru
      _
    %p176 = scmp.lt.s32.totalorder %s11, 2
    // Predicated region
    $region25: #{encoder2d_block.7} parent=5 // pred_check
      %p177 = pneg %p176
    $region26: #{encoder2d_block.7} parent=5 // pred_check_branch
      %179 = sbr.rel (%p177) target = $region28
    $region27: #{encoder2d_block.7} parent=5 // pred_region
      // Predicated region
      $region29: #{encoder2d_block.7} parent=27 // pred_check
        %p180 = pneg %p31
      $region30: #{encoder2d_block.7} parent=27 // pred_check_branch
        %182 = sbr.rel (%p180) target = $region32
      $region31: #{encoder2d_block.7} parent=27 // pred_region
        %p183 = scmp.lt.s32.totalorder %s11, 1
        %s184 = scalar_select %p183, %s11, 1
        %s185 = smul.addr %s184, 8
        %s186 = smul.addr %s185, 4
        %s187 = scalar_lea.vmem %s0, %s186
      $region32: #{encoder2d_block.7} parent=27 // pred_fallthru
        _
      // Predicated region
      $region33: #{encoder2d_block.7} parent=27 // pred_check
        %p188 = pneg %p57
      $region34: #{encoder2d_block.7} parent=27 // pred_check_branch
        %190 = sbr.rel (%p188) target = $region36
      $region35: #{encoder2d_block.7} parent=27 // pred_region
        %p191 = scmp.lt.s32.totalorder %s11, 1
        %s192 = scalar_select %p191, %s11, 1
        %s193 = smul.addr %s192, 8
        %s194 = smul.addr %s193, 4
        %s195 = scalar_lea.vmem %s1, %s194
      $region36: #{encoder2d_block.7} parent=27 // pred_fallthru
        _
    $region28: #{encoder2d_block.7} parent=5 // pred_fallthru
      _
    %p196 = scmp.le.s32.totalorder 1, %s11
    %p197 = scmp.lt.s32.totalorder %s11, 3
    %p198 = pnand %p196, %p197
    %p199 = pneg %p198
    // Predicated region
    $region37: #{encoder2d_block.7} parent=5 // pred_check
      _
    $region38: #{encoder2d_block.7} parent=5 // pred_check_branch
      %201 = sbr.rel (%p198) target = $region40
    $region39: #{encoder2d_block.7} parent=5 // pred_region
      %s202 = ssub.s32 %s11, 1
      %p203 = scmp.lt.s32.totalorder %s16, 1
      %s204 = scalar_select %p203, %s16, 1
      %s205 = smul.addr %s204, 8
      %s206 = smul.addr %s205, 4
      %s207 = scalar_lea.vmem %s0, %s206
      %p208 = pneg %p37
      %p209 = pneg %p34
      %p210 = scmp.lt.s32.totalorder %s16, 1
      %s211 = scalar_select %p210, %s16, 1
      %s212 = smul.addr %s211, 8
      %s213 = smul.addr %s212, 4
      %s214 = scalar_lea.vmem %s1, %s213
      %p215 = pneg %p63
      %p216 = pneg %p60
      %p217 = pneg %p84
      %p218 = pneg %p81
      %p219 = pneg %p105
      %p220 = pneg %p102
      %p221 = pneg %p126
      %p222 = pneg %p123
      %p223 = pneg %p152
      %p224 = pneg %p149
      %p225 = scmp.lt.s32.totalorder %s16, 1
      %s226 = scalar_select %p225, %s16, 1
      %s227 = smul.addr %s226, 8
      %s228 = smul.addr %s227, 8
      %s229 = scalar_lea.vmem %s5, %s228
      %p230 = scmp.lt.s32.totalorder %s16, 1
      %s231 = scalar_select %p230, %s16, 1
      %s232 = smul.addr %s231, 8
      %s233 = smul.addr %s232, 4
      %s234 = scalar_lea.vmem %s0, %s233
      %p235 = scmp.lt.s32.totalorder %s16, 1
      %s236 = scalar_select %p235, %s16, 1
      %s237 = smul.addr %s236, 8
      %s238 = smul.addr %s237, 4
      %s239 = scalar_lea.vmem %s1, %s238
      %p240 = scmp.lt.s32.totalorder %s16, 1
      %s241 = scalar_select %p240, %s16, 1
      %s242 = smul.addr %s241, 8
      %s243 = smul.addr %s242, 8
      %s244 = scalar_lea.vmem %s5, %s243
      %v246 = vld [vmem:[%s239] sm:$0xf]
      %v247 = vld [vmem:[%s239 + $0x4] sm:$0xf]
      %v248 = vld [vmem:[%s239 + $0x8] sm:$0xf]
      %v249 = vld [vmem:[%s239 + $0xc] sm:$0xf]
      %v250 = vld [vmem:[%s239 + $0x10] sm:$0xf]
      %v251 = vld [vmem:[%s239 + $0x14] sm:$0xf]
      %v252 = vld [vmem:[%s239 + $0x18] sm:$0xf]
      %v253 = vld [vmem:[%s239 + $0x1c] sm:$0xf]
      %v254 = vld [vmem:[%s2] sm:$0x3]
      %v263 = vunpack.c.l.b16 %v246
      %v264 = vunpack.c.l.b16 %v247
      %v265 = vunpack.c.l.b16 %v248
      %v266 = vunpack.c.l.b16 %v249
      %v267 = vunpack.c.l.b16 %v250
      %v268 = vunpack.c.l.b16 %v251
      %v269 = vunpack.c.l.b16 %v252
      %v270 = vunpack.c.l.b16 %v253
      %v271 = vpack.c.b16 %v264, %v263
      %v272 = vpack.c.b16 %v266, %v265
      %v273 = vpack.c.b16 %v268, %v267
      %v274 = vpack.c.b16 %v270, %v269
      %vm275 = vcmask 31744
      %v277 = vsel %vm275, %v271, 0
      %v280 = vsel %vm275, %v272, 0
      %v283 = vsel %vm275, %v273, 0
      %v286 = vsel %vm275, %v274, 0
      %vm288 = vcmask 1041408
      %v290 = vsel %vm288, %v254, 0
      %292 = vmatprep.subr.bf16.mxu0 0
      %293 = vmatpush1.bf16.msra.mxu0 %v290
      %294 = vmatprep.subr.bf16.mxu0 0
      %295 = vmatpush1.bf16.msra.mxu0 0
      %296 = vmatprep.subr.bf16.mxu0 0
      %297 = vmatpush1.bf16.msra.mxu0 0
      %298 = vmatprep.subr.bf16.mxu0 0
      %299 = vmatpush1.bf16.msra.mxu0 0
      %300 = vmatprep.subr.bf16.mxu0 0
      %301 = vmatpush1.bf16.msra.mxu0 0
      %302 = vmatprep.subr.bf16.mxu0 0
      %303 = vmatpush1.bf16.msra.mxu0 0
      %304 = vmatprep.subr.bf16.mxu0 0
      %305 = vmatpush1.bf16.msra.mxu0 0
      %306 = vmatprep.subr.bf16.mxu0 0
      %307 = vmatpush1.bf16.msra.mxu0 0
      %308 = vmatprep.subr.bf16.mxu0 0
      %309 = vmatpush1.bf16.msra.mxu0 0
      %310 = vmatprep.subr.bf16.mxu0 0
      %311 = vmatpush1.bf16.msra.mxu0 0
      %312 = vmatprep.subr.bf16.mxu0 0
      %313 = vmatpush1.bf16.msra.mxu0 0
      %314 = vmatprep.subr.bf16.mxu0 0
      %315 = vmatpush1.bf16.msra.mxu0 0
      %316 = vmatprep.subr.bf16.mxu0 0
      %317 = vmatpush1.bf16.msra.mxu0 0
      %318 = vmatprep.subr.bf16.mxu0 0
      %319 = vmatpush1.bf16.msra.mxu0 0
      %320 = vmatprep.subr.bf16.mxu0 0
      %321 = vmatpush1.bf16.msra.mxu0 0
      %322 = vmatprep.subr.bf16.mxu0 0
      %323 = vmatpush1.bf16.msra.mxu0 0
      %324 = vmatprep.mubr.bf16.mxu0 0
      %325 = vmatmul.mubr.bf16.gmra.mrb[0].mxu0 %v277
      %v326 = vpop.f32.mrb[0].mxu0
      %v327 = vadd.f32 0.0, %v326
      %v328 = vpop.f32.mrb[0].mxu0
      %v329 = vpop.f32.mrb[0].mxu0
      %v330 = vadd.f32 0.0, %v329
      %v331 = vpop.f32.mrb[0].mxu0
      %332 = vmatprep.mubr.bf16.mxu0 0
      %333 = vmatmul.mubr.bf16.gmra.mrb[0].mxu0 %v280
      %v334 = vpop.f32.mrb[0].mxu0
      %v335 = vadd.f32 0.0, %v334
      %v336 = vpop.f32.mrb[0].mxu0
      %v337 = vpop.f32.mrb[0].mxu0
      %v338 = vadd.f32 0.0, %v337
      %v339 = vpop.f32.mrb[0].mxu0
      %340 = vmatprep.mubr.bf16.mxu0 0
      %341 = vmatmul.mubr.bf16.gmra.mrb[0].mxu0 %v283
      %v342 = vpop.f32.mrb[0].mxu0
      %v343 = vadd.f32 0.0, %v342
      %v344 = vpop.f32.mrb[0].mxu0
      %v345 = vpop.f32.mrb[0].mxu0
      %v346 = vadd.f32 0.0, %v345
      %v347 = vpop.f32.mrb[0].mxu0
      %348 = vmatprep.mubr.bf16.mxu0 0
      %349 = vmatmul.mubr.bf16.gmra.mrb[0].mxu0 %v286
      %v350 = vpop.f32.mrb[0].mxu0
      %v351 = vadd.f32 0.0, %v350
      %v352 = vpop.f32.mrb[0].mxu0
      %v353 = vpop.f32.mrb[0].mxu0
      %v354 = vadd.f32 0.0, %v353
      %v355 = vpop.f32.mrb[0].mxu0
      %356 = vdwg.mxu0
      %v357 = vld [vmem:[%s234] sm:$0xf]
      %v358 = vld [vmem:[%s234 + $0x4] sm:$0xf]
      %v359 = vld [vmem:[%s234 + $0x8] sm:$0xf]
      %v360 = vld [vmem:[%s234 + $0xc] sm:$0xf]
      %v361 = vld [vmem:[%s234 + $0x10] sm:$0xf]
      %v362 = vld [vmem:[%s234 + $0x14] sm:$0xf]
      %v363 = vld [vmem:[%s234 + $0x18] sm:$0xf]
      %v364 = vld [vmem:[%s234 + $0x1c] sm:$0xf]
      %v365 = vunpack.c.l.bf16 %v357
      %v366 = vunpack.c.l.bf16 %v358
      %v367 = vunpack.c.l.bf16 %v359
      %v368 = vunpack.c.l.bf16 %v360
      %v369 = vunpack.c.l.bf16 %v361
      %v370 = vunpack.c.l.bf16 %v362
      %v371 = vunpack.c.l.bf16 %v363
      %v372 = vunpack.c.l.bf16 %v364
      %v373 = vld [vmem:[%s3] sm:$0x1]
      %v375 = vlaneseq
      %v376 = vshrl.u32 %v375, 7
      %v377 = vsub.s32 0, %v376
      %v378 = vrot.slane %v373, %v377
      %v380 = vmul.f32 %v365, %v378
      %v381 = vmul.f32 %v366, %v378
      %v382 = vmul.f32 %v367, %v378
      %v383 = vmul.f32 %v368, %v378
      %v384 = vmul.f32 %v369, %v378
      %v385 = vmul.f32 %v370, %v378
      %v386 = vmul.f32 %v371, %v378
      %v387 = vmul.f32 %v372, %v378
      %v388 = vld [vmem:[%s4] sm:$0x1]
      %v390 = vlaneseq
      %v391 = vshrl.u32 %v390, 7
      %v392 = vsub.s32 0, %v391
      %v393 = vrot.slane %v388, %v392
      %v395 = vadd.f32 %v380, %v393
      %v396 = vadd.f32 %v381, %v393
      %v397 = vadd.f32 %v382, %v393
      %v398 = vadd.f32 %v383, %v393
      %v399 = vadd.f32 %v384, %v393
      %v400 = vadd.f32 %v385, %v393
      %v401 = vadd.f32 %v386, %v393
      %v402 = vadd.f32 %v387, %v393
      %v403 = vadd.f32 %v395, %v327
      %v404 = vadd.f32 %v396, %v330
      %v405 = vadd.f32 %v397, %v335
      %v406 = vadd.f32 %v398, %v338
      %v407 = vadd.f32 %v399, %v343
      %v408 = vadd.f32 %v400, %v346
      %v409 = vadd.f32 %v401, %v351
      %v410 = vadd.f32 %v402, %v354
      %v411 = vmax.f32 %v403, 0.0
      %v412 = vmax.f32 %v404, 0.0
      %v413 = vmax.f32 %v405, 0.0
      %v414 = vmax.f32 %v406, 0.0
      %v415 = vmax.f32 %v407, 0.0
      %v416 = vmax.f32 %v408, 0.0
      %v417 = vmax.f32 %v409, 0.0
      %v418 = vmax.f32 %v410, 0.0
      %419 = vst [vmem:[%s244] sm:$0xff] %v411
      %420 = vst [vmem:[%s244 + $0x8] sm:$0xff] %v412
      %421 = vst [vmem:[%s244 + $0x10] sm:$0xff] %v413
      %422 = vst [vmem:[%s244 + $0x18] sm:$0xff] %v414
      %423 = vst [vmem:[%s244 + $0x20] sm:$0xff] %v415
      %424 = vst [vmem:[%s244 + $0x28] sm:$0xff] %v416
      %425 = vst [vmem:[%s244 + $0x30] sm:$0xff] %v417
      %426 = vst [vmem:[%s244 + $0x38] sm:$0xff] %v418
      %p427 = scmp.lt.s32.totalorder %s16, 1
      %s428 = scalar_select %p427, %s16, 1
      %s429 = smul.addr %s428, 8
      %s430 = smul.addr %s429, 8
      %s431 = scalar_lea.vmem %s5, %s430
      // Predicated region
      $region41: #{encoder2d_block.7} parent=39 // pred_check
        %p432 = pneg %p149
      $region42: #{encoder2d_block.7} parent=39 // pred_check_branch
        %434 = sbr.rel (%p432) target = $region44
      $region43: #{encoder2d_block.7} parent=39 // pred_region
        _
      $region44: #{encoder2d_block.7} parent=39 // pred_fallthru
        _
    $region40: #{encoder2d_block.7} parent=5 // pred_fallthru
      _
    %p435 = scmp.le.s32.totalorder 2, %s11
    // Predicated region
    $region45: #{encoder2d_block.7} parent=5 // pred_check
      %p436 = pneg %p435
    $region46: #{encoder2d_block.7} parent=5 // pred_check_branch
      %438 = sbr.rel (%p436) target = $region48
    $region47: #{encoder2d_block.7} parent=5 // pred_region
      %s439 = ssub.s32 %s11, 2
      // Predicated region
      $region49: #{encoder2d_block.7} parent=47 // pred_check
        %p440 = pneg %p155
      $region50: #{encoder2d_block.7} parent=47 // pred_check_branch
        %442 = sbr.rel (%p440) target = $region52
      $region51: #{encoder2d_block.7} parent=47 // pred_region
        %p443 = scmp.lt.s32.totalorder %s17, 1
        %s444 = scalar_select %p443, %s17, 1
        %s445 = smul.addr %s444, 8
        %s446 = smul.addr %s445, 8
        %s447 = scalar_lea.vmem %s5, %s446
      $region52: #{encoder2d_block.7} parent=47 // pred_fallthru
        _
    $region48: #{encoder2d_block.7} parent=5 // pred_fallthru
      _
  $region6: #{encoder2d_block.7} parent=0 // loop_footer
    %s15 = sadd.s32 1, %s11
  $region7: #{encoder2d_block.7} parent=0 // loop_footer_branch
    %10 = sbr.rel target = $region3
  $region8: #{encoder2d_block.7} parent=0 // loop_exit
    _

// kernel: encoder2d_block.6
$region0: #{encoder2d_block.6}
  #allocation0 [shape = 'u32[]', space=smem, size = 0x4, offset = 0x4, fixed_abs, tag = 'smem constant byte address 0x4 - core index']
  #allocation1 [shape = 'u32[144,128]{1,0:T(1,128)}', space=vmem, size = 0x12000, scoped, tag = 'internal scratch']
  %s0 = inlined_call_operand.vmem [shape: bf16[2,10,10,128], index: 0, kind: input, shape index: {}]
  %s1 = inlined_call_operand.vmem [shape: bf16[9,128,128], index: 1, kind: input, shape index: {}]
  %s2 = inlined_call_operand.vmem [shape: bf16[2,64,128], index: 2, kind: output, shape index: {0}]
  %s3 = inlined_call_operand.vmem [shape: f32[2,2,128], index: 3, kind: output, shape index: {1}]
  %4 = xla_tuple %s2, %s3
  %s5 = sld [smem:[#allocation0]]
  $region49: #{encoder2d_block.6} parent=0
    _
  %s7 = ssub.s32 1, %s5
  %s8 = scalar_select 0, %s7, %s5
  loop: start=0, step=1, limit=4
  $region2: #{encoder2d_block.6} parent=0 // loop_pre_header
    _
  $region3: #{encoder2d_block.6} parent=0 // loop_header
    %s10 = sphi 0, %s14
    %p11 = scmp.ge.s32.totalorder %s10, 4
    %s20 = sphi 0, %s22
    %s23 = sphi 0, %s20
    %s24 = sphi 0, %s23
    %s40 = sphi 0, %s24
    %s44 = sphi 0, %s44
    %s46 = sphi 0, %s44
    %s47 = sphi 0, %s46
    %s61 = sphi 0, %s47
    %s67 = sphi 0, %s69
    %s70 = sphi 0, %s67
    %s71 = sphi 0, %s70
    %s87 = sphi 0, %s71
    %s93 = sphi 0, %s95
    %s96 = sphi 0, %s93
    %s97 = sphi 0, %s96
    %s113 = sphi 0, %s97
  $region4: #{encoder2d_block.6} parent=0 // loop_header_branch
    %13 = sbr.rel (%p11) target = $region8
  $region5: #{encoder2d_block.6} parent=0 // loop_body
    %s15 = ssub.s32 %s10, 1
    %s16 = ssub.s32 %s10, 2
    %s17 = sadd.s32 %s10, 1
    %s18 = ssub.s32 %s10, %s17
    %p19 = scmp.eq.s32.totalorder %s18, 0
    %s21 = sadd.s32 %s20, 1
    %s22 = scalar_select %p19, %s20, %s21
    %p25 = pneg %p19
    %p26 = scmp.eq.s32.totalorder %s10, 1
    %p27 = por %p25, %p26
    %p28 = scmp.ne.s32.totalorder %s20, %s23
    %p29 = scmp.eq.s32.totalorder %s10, 0
    %p30 = por %p28, %p29
    %p31 = scmp.ne.s32.totalorder %s20, %s23
    %p32 = scmp.eq.s32.totalorder %s15, 1
    %p33 = por %p31, %p32
    %p34 = scmp.ne.s32.totalorder %s23, %s24
    %p35 = scmp.eq.s32.totalorder %s15, 0
    %p36 = por %p34, %p35
    %p37 = scmp.ne.s32.totalorder %s23, %s24
    %p38 = scmp.eq.s32.totalorder %s16, 1
    %p39 = por %p37, %p38
    %p41 = scmp.ne.s32.totalorder %s24, %s40
    %p42 = scmp.eq.s32.totalorder %s16, 0
    %p43 = por %p41, %p42
    %s45 = sadd.s32 %s44, 1
    %p48 = scmp.eq.s32.totalorder %s10, 1
    %p49 = scmp.ne.s32.totalorder %s44, %s46
    %p50 = scmp.eq.s32.totalorder %s10, 0
    %p51 = por %p49, %p50
    %p52 = scmp.ne.s32.totalorder %s44, %s46
    %p53 = scmp.eq.s32.totalorder %s15, 1
    %p54 = por %p52, %p53
    %p55 = scmp.ne.s32.totalorder %s46, %s47
    %p56 = scmp.eq.s32.totalorder %s15, 0
    %p57 = por %p55, %p56
    %p58 = scmp.ne.s32.totalorder %s46, %s47
    %p59 = scmp.eq.s32.totalorder %s16, 1
    %p60 = por %p58, %p59
    %p62 = scmp.ne.s32.totalorder %s47, %s61
    %p63 = scmp.eq.s32.totalorder %s16, 0
    %p64 = por %p62, %p63
    %s65 = ssub.s32 %s10, %s17
    %p66 = scmp.eq.s32.totalorder %s65, 0
    %s68 = sadd.s32 %s67, 1
    %s69 = scalar_select %p66, %s67, %s68
    %p72 = pneg %p66
    %p73 = scmp.eq.s32.totalorder %s10, 1
    %p74 = por %p72, %p73
    %p75 = scmp.ne.s32.totalorder %s67, %s70
    %p76 = scmp.eq.s32.totalorder %s10, 0
    %p77 = por %p75, %p76
    %p78 = scmp.ne.s32.totalorder %s67, %s70
    %p79 = scmp.eq.s32.totalorder %s15, 1
    %p80 = por %p78, %p79
    %p81 = scmp.ne.s32.totalorder %s70, %s71
    %p82 = scmp.eq.s32.totalorder %s15, 0
    %p83 = por %p81, %p82
    %p84 = scmp.ne.s32.totalorder %s70, %s71
    %p85 = scmp.eq.s32.totalorder %s16, 1
    %p86 = por %p84, %p85
    %p88 = scmp.ne.s32.totalorder %s71, %s87
    %p89 = scmp.eq.s32.totalorder %s16, 0
    %p90 = por %p88, %p89
    %s91 = ssub.s32 %s10, %s17
    %p92 = scmp.eq.s32.totalorder %s91, 0
    %s94 = sadd.s32 %s93, 1
    %s95 = scalar_select %p92, %s93, %s94
    %p98 = pneg %p92
    %p99 = scmp.eq.s32.totalorder %s10, 1
    %p100 = por %p98, %p99
    %p101 = scmp.ne.s32.totalorder %s93, %s96
    %p102 = scmp.eq.s32.totalorder %s10, 0
    %p103 = por %p101, %p102
    %p104 = scmp.ne.s32.totalorder %s93, %s96
    %p105 = scmp.eq.s32.totalorder %s15, 1
    %p106 = por %p104, %p105
    %p107 = scmp.ne.s32.totalorder %s96, %s97
    %p108 = scmp.eq.s32.totalorder %s15, 0
    %p109 = por %p107, %p108
    %p110 = scmp.ne.s32.totalorder %s96, %s97
    %p111 = scmp.eq.s32.totalorder %s16, 1
    %p112 = por %p110, %p111
    %p114 = scmp.ne.s32.totalorder %s97, %s113
    %p115 = scmp.eq.s32.totalorder %s16, 0
    %p116 = por %p114, %p115
    %p117 = scmp.le.s32.totalorder 1, %s10
    %p118 = scmp.lt.s32.totalorder %s10, 3
    %p119 = pnand %p117, %p118
    %p120 = pneg %p119
    // Predicated region
    $region9: #{encoder2d_block.6} parent=5 // pred_check
      _
    $region10: #{encoder2d_block.6} parent=5 // pred_check_branch
      %122 = sbr.rel (%p119) target = $region12
    $region11: #{encoder2d_block.6} parent=5 // pred_region
      %s123 = ssub.s32 %s10, 1
      // Predicated region
      $region13: #{encoder2d_block.6} parent=11 // pred_check
        %p124 = pneg %p57
      $region14: #{encoder2d_block.6} parent=11 // pred_check_branch
        %126 = sbr.rel (%p124) target = $region16
      $region15: #{encoder2d_block.6} parent=11 // pred_region
        _
      $region16: #{encoder2d_block.6} parent=11 // pred_fallthru
        _
    $region12: #{encoder2d_block.6} parent=5 // pred_fallthru
      _
    %p127 = scmp.lt.s32.totalorder %s10, 2
    // Predicated region
    $region17: #{encoder2d_block.6} parent=5 // pred_check
      %p128 = pneg %p127
    $region18: #{encoder2d_block.6} parent=5 // pred_check_branch
      %130 = sbr.rel (%p128) target = $region20
    $region19: #{encoder2d_block.6} parent=5 // pred_region
      // Predicated region
      $region21: #{encoder2d_block.6} parent=19 // pred_check
        %p131 = pneg %p30
      $region22: #{encoder2d_block.6} parent=19 // pred_check_branch
        %133 = sbr.rel (%p131) target = $region24
      $region23: #{encoder2d_block.6} parent=19 // pred_region
        %p134 = scmp.lt.s32.totalorder %s10, 1
        %s135 = scalar_select %p134, %s10, 1
        %s136 = smul.addr %s135, 20
        %s137 = smul.addr %s136, 4
        %s138 = scalar_lea.vmem %s0, %s137
      $region24: #{encoder2d_block.6} parent=19 // pred_fallthru
        _
    $region20: #{encoder2d_block.6} parent=5 // pred_fallthru
      _
    %p139 = scmp.le.s32.totalorder 1, %s10
    %p140 = scmp.lt.s32.totalorder %s10, 3
    %p141 = pnand %p139, %p140
    %p142 = pneg %p141
    // Predicated region
    $region25: #{encoder2d_block.6} parent=5 // pred_check
      _
    $region26: #{encoder2d_block.6} parent=5 // pred_check_branch
      %144 = sbr.rel (%p141) target = $region28
    $region27: #{encoder2d_block.6} parent=5 // pred_region
      %s145 = ssub.s32 %s10, 1
      %p146 = scmp.lt.s32.totalorder %s15, 1
      %s147 = scalar_select %p146, %s15, 1
      %s148 = smul.addr %s147, 20
      %s149 = smul.addr %s148, 4
      %s150 = scalar_lea.vmem %s0, %s149
      %p151 = pneg %p36
      %p152 = pneg %p33
      %p153 = pneg %p57
      %p154 = pneg %p54
      %p155 = pneg %p83
      %p156 = pneg %p80
      %p157 = scmp.lt.s32.totalorder %s15, 1
      %s158 = scalar_select %p157, %s15, 1
      %s159 = smul.addr %s158, 8
      %s160 = smul.addr %s159, 4
      %s161 = scalar_lea.vmem %s2, %s160
      %p162 = pneg %p109
      %p163 = pneg %p106
      %p164 = scmp.lt.s32.totalorder %s15, 1
      %s165 = scalar_select %p164, %s15, 1
      %s166 = smul.addr %s165, 2
      %s167 = scalar_lea.vmem %s3, %s166
      %p168 = scmp.lt.s32.totalorder %s15, 1
      %s169 = scalar_select %p168, %s15, 1
      %s170 = smul.addr %s169, 20
      %s171 = smul.addr %s170, 4
      %s172 = scalar_lea.vmem %s0, %s171
      %p173 = scmp.lt.s32.totalorder %s15, 1
      %s174 = scalar_select %p173, %s15, 1
      %s175 = smul.addr %s174, 8
      %s176 = smul.addr %s175, 4
      %s177 = scalar_lea.vmem %s2, %s176
      %p178 = scmp.lt.s32.totalorder %s15, 1
      %s179 = scalar_select %p178, %s15, 1
      %s180 = smul.addr %s179, 2
      %s181 = scalar_lea.vmem %s3, %s180
      %v183 = vld [vmem:[%s172] sm:$0xf]
      %v184 = vld [vmem:[%s172 + $0x8] sm:$0xf]
      %v185 = vld [vmem:[%s172 + $0x10] sm:$0xf]
      %v186 = vld [vmem:[%s172 + $0x18] sm:$0xf]
      %v187 = vld [vmem:[%s172 + $0x20] sm:$0xf]
      %v188 = vld [vmem:[%s172 + $0x28] sm:$0xf]
      %v189 = vld [vmem:[%s172 + $0x30] sm:$0xf]
      %v190 = vld [vmem:[%s172 + $0x38] sm:$0xf]
      %v191 = vunpack.c.l.bf16 %v183
      %v192 = vunpack.c.l.bf16 %v184
      %v193 = vunpack.c.l.bf16 %v185
      %v194 = vunpack.c.l.bf16 %v186
      %v195 = vunpack.c.l.bf16 %v187
      %v196 = vunpack.c.l.bf16 %v188
      %v197 = vunpack.c.l.bf16 %v189
      %v198 = vunpack.c.l.bf16 %v190
      %v199 = vpack.c.bf16 %v192, %v191
      %v200 = vpack.c.bf16 %v194, %v193
      %v201 = vpack.c.bf16 %v196, %v195
      %v202 = vpack.c.bf16 %v198, %v197
      %v203 = vld [vmem:[%s1] sm:$0xf]
      %v204 = vld [vmem:[%s1 + $0x4] sm:$0xf]
      %v205 = vld [vmem:[%s1 + $0x8] sm:$0xf]
      %v206 = vld [vmem:[%s1 + $0xc] sm:$0xf]
      %v207 = vld [vmem:[%s1 + $0x10] sm:$0xf]
      %v208 = vld [vmem:[%s1 + $0x14] sm:$0xf]
      %v209 = vld [vmem:[%s1 + $0x18] sm:$0xf]
      %v210 = vld [vmem:[%s1 + $0x1c] sm:$0xf]
      %v211 = vld [vmem:[%s1 + $0x20] sm:$0xf]
      %v212 = vld [vmem:[%s1 + $0x24] sm:$0xf]
      %v213 = vld [vmem:[%s1 + $0x28] sm:$0xf]
      %v214 = vld [vmem:[%s1 + $0x2c] sm:$0xf]
      %v215 = vld [vmem:[%s1 + $0x30] sm:$0xf]
      %v216 = vld [vmem:[%s1 + $0x34] sm:$0xf]
      %v217 = vld [vmem:[%s1 + $0x38] sm:$0xf]
      %v218 = vld [vmem:[%s1 + $0x3c] sm:$0xf]
      %v219 = vld [vmem:[%s172 + $0x4] sm:$0x1]
      %v220 = vld [vmem:[%s172 + $0xc] sm:$0x1]
      %v221 = vld [vmem:[%s172 + $0x14] sm:$0x1]
      %v222 = vld [vmem:[%s172 + $0x1c] sm:$0x1]
      %v223 = vld [vmem:[%s172 + $0x24] sm:$0x1]
      %v224 = vld [vmem:[%s172 + $0x2c] sm:$0x1]
      %v225 = vld [vmem:[%s172 + $0x34] sm:$0x1]
      %v226 = vld [vmem:[%s172 + $0x3c] sm:$0x1]
      %v227 = vunpack.c.l.bf16 %v219
      %v228 = vunpack.c.l.bf16 %v220
      %v229 = vunpack.c.l.bf16 %v221
      %v230 = vunpack.c.l.bf16 %v222
      %v231 = vunpack.c.l.bf16 %v223
      %v232 = vunpack.c.l.bf16 %v224
      %v233 = vunpack.c.l.bf16 %v225
      %v234 = vunpack.c.l.bf16 %v226
      %vm251 = vcmask 1046528
      %v252 = vrot.slane %v191, 1
      %v253 = vrot.slane %v227, 1
      %v254 = vsel %vm251, %v252, %v253
      %v255 = vrot.slane %v192, 1
      %v256 = vrot.slane %v228, 1
      %v257 = vsel %vm251, %v255, %v256
      %v258 = vrot.slane %v193, 1
      %v259 = vrot.slane %v229, 1
      %v260 = vsel %vm251, %v258, %v259
      %v261 = vrot.slane %v194, 1
      %v262 = vrot.slane %v230, 1
      %v263 = vsel %vm251, %v261, %v262
      %v264 = vrot.slane %v195, 1
      %v265 = vrot.slane %v231, 1
      %v266 = vsel %vm251, %v264, %v265
      %v267 = vrot.slane %v196, 1
      %v268 = vrot.slane %v232, 1
      %v269 = vsel %vm251, %v267, %v268
      %v270 = vrot.slane %v197, 1
      %v271 = vrot.slane %v233, 1
      %v272 = vsel %vm251, %v270, %v271
      %v273 = vrot.slane %v198, 1
      %v274 = vrot.slane %v234, 1
      %v275 = vsel %vm251, %v273, %v274
      %v284 = vpack.c.bf16 %v257, %v254
      %v285 = vpack.c.bf16 %v263, %v260
      %v286 = vpack.c.bf16 %v269, %v266
      %v287 = vpack.c.bf16 %v275, %v272
      %s288 = scalar_lea.vmem %s1, 64
      %v289 = vld [vmem:[%s288] sm:$0xf]
      %v290 = vld [vmem:[%s288 + $0x4] sm:$0xf]
      %v291 = vld [vmem:[%s288 + $0x8] sm:$0xf]
      %v292 = vld [vmem:[%s288 + $0xc] sm:$0xf]
      %v293 = vld [vmem:[%s288 + $0x10] sm:$0xf]
      %v294 = vld [vmem:[%s288 + $0x14] sm:$0xf]
      %v295 = vld [vmem:[%s288 + $0x18] sm:$0xf]
      %v296 = vld [vmem:[%s288 + $0x1c] sm:$0xf]
      %v297 = vld [vmem:[%s288 + $0x20] sm:$0xf]
      %v298 = vld [vmem:[%s288 + $0x24] sm:$0xf]
      %v299 = vld [vmem:[%s288 + $0x28] sm:$0xf]
      %v300 = vld [vmem:[%s288 + $0x2c] sm:$0xf]
      %v301 = vld [vmem:[%s288 + $0x30] sm:$0xf]
      %v302 = vld [vmem:[%s288 + $0x34] sm:$0xf]
      %v303 = vld [vmem:[%s288 + $0x38] sm:$0xf]
      %v304 = vld [vmem:[%s288 + $0x3c] sm:$0xf]
      %v321 = vunpack.c.l.b16 %v289
      %v322 = vunpack.c.l.b16 %v290
      %v323 = vunpack.c.l.b16 %v291
      %v324 = vunpack.c.l.b16 %v292
      %v325 = vunpack.c.l.b16 %v293
      %v326 = vunpack.c.l.b16 %v294
      %v327 = vunpack.c.l.b16 %v295
      %v328 = vunpack.c.l.b16 %v296
      %v329 = vunpack.c.l.b16 %v297
      %v330 = vunpack.c.l.b16 %v298
      %v331 = vunpack.c.l.b16 %v299
      %v332 = vunpack.c.l.b16 %v300
      %v333 = vunpack.c.l.b16 %v301
      %v334 = vunpack.c.l.b16 %v302
      %v335 = vunpack.c.l.b16 %v303
      %v336 = vunpack.c.l.b16 %v304
      %v337 = vpack.c.b16 %v322, %v321
      %v338 = vpack.c.b16 %v324, %v323
      %v339 = vpack.c.b16 %v326, %v325
      %v340 = vpack.c.b16 %v328, %v327
      %v341 = vpack.c.b16 %v330, %v329
      %v342 = vpack.c.b16 %v332, %v331
      %v343 = vpack.c.b16 %v334, %v333
      %v344 = vpack.c.b16 %v336, %v335
      %353 = vmatprep.subr.bf16.mxu0 0
      %354 = vmatpush1.bf16.msra.mxu0 %v337
      %355 = vmatprep.subr.bf16.mxu0 0
      %356 = vmatpush1.bf16.msra.mxu0 %v338
      %357 = vmatprep.subr.bf16.mxu0 0
      %358 = vmatpush1.bf16.msra.mxu0 %v339
      %359 = vmatprep.subr.bf16.mxu0 0
      %360 = vmatpush1.bf16.msra.mxu0 %v340
      %361 = vmatprep.subr.bf16.mxu0 0
      %362 = vmatpush1.bf16.msra.mxu0 %v341
      %363 = vmatprep.subr.bf16.mxu0 0
      %364 = vmatpush1.bf16.msra.mxu0 %v342
      %365 = vmatprep.subr.bf16.mxu0 0
      %366 = vmatpush1.bf16.msra.mxu0 %v343
      %367 = vmatprep.subr.bf16.mxu0 0
      %368 = vmatpush1.bf16.msra.mxu0 %v344
      %369 = vmatprep.subr.bf16.mxu0 0
      %370 = vmatpush1.bf16.msra.mxu0 0
      %371 = vmatprep.subr.bf16.mxu0 0
      %372 = vmatpush1.bf16.msra.mxu0 0
      %373 = vmatprep.subr.bf16.mxu0 0
      %374 = vmatpush1.bf16.msra.mxu0 0
      %375 = vmatprep.subr.bf16.mxu0 0
      %376 = vmatpush1.bf16.msra.mxu0 0
      %377 = vmatprep.subr.bf16.mxu0 0
      %378 = vmatpush1.bf16.msra.mxu0 0
      %379 = vmatprep.subr.bf16.mxu0 0
      %380 = vmatpush1.bf16.msra.mxu0 0
      %381 = vmatprep.subr.bf16.mxu0 0
      %382 = vmatpush1.bf16.msra.mxu0 0
      %383 = vmatprep.subr.bf16.mxu0 0
      %384 = vmatpush1.bf16.msra.mxu0 0
      %385 = vmatprep.mubr.bf16.mxu0 0
      %386 = vmatmul.mubr.bf16.gmra.mrb[0].mxu0 %v284
      %v387 = vpop.f32.mrb[0].mxu0
      %v388 = vadd.f32 0.0, %v387
      %v389 = vpop.f32.mrb[0].mxu0
      %v390 = vpop.f32.mrb[0].mxu0
      %v391 = vadd.f32 0.0, %v390
      %v392 = vpop.f32.mrb[0].mxu0
      %393 = vmatprep.mubr.bf16.mxu0 0
      %394 = vmatmul.mubr.bf16.gmra.mrb[0].mxu0 %v285
      %v395 = vpop.f32.mrb[0].mxu0
      %v396 = vadd.f32 0.0, %v395
      %v397 = vpop.f32.mrb[0].mxu0
      %v398 = vpop.f32.mrb[0].mxu0
      %v399 = vadd.f32 0.0, %v398
      %v400 = vpop.f32.mrb[0].mxu0
      %401 = vmatprep.mubr.bf16.mxu0 0
      %402 = vmatmul.mubr.bf16.gmra.mrb[0].mxu0 %v286
      %v403 = vpop.f32.mrb[0].mxu0
      %v404 = vadd.f32 0.0, %v403
      %v405 = vpop.f32.mrb[0].mxu0
      %v406 = vpop.f32.mrb[0].mxu0
      %v407 = vadd.f32 0.0, %v406
      %v408 = vpop.f32.mrb[0].mxu0
      %409 = vmatprep.mubr.bf16.mxu0 0
      %410 = vmatmul.mubr.bf16.gmra.mrb[0].mxu0 %v287
      %v411 = vpop.f32.mrb[0].mxu0
      %v412 = vadd.f32 0.0, %v411
      %v413 = vpop.f32.mrb[0].mxu0
      %v414 = vpop.f32.mrb[0].mxu0
      %v415 = vadd.f32 0.0, %v414
      %v416 = vpop.f32.mrb[0].mxu0
      %417 = vdwg.mxu0
      %v434 = vunpack.c.l.b16 %v203
      %v435 = vunpack.c.l.b16 %v204
      %v436 = vunpack.c.l.b16 %v205
      %v437 = vunpack.c.l.b16 %v206
      %v438 = vunpack.c.l.b16 %v207
      %v439 = vunpack.c.l.b16 %v208
      %v440 = vunpack.c.l.b16 %v209
      %v441 = vunpack.c.l.b16 %v210
      %v442 = vunpack.c.l.b16 %v211
      %v443 = vunpack.c.l.b16 %v212
      %v444 = vunpack.c.l.b16 %v213
      %v445 = vunpack.c.l.b16 %v214
      %v446 = vunpack.c.l.b16 %v215
      %v447 = vunpack.c.l.b16 %v216
      %v448 = vunpack.c.l.b16 %v217
      %v449 = vunpack.c.l.b16 %v218
      %v450 = vpack.c.b16 %v435, %v434
      %v451 = vpack.c.b16 %v437, %v436
      %v452 = vpack.c.b16 %v439, %v438
      %v453 = vpack.c.b16 %v441, %v440
      %v454 = vpack.c.b16 %v443, %v442
      %v455 = vpack.c.b16 %v445, %v444
      %v456 = vpack.c.b16 %v447, %v446
      %v457 = vpack.c.b16 %v449, %v448
      %466 = vmatprep.subr.bf16.mxu0 0
      %467 = vmatpush1.bf16.msra.mxu0 %v450
      %468 = vmatprep.subr.bf16.mxu0 0
      %469 = vmatpush1.bf16.msra.mxu0 %v451
      %470 = vmatprep.subr.bf16.mxu0 0
      %471 = vmatpush1.bf16.msra.mxu0 %v452
      %472 = vmatprep.subr.bf16.mxu0 0
      %473 = vmatpush1.bf16.msra.mxu0 %v453
      %474 = vmatprep.subr.bf16.mxu0 0
      %475 = vmatpush1.bf16.msra.mxu0 %v454
      %476 = vmatprep.subr.bf16.mxu0 0
      %477 = vmatpush1.bf16.msra.mxu0 %v455
      %478 = vmatprep.subr.bf16.mxu0 0
      %479 = vmatpush1.bf16.msra.mxu0 %v456
      %480 = vmatprep.subr.bf16.mxu0 0
      %481 = vmatpush1.bf16.msra.mxu0 %v457
      %482 = vmatprep.subr.bf16.mxu0 0
      %483 = vmatpush1.bf16.msra.mxu0 0
      %484 = vmatprep.subr.bf16.mxu0 0
      %485 = vmatpush1.bf16.msra.mxu0 0
      %486 = vmatprep.subr.bf16.mxu0 0
      %487 = vmatpush1.bf16.msra.mxu0 0
      %488 = vmatprep.subr.bf16.mxu0 0
      %489 = vmatpush1.bf16.msra.mxu0 0
      %490 = vmatprep.subr.bf16.mxu0 0
      %491 = vmatpush1.bf16.msra.mxu0 0
      %492 = vmatprep.subr.bf16.mxu0 0
      %493 = vmatpush1.bf16.msra.mxu0 0
      %494 = vmatprep.subr.bf16.mxu0 0
      %495 = vmatpush1.bf16.msra.mxu0 0
      %496 = vmatprep.subr.bf16.mxu0 0
      %497 = vmatpush1.bf16.msra.mxu0 0
      %498 = vmatprep.mubr.bf16.mxu0 0
      %499 = vmatmul.mubr.bf16.gmra.mrb[0].mxu0 %v199
      %v500 = vpop.f32.mrb[0].mxu0
      %v501 = vadd.f32 %v388, %v500
      %v502 = vpop.f32.mrb[0].mxu0
      %v503 = vpop.f32.mrb[0].mxu0
      %v504 = vadd.f32 %v391, %v503
      %v505 = vpop.f32.mrb[0].mxu0
      %506 = vmatprep.mubr.bf16.mxu0 0
      %507 = vmatmul.mubr.bf16.gmra.mrb[0].mxu0 %v200
      %v508 = vpop.f32.mrb[0].mxu0
      %v509 = vadd.f32 %v396, %v508
      %v510 = vpop.f32.mrb[0].mxu0
      %v511 = vpop.f32.mrb[0].mxu0
      %v512 = vadd.f32 %v399, %v511
      %v513 = vpop.f32.mrb[0].mxu0
      %514 = vmatprep.mubr.bf16.mxu0 0
      %515 = vmatmul.mubr.bf16.gmra.mrb[0].mxu0 %v201
      %v516 = vpop.f32.mrb[0].mxu0
      %v517 = vadd.f32 %v404, %v516
      %v518 = vpop.f32.mrb[0].mxu0
      %v519 = vpop.f32.mrb[0].mxu0
      %v520 = vadd.f32 %v407, %v519
      %v521 = vpop.f32.mrb[0].mxu0
      %522 = vmatprep.mubr.bf16.mxu0 0
      %523 = vmatmul.mubr.bf16.gmra.mrb[0].mxu0 %v202
      %v524 = vpop.f32.mrb[0].mxu0
      %v525 = vadd.f32 %v412, %v524
      %v526 = vpop.f32.mrb[0].mxu0
      %v527 = vpop.f32.mrb[0].mxu0
      %v528 = vadd.f32 %v415, %v527
      %v529 = vpop.f32.mrb[0].mxu0
      %530 = vdwg.mxu0
      %v531 = vld [vmem:[%s172] sm:$0xe]
      %v532 = vld [vmem:[%s172 + $0x8] sm:$0xe]
      %v533 = vld [vmem:[%s172 + $0x10] sm:$0xe]
      %v534 = vld [vmem:[%s172 + $0x18] sm:$0xe]
      %v535 = vld [vmem:[%s172 + $0x20] sm:$0xe]
      %v536 = vld [vmem:[%s172 + $0x28] sm:$0xe]
      %v537 = vld [vmem:[%s172 + $0x30] sm:$0xe]
      %v538 = vld [vmem:[%s172 + $0x38] sm:$0xe]
      %v539 = vunpack.c.l.bf16 %v531
      %v540 = vunpack.c.l.bf16 %v532
      %v541 = vunpack.c.l.bf16 %v533
      %v542 = vunpack.c.l.bf16 %v534
      %v543 = vunpack.c.l.bf16 %v535
      %v544 = vunpack.c.l.bf16 %v536
      %v545 = vunpack.c.l.bf16 %v537
      %v546 = vunpack.c.l.bf16 %v538
      %vm555 = vcmask 1045504
      %v556 = vrot.slane %v539, 2
      %v557 = vrot.slane %v227, 2
      %v558 = vsel %vm555, %v556, %v557
      %v559 = vrot.slane %v540, 2
      %v560 = vrot.slane %v228, 2
      %v561 = vsel %vm555, %v559, %v560
      %v562 = vrot.slane %v541, 2
      %v563 = vrot.slane %v229, 2
      %v564 = vsel %vm555, %v562, %v563
      %v565 = vrot.slane %v542, 2
      %v566 = vrot.slane %v230, 2
      %v567 = vsel %vm555, %v565, %v566
      %v568 = vrot.slane %v543, 2
      %v569 = vrot.slane %v231, 2
      %v570 = vsel %vm555, %v568, %v569
      %v571 = vrot.slane %v544, 2
      %v572 = vrot.slane %v232, 2
      %v573 = vsel %vm555, %v571, %v572
      %v574 = vrot.slane %v545, 2
      %v575 = vrot.slane %v233, 2
      %v576 = vsel %vm555, %v574, %v575
      %v577 = vrot.slane %v546, 2
      %v578 = vrot.slane %v234, 2
      %v579 = vsel %vm555, %v577, %v578
      %v588 = vpack.c.bf16 %v561, %v558
      %v589 = vpack.c.bf16 %v567, %v564
      %v590 = vpack.c.bf16 %v573, %v570
      %v591 = vpack.c.bf16 %v579, %v576
      %s592 = scalar_lea.vmem %s1, 128
      %v593 = vld [vmem:[%s592] sm:$0xf]
      %v594 = vld [vmem:[%s592 + $0x4] sm:$0xf]
      %v595 = vld [vmem:[%s592 + $0x8] sm:$0xf]
      %v596 = vld [vmem:[%s592 + $0xc] sm:$0xf]
      %v597 = vld [vmem:[%s592 + $0x10] sm:$0xf]
      %v598 = vld [vmem:[%s592 + $0x14] sm:$0xf]
      %v599 = vld [vmem:[%s592 + $0x18] sm:$0xf]
      %v600 = vld [vmem:[%s592 + $0x1c] sm:$0xf]
      %v601 = vld [vmem:[%s592 + $0x20] sm:$0xf]
      %v602 = vld [vmem:[%s592 + $0x24] sm:$0xf]
      %v603 = vld [vmem:[%s592 + $0x28] sm:$0xf]
      %v604 = vld [vmem:[%s592 + $0x2c] sm:$0xf]
      %v605 = vld [vmem:[%s592 + $0x30] sm:$0xf]
      %v606 = vld [vmem:[%s592 + $0x34] sm:$0xf]
      %v607 = vld [vmem:[%s592 + $0x38] sm:$0xf]
      %v608 = vld [vmem:[%s592 + $0x3c] sm:$0xf]
      %v625 = vunpack.c.l.b16 %v593
      %v626 = vunpack.c.l.b16 %v594
      %v627 = vunpack.c.l.b16 %v595
      %v628 = vunpack.c.l.b16 %v596
      %v629 = vunpack.c.l.b16 %v597
      %v630 = vunpack.c.l.b16 %v598
      %v631 = vunpack.c.l.b16 %v599
      %v632 = vunpack.c.l.b16 %v600
      %v633 = vunpack.c.l.b16 %v601
      %v634 = vunpack.c.l.b16 %v602
      %v635 = vunpack.c.l.b16 %v603
      %v636 = vunpack.c.l.b16 %v604
      %v637 = vunpack.c.l.b16 %v605
      %v638 = vunpack.c.l.b16 %v606
      %v639 = vunpack.c.l.b16 %v607
      %v640 = vunpack.c.l.b16 %v608
      %v641 = vpack.c.b16 %v626, %v625
      %v642 = vpack.c.b16 %v628, %v627
      %v643 = vpack.c.b16 %v630, %v629
      %v644 = vpack.c.b16 %v632, %v631
      %v645 = vpack.c.b16 %v634, %v633
      %v646 = vpack.c.b16 %v636, %v635
      %v647 = vpack.c.b16 %v638, %v637
      %v648 = vpack.c.b16 %v640, %v639
      %657 = vmatprep.subr.bf16.mxu0 0
      %658 = vmatpush1.bf16.msra.mxu0 %v641
      %659 = vmatprep.subr.bf16.mxu0 0
      %660 = vmatpush1.bf16.msra.mxu0 %v642
      %661 = vmatprep.subr.bf16.mxu0 0
      %662 = vmatpush1.bf16.msra.mxu0 %v643
      %663 = vmatprep.subr.bf16.mxu0 0
      %664 = vmatpush1.bf16.msra.mxu0 %v644
      %665 = vmatprep.subr.bf16.mxu0 0
      %666 = vmatpush1.bf16.msra.mxu0 %v645
      %667 = vmatprep.subr.bf16.mxu0 0
      %668 = vmatpush1.bf16.msra.mxu0 %v646
      %669 = vmatprep.subr.bf16.mxu0 0
      %670 = vmatpush1.bf16.msra.mxu0 %v647
      %671 = vmatprep.subr.bf16.mxu0 0
      %672 = vmatpush1.bf16.msra.mxu0 %v648
      %673 = vmatprep.subr.bf16.mxu0 0
      %674 = vmatpush1.bf16.msra.mxu0 0
      %675 = vmatprep.subr.bf16.mxu0 0
      %676 = vmatpush1.bf16.msra.mxu0 0
      %677 = vmatprep.subr.bf16.mxu0 0
      %678 = vmatpush1.bf16.msra.mxu0 0
      %679 = vmatprep.subr.bf16.mxu0 0
      %680 = vmatpush1.bf16.msra.mxu0 0
      %681 = vmatprep.subr.bf16.mxu0 0
      %682 = vmatpush1.bf16.msra.mxu0 0
      %683 = vmatprep.subr.bf16.mxu0 0
      %684 = vmatpush1.bf16.msra.mxu0 0
      %685 = vmatprep.subr.bf16.mxu0 0
      %686 = vmatpush1.bf16.msra.mxu0 0
      %687 = vmatprep.subr.bf16.mxu0 0
      %688 = vmatpush1.bf16.msra.mxu0 0
      %689 = vmatprep.mubr.bf16.mxu0 0
      %690 = vmatmul.mubr.bf16.gmra.mrb[0].mxu0 %v588
      %v691 = vpop.f32.mrb[0].mxu0
      %v692 = vadd.f32 0.0, %v691
      %v693 = vpop.f32.mrb[0].mxu0
      %v694 = vpop.f32.mrb[0].mxu0
      %v695 = vadd.f32 0.0, %v694
      %v696 = vpop.f32.mrb[0].mxu0
      %697 = vmatprep.mubr.bf16.mxu0 0
      %698 = vmatmul.mubr.bf16.gmra.mrb[0].mxu0 %v589
      %v699 = vpop.f32.mrb[0].mxu0
      %v700 = vadd.f32 0.0, %v699
      %v701 = vpop.f32.mrb[0].mxu0
      %v702 = vpop.f32.mrb[0].mxu0
      %v703 = vadd.f32 0.0, %v702
      %v704 = vpop.f32.mrb[0].mxu0
      %705 = vmatprep.mubr.bf16.mxu0 0
      %706 = vmatmul.mubr.bf16.gmra.mrb[0].mxu0 %v590
      %v707 = vpop.f32.mrb[0].mxu0
      %v708 = vadd.f32 0.0, %v707
      %v709 = vpop.f32.mrb[0].mxu0
      %v710 = vpop.f32.mrb[0].mxu0
      %v711 = vadd.f32 0.0, %v710
      %v712 = vpop.f32.mrb[0].mxu0
      %713 = vmatprep.mubr.bf16.mxu0 0
      %714 = vmatmul.mubr.bf16.gmra.mrb[0].mxu0 %v591
      %v715 = vpop.f32.mrb[0].mxu0
      %v716 = vadd.f32 0.0, %v715
      %v717 = vpop.f32.mrb[0].mxu0
      %v718 = vpop.f32.mrb[0].mxu0
      %v719 = vadd.f32 0.0, %v718
      %v720 = vpop.f32.mrb[0].mxu0
      %721 = vdwg.mxu0
      %v722 = vadd.f32 %v501, %v692
      %v723 = vadd.f32 %v504, %v695
      %v724 = vadd.f32 %v509, %v700
      %v725 = vadd.f32 %v512, %v703
      %v726 = vadd.f32 %v517, %v708
      %v727 = vadd.f32 %v520, %v711
      %v728 = vadd.f32 %v525, %v716
      %v729 = vadd.f32 %v528, %v719
      %s730 = scalar_lea.vmem %s172, 8
      %v731 = vld [vmem:[%s730] sm:$0xf]
      %v732 = vld [vmem:[%s730 + $0x8] sm:$0xf]
      %v733 = vld [vmem:[%s730 + $0x10] sm:$0xf]
      %v734 = vld [vmem:[%s730 + $0x18] sm:$0xf]
      %v735 = vld [vmem:[%s730 + $0x20] sm:$0xf]
      %v736 = vld [vmem:[%s730 + $0x28] sm:$0xf]
      %v737 = vld [vmem:[%s730 + $0x30] sm:$0xf]
      %v738 = vld [vmem:[%s730 + $0x38] sm:$0xf]
      %v739 = vunpack.c.l.bf16 %v731
      %v740 = vunpack.c.l.bf16 %v732
      %v741 = vunpack.c.l.bf16 %v733
      %v742 = vunpack.c.l.bf16 %v734
      %v743 = vunpack.c.l.bf16 %v735
      %v744 = vunpack.c.l.bf16 %v736
      %v745 = vunpack.c.l.bf16 %v737
      %v746 = vunpack.c.l.bf16 %v738
      %v747 = vpack.c.bf16 %v740, %v739
      %v748 = vpack.c.bf16 %v742, %v741
      %v749 = vpack.c.bf16 %v744, %v743
      %v750 = vpack.c.bf16 %v746, %v745
      %s751 = scalar_lea.vmem %s1, 192
      %v752 = vld [vmem:[%s751] sm:$0xf]
      %v753 = vld [vmem:[%s751 + $0x4] sm:$0xf]
      %v754 = vld [vmem:[%s751 + $0x8] sm:$0xf]
      %v755 = vld [vmem:[%s751 + $0xc] sm:$0xf]
      %v756 = vld [vmem:[%s751 + $0x10] sm:$0xf]
      %v757 = vld [vmem:[%s751 + $0x14] sm:$0xf]
      %v758 = vld [vmem:[%s751 + $0x18] sm:$0xf]
      %v759 = vld [vmem:[%s751 + $0x1c] sm:$0xf]
      %v760 = vld [vmem:[%s751 + $0x20] sm:$0xf]
      %v761 = vld [vmem:[%s751 + $0x24] sm:$0xf]
      %v762 = vld [vmem:[%s751 + $0x28] sm:$0xf]
      %v763 = vld [vmem:[%s751 + $0x2c] sm:$0xf]
      %v764 = vld [vmem:[%s751 + $0x30] sm:$0xf]
      %v765 = vld [vmem:[%s751 + $0x34] sm:$0xf]
      %v766 = vld [vmem:[%s751 + $0x38] sm:$0xf]
      %v767 = vld [vmem:[%s751 + $0x3c] sm:$0xf]
      %v784 = vunpack.c.l.b16 %v752
      %v785 = vunpack.c.l.b16 %v753
      %v786 = vunpack.c.l.b16 %v754
      %v787 = vunpack.c.l.b16 %v755
      %v788 = vunpack.c.l.b16 %v756
      %v789 = vunpack.c.l.b16 %v757
      %v790 = vunpack.c.l.b16 %v758
      %v791 = vunpack.c.l.b16 %v759
      %v792 = vunpack.c.l.b16 %v760
      %v793 = vunpack.c.l.b16 %v761
      %v794 = vunpack.c.l.b16 %v762
      %v795 = vunpack.c.l.b16 %v763
      %v796 = vunpack.c.l.b16 %v764
      %v797 = vunpack.c.l.b16 %v765
      %v798 = vunpack.c.l.b16 %v766
      %v799 = vunpack.c.l.b16 %v767
      %v800 = vpack.c.b16 %v785, %v784
      %v801 = vpack.c.b16 %v787, %v786
      %v802 = vpack.c.b16 %v789, %v788
      %v803 = vpack.c.b16 %v791, %v790
      %v804 = vpack.c.b16 %v793, %v792
      %v805 = vpack.c.b16 %v795, %v794
      %v806 = vpack.c.b16 %v797, %v796
      %v807 = vpack.c.b16 %v799, %v798
      %816 = vmatprep.subr.bf16.mxu0 0
      %817 = vmatpush1.bf16.msra.mxu0 %v800
      %818 = vmatprep.subr.bf16.mxu0 0
      %819 = vmatpush1.bf16.msra.mxu0 %v801
      %820 = vmatprep.subr.bf16.mxu0 0
      %821 = vmatpush1.bf16.msra.mxu0 %v802
      %822 = vmatprep.subr.bf16.mxu0 0
      %823 = vmatpush1.bf16.msra.mxu0 %v803
      %824 = vmatprep.subr.bf16.mxu0 0
      %825 = vmatpush1.bf16.msra.mxu0 %v804
      %826 = vmatprep.subr.bf16.mxu0 0
      %827 = vmatpush1.bf16.msra.mxu0 %v805
      %828 = vmatprep.subr.bf16.mxu0 0
      %829 = vmatpush1.bf16.msra.mxu0 %v806
      %830 = vmatprep.subr.bf16.mxu0 0
      %831 = vmatpush1.bf16.msra.mxu0 %v807
      %832 = vmatprep.subr.bf16.mxu0 0
      %833 = vmatpush1.bf16.msra.mxu0 0
      %834 = vmatprep.subr.bf16.mxu0 0
      %835 = vmatpush1.bf16.msra.mxu0 0
      %836 = vmatprep.subr.bf16.mxu0 0
      %837 = vmatpush1.bf16.msra.mxu0 0
      %838 = vmatprep.subr.bf16.mxu0 0
      %839 = vmatpush1.bf16.msra.mxu0 0
      %840 = vmatprep.subr.bf16.mxu0 0
      %841 = vmatpush1.bf16.msra.mxu0 0
      %842 = vmatprep.subr.bf16.mxu0 0
      %843 = vmatpush1.bf16.msra.mxu0 0
      %844 = vmatprep.subr.bf16.mxu0 0
      %845 = vmatpush1.bf16.msra.mxu0 0
      %846 = vmatprep.subr.bf16.mxu0 0
      %847 = vmatpush1.bf16.msra.mxu0 0
      %848 = vmatprep.mubr.bf16.mxu0 0
      %849 = vmatmul.mubr.bf16.gmra.mrb[0].mxu0 %v747
      %v850 = vpop.f32.mrb[0].mxu0
      %v851 = vadd.f32 0.0, %v850
      %v852 = vpop.f32.mrb[0].mxu0
      %v853 = vpop.f32.mrb[0].mxu0
      %v854 = vadd.f32 0.0, %v853
      %v855 = vpop.f32.mrb[0].mxu0
      %856 = vmatprep.mubr.bf16.mxu0 0
      %857 = vmatmul.mubr.bf16.gmra.mrb[0].mxu0 %v748
      %v858 = vpop.f32.mrb[0].mxu0
      %v859 = vadd.f32 0.0, %v858
      %v860 = vpop.f32.mrb[0].mxu0
      %v861 = vpop.f32.mrb[0].mxu0
      %v862 = vadd.f32 0.0, %v861
      %v863 = vpop.f32.mrb[0].mxu0
      %864 = vmatprep.mubr.bf16.mxu0 0
      %865 = vmatmul.mubr.bf16.gmra.mrb[0].mxu0 %v749
      %v866 = vpop.f32.mrb[0].mxu0
      %v867 = vadd.f32 0.0, %v866
      %v868 = vpop.f32.mrb[0].mxu0
      %v869 = vpop.f32.mrb[0].mxu0
      %v870 = vadd.f32 0.0, %v869
      %v871 = vpop.f32.mrb[0].mxu0
      %872 = vmatprep.mubr.bf16.mxu0 0
      %873 = vmatmul.mubr.bf16.gmra.mrb[0].mxu0 %v750
      %v874 = vpop.f32.mrb[0].mxu0
      %v875 = vadd.f32 0.0, %v874
      %v876 = vpop.f32.mrb[0].mxu0
      %v877 = vpop.f32.mrb[0].mxu0
      %v878 = vadd.f32 0.0, %v877
      %v879 = vpop.f32.mrb[0].mxu0
      %880 = vdwg.mxu0
      %v881 = vadd.f32 %v722, %v851
      %v882 = vadd.f32 %v723, %v854
      %v883 = vadd.f32 %v724, %v859
      %v884 = vadd.f32 %v725, %v862
      %v885 = vadd.f32 %v726, %v867
      %v886 = vadd.f32 %v727, %v870
      %v887 = vadd.f32 %v728, %v875
      %v888 = vadd.f32 %v729, %v878
      %v889 = vld [vmem:[%s730] sm:$0xf]
      %v890 = vld [vmem:[%s730 + $0x4] sm:$0x1]
      %v891 = vld [vmem:[%s730 + $0x8] sm:$0xf]
      %v892 = vld [vmem:[%s730 + $0xc] sm:$0x1]
      %v893 = vld [vmem:[%s730 + $0x10] sm:$0xf]
      %v894 = vld [vmem:[%s730 + $0x14] sm:$0x1]
      %v895 = vld [vmem:[%s730 + $0x18] sm:$0xf]
      %v896 = vld [vmem:[%s730 + $0x1c] sm:$0x1]
      %v897 = vld [vmem:[%s730 + $0x20] sm:$0xf]
      %v898 = vld [vmem:[%s730 + $0x24] sm:$0x1]
      %v899 = vld [vmem:[%s730 + $0x28] sm:$0xf]
      %v900 = vld [vmem:[%s730 + $0x2c] sm:$0x1]
      %v901 = vld [vmem:[%s730 + $0x30] sm:$0xf]
      %v902 = vld [vmem:[%s730 + $0x34] sm:$0x1]
      %v903 = vld [vmem:[%s730 + $0x38] sm:$0xf]
      %v904 = vld [vmem:[%s730 + $0x3c] sm:$0x1]
      %v905 = vunpack.c.l.bf16 %v889
      %v906 = vunpack.c.l.bf16 %v890
      %v907 = vunpack.c.l.bf16 %v891
      %v908 = vunpack.c.l.bf16 %v892
      %v909 = vunpack.c.l.bf16 %v893
      %v910 = vunpack.c.l.bf16 %v894
      %v911 = vunpack.c.l.bf16 %v895
      %v912 = vunpack.c.l.bf16 %v896
      %v913 = vunpack.c.l.bf16 %v897
      %v914 = vunpack.c.l.bf16 %v898
      %v915 = vunpack.c.l.bf16 %v899
      %v916 = vunpack.c.l.bf16 %v900
      %v917 = vunpack.c.l.bf16 %v901
      %v918 = vunpack.c.l.bf16 %v902
      %v919 = vunpack.c.l.bf16 %v903
      %v920 = vunpack.c.l.bf16 %v904
      %v937 = vrot.slane %v905, 1
      %v938 = vrot.slane %v906, 1
      %v939 = vsel %vm251, %v937, %v938
      %v940 = vrot.slane %v907, 1
      %v941 = vrot.slane %v908, 1
      %v942 = vsel %vm251, %v940, %v941
      %v943 = vrot.slane %v909, 1
      %v944 = vrot.slane %v910, 1
      %v945 = vsel %vm251, %v943, %v944
      %v946 = vrot.slane %v911, 1
      %v947 = vrot.slane %v912, 1
      %v948 = vsel %vm251, %v946, %v947
      %v949 = vrot.slane %v913, 1
      %v950 = vrot.slane %v914, 1
      %v951 = vsel %vm251, %v949, %v950
      %v952 = vrot.slane %v915, 1
      %v953 = vrot.slane %v916, 1
      %v954 = vsel %vm251, %v952, %v953
      %v955 = vrot.slane %v917, 1
      %v956 = vrot.slane %v918, 1
      %v957 = vsel %vm251, %v955, %v956
      %v958 = vrot.slane %v919, 1
      %v959 = vrot.slane %v920, 1
      %v960 = vsel %vm251, %v958, %v959
      %v969 = vpack.c.bf16 %v942, %v939
      %v970 = vpack.c.bf16 %v948, %v945
      %v971 = vpack.c.bf16 %v954, %v951
      %v972 = vpack.c.bf16 %v960, %v957
      %s973 = scalar_lea.vmem %s1, 256
      %v974 = vld [vmem:[%s973] sm:$0xf]
      %v975 = vld [vmem:[%s973 + $0x4] sm:$0xf]
      %v976 = vld [vmem:[%s973 + $0x8] sm:$0xf]
      %v977 = vld [vmem:[%s973 + $0xc] sm:$0xf]
      %v978 = vld [vmem:[%s973 + $0x10] sm:$0xf]
      %v979 = vld [vmem:[%s973 + $0x14] sm:$0xf]
      %v980 = vld [vmem:[%s973 + $0x18] sm:$0xf]
      %v981 = vld [vmem:[%s973 + $0x1c] sm:$0xf]
      %v982 = vld [vmem:[%s973 + $0x20] sm:$0xf]
      %v983 = vld [vmem:[%s973 + $0x24] sm:$0xf]
      %v984 = vld [vmem:[%s973 + $0x28] sm:$0xf]
      %v985 = vld [vmem:[%s973 + $0x2c] sm:$0xf]
      %v986 = vld [vmem:[%s973 + $0x30] sm:$0xf]
      %v987 = vld [vmem:[%s973 + $0x34] sm:$0xf]
      %v988 = vld [vmem:[%s973 + $0x38] sm:$0xf]
      %v989 = vld [vmem:[%s973 + $0x3c] sm:$0xf]
      %v1006 = vunpack.c.l.b16 %v974
      %v1007 = vunpack.c.l.b16 %v975
      %v1008 = vunpack.c.l.b16 %v976
      %v1009 = vunpack.c.l.b16 %v977
      %v1010 = vunpack.c.l.b16 %v978
      %v1011 = vunpack.c.l.b16 %v979
      %v1012 = vunpack.c.l.b16 %v980
      %v1013 = vunpack.c.l.b16 %v981
      %v1014 = vunpack.c.l.b16 %v982
      %v1015 = vunpack.c.l.b16 %v983
      %v1016 = vunpack.c.l.b16 %v984
      %v1017 = vunpack.c.l.b16 %v985
      %v1018 = vunpack.c.l.b16 %v986
      %v1019 = vunpack.c.l.b16 %v987
      %v1020 = vunpack.c.l.b16 %v988
      %v1021 = vunpack.c.l.b16 %v989
      %v1022 = vpack.c.b16 %v1007, %v1006
      %v1023 = vpack.c.b16 %v1009, %v1008
      %v1024 = vpack.c.b16 %v1011, %v1010
      %v1025 = vpack.c.b16 %v1013, %v1012
      %v1026 = vpack.c.b16 %v1015, %v1014
      %v1027 = vpack.c.b16 %v1017, %v1016
      %v1028 = vpack.c.b16 %v1019, %v1018
      %v1029 = vpack.c.b16 %v1021, %v1020
      %1038 = vmatprep.subr.bf16.mxu0 0
      %1039 = vmatpush1.bf16.msra.mxu0 %v1022
      %1040 = vmatprep.subr.bf16.mxu0 0
      %1041 = vmatpush1.bf16.msra.mxu0 %v1023
      %1042 = vmatprep.subr.bf16.mxu0 0
      %1043 = vmatpush1.bf16.msra.mxu0 %v1024
      %1044 = vmatprep.subr.bf16.mxu0 0
      %1045 = vmatpush1.bf16.msra.mxu0 %v1025
      %1046 = vmatprep.subr.bf16.mxu0 0
      %1047 = vmatpush1.bf16.msra.mxu0 %v1026
      %1048 = vmatprep.subr.bf16.mxu0 0
      %1049 = vmatpush1.bf16.msra.mxu0 %v1027
      %1050 = vmatprep.subr.bf16.mxu0 0
      %1051 = vmatpush1.bf16.msra.mxu0 %v1028
      %1052 = vmatprep.subr.bf16.mxu0 0
      %1053 = vmatpush1.bf16.msra.mxu0 %v1029
      %1054 = vmatprep.subr.bf16.mxu0 0
      %1055 = vmatpush1.bf16.msra.mxu0 0
      %1056 = vmatprep.subr.bf16.mxu0 0
      %1057 = vmatpush1.bf16.msra.mxu0 0
      %1058 = vmatprep.subr.bf16.mxu0 0
      %1059 = vmatpush1.bf16.msra.mxu0 0
      %1060 = vmatprep.subr.bf16.mxu0 0
      %1061 = vmatpush1.bf16.msra.mxu0 0
      %1062 = vmatprep.subr.bf16.mxu0 0
      %1063 = vmatpush1.bf16.msra.mxu0 0
      %1064 = vmatprep.subr.bf16.mxu0 0
      %1065 = vmatpush1.bf16.msra.mxu0 0
      %1066 = vmatprep.subr.bf16.mxu0 0
      %1067 = vmatpush1.bf16.msra.mxu0 0
      %1068 = vmatprep.subr.bf16.mxu0 0
      %1069 = vmatpush1.bf16.msra.mxu0 0
      %1070 = vmatprep.mubr.bf16.mxu0 0
      %1071 = vmatmul.mubr.bf16.gmra.mrb[0].mxu0 %v969
      %v1072 = vpop.f32.mrb[0].mxu0
      %v1073 = vadd.f32 0.0, %v1072
      %v1074 = vpop.f32.mrb[0].mxu0
      %v1075 = vpop.f32.mrb[0].mxu0
      %v1076 = vadd.f32 0.0, %v1075
      %v1077 = vpop.f32.mrb[0].mxu0
      %1078 = vmatprep.mubr.bf16.mxu0 0
      %1079 = vmatmul.mubr.bf16.gmra.mrb[0].mxu0 %v970
      %v1080 = vpop.f32.mrb[0].mxu0
      %v1081 = vadd.f32 0.0, %v1080
      %v1082 = vpop.f32.mrb[0].mxu0
      %v1083 = vpop.f32.mrb[0].mxu0
      %v1084 = vadd.f32 0.0, %v1083
      %v1085 = vpop.f32.mrb[0].mxu0
      %1086 = vmatprep.mubr.bf16.mxu0 0
      %1087 = vmatmul.mubr.bf16.gmra.mrb[0].mxu0 %v971
      %v1088 = vpop.f32.mrb[0].mxu0
      %v1089 = vadd.f32 0.0, %v1088
      %v1090 = vpop.f32.mrb[0].mxu0
      %v1091 = vpop.f32.mrb[0].mxu0
      %v1092 = vadd.f32 0.0, %v1091
      %v1093 = vpop.f32.mrb[0].mxu0
      %1094 = vmatprep.mubr.bf16.mxu0 0
      %1095 = vmatmul.mubr.bf16.gmra.mrb[0].mxu0 %v972
      %v1096 = vpop.f32.mrb[0].mxu0
      %v1097 = vadd.f32 0.0, %v1096
      %v1098 = vpop.f32.mrb[0].mxu0
      %v1099 = vpop.f32.mrb[0].mxu0
      %v1100 = vadd.f32 0.0, %v1099
      %v1101 = vpop.f32.mrb[0].mxu0
      %1102 = vdwg.mxu0
      %v1103 = vadd.f32 %v881, %v1073
      %v1104 = vadd.f32 %v882, %v1076
      %v1105 = vadd.f32 %v883, %v1081
      %v1106 = vadd.f32 %v884, %v1084
      %v1107 = vadd.f32 %v885, %v1089
      %v1108 = vadd.f32 %v886, %v1092
      %v1109 = vadd.f32 %v887, %v1097
      %v1110 = vadd.f32 %v888, %v1100
      %v1111 = vld [vmem:[%s730] sm:$0xe]
      %v1112 = vld [vmem:[%s730 + $0x8] sm:$0xe]
      %v1113 = vld [vmem:[%s730 + $0x10] sm:$0xe]
      %v1114 = vld [vmem:[%s730 + $0x18] sm:$0xe]
      %v1115 = vld [vmem:[%s730 + $0x20] sm:$0xe]
      %v1116 = vld [vmem:[%s730 + $0x28] sm:$0xe]
      %v1117 = vld [vmem:[%s730 + $0x30] sm:$0xe]
      %v1118 = vld [vmem:[%s730 + $0x38] sm:$0xe]
      %v1119 = vunpack.c.l.bf16 %v1111
      %v1120 = vunpack.c.l.bf16 %v1112
      %v1121 = vunpack.c.l.bf16 %v1113
      %v1122 = vunpack.c.l.bf16 %v1114
      %v1123 = vunpack.c.l.bf16 %v1115
      %v1124 = vunpack.c.l.bf16 %v1116
      %v1125 = vunpack.c.l.bf16 %v1117
      %v1126 = vunpack.c.l.bf16 %v1118
      %v1135 = vrot.slane %v1119, 2
      %v1136 = vrot.slane %v906, 2
      %v1137 = vsel %vm555, %v1135, %v1136
      %v1138 = vrot.slane %v1120, 2
      %v1139 = vrot.slane %v908, 2
      %v1140 = vsel %vm555, %v1138, %v1139
      %v1141 = vrot.slane %v1121, 2
      %v1142 = vrot.slane %v910, 2
      %v1143 = vsel %vm555, %v1141, %v1142
      %v1144 = vrot.slane %v1122, 2
      %v1145 = vrot.slane %v912, 2
      %v1146 = vsel %vm555, %v1144, %v1145
      %v1147 = vrot.slane %v1123, 2
      %v1148 = vrot.slane %v914, 2
      %v1149 = vsel %vm555, %v1147, %v1148
      %v1150 = vrot.slane %v1124, 2
      %v1151 = vrot.slane %v916, 2
      %v1152 = vsel %vm555, %v1150, %v1151
      %v1153 = vrot.slane %v1125, 2
      %v1154 = vrot.slane %v918, 2
      %v1155 = vsel %vm555, %v1153, %v1154
      %v1156 = vrot.slane %v1126, 2
      %v1157 = vrot.slane %v920, 2
      %v1158 = vsel %vm555, %v1156, %v1157
      %v1167 = vpack.c.bf16 %v1140, %v1137
      %v1168 = vpack.c.bf16 %v1146, %v1143
      %v1169 = vpack.c.bf16 %v1152, %v1149
      %v1170 = vpack.c.bf16 %v1158, %v1155
      %s1171 = scalar_lea.vmem %s1, 320
      %v1172 = vld [vmem:[%s1171] sm:$0xf]
      %v1173 = vld [vmem:[%s1171 + $0x4] sm:$0xf]
      %v1174 = vld [vmem:[%s1171 + $0x8] sm:$0xf]
      %v1175 = vld [vmem:[%s1171 + $0xc] sm:$0xf]
      %v1176 = vld [vmem:[%s1171 + $0x10] sm:$0xf]
      %v1177 = vld [vmem:[%s1171 + $0x14] sm:$0xf]
      %v1178 = vld [vmem:[%s1171 + $0x18] sm:$0xf]
      %v1179 = vld [vmem:[%s1171 + $0x1c] sm:$0xf]
      %v1180 = vld [vmem:[%s1171 + $0x20] sm:$0xf]
      %v1181 = vld [vmem:[%s1171 + $0x24] sm:$0xf]
      %v1182 = vld [vmem:[%s1171 + $0x28] sm:$0xf]
      %v1183 = vld [vmem:[%s1171 + $0x2c] sm:$0xf]
      %v1184 = vld [vmem:[%s1171 + $0x30] sm:$0xf]
      %v1185 = vld [vmem:[%s1171 + $0x34] sm:$0xf]
      %v1186 = vld [vmem:[%s1171 + $0x38] sm:$0xf]
      %v1187 = vld [vmem:[%s1171 + $0x3c] sm:$0xf]
      %v1204 = vunpack.c.l.b16 %v1172
      %v1205 = vunpack.c.l.b16 %v1173
      %v1206 = vunpack.c.l.b16 %v1174
      %v1207 = vunpack.c.l.b16 %v1175
      %v1208 = vunpack.c.l.b16 %v1176
      %v1209 = vunpack.c.l.b16 %v1177
      %v1210 = vunpack.c.l.b16 %v1178
      %v1211 = vunpack.c.l.b16 %v1179
      %v1212 = vunpack.c.l.b16 %v1180
      %v1213 = vunpack.c.l.b16 %v1181
      %v1214 = vunpack.c.l.b16 %v1182
      %v1215 = vunpack.c.l.b16 %v1183
      %v1216 = vunpack.c.l.b16 %v1184
      %v1217 = vunpack.c.l.b16 %v1185
      %v1218 = vunpack.c.l.b16 %v1186
      %v1219 = vunpack.c.l.b16 %v1187
      %v1220 = vpack.c.b16 %v1205, %v1204
      %v1221 = vpack.c.b16 %v1207, %v1206
      %v1222 = vpack.c.b16 %v1209, %v1208
      %v1223 = vpack.c.b16 %v1211, %v1210
      %v1224 = vpack.c.b16 %v1213, %v1212
      %v1225 = vpack.c.b16 %v1215, %v1214
      %v1226 = vpack.c.b16 %v1217, %v1216
      %v1227 = vpack.c.b16 %v1219, %v1218
      %1236 = vmatprep.subr.bf16.mxu0 0
      %1237 = vmatpush1.bf16.msra.mxu0 %v1220
      %1238 = vmatprep.subr.bf16.mxu0 0
      %1239 = vmatpush1.bf16.msra.mxu0 %v1221
      %1240 = vmatprep.subr.bf16.mxu0 0
      %1241 = vmatpush1.bf16.msra.mxu0 %v1222
      %1242 = vmatprep.subr.bf16.mxu0 0
      %1243 = vmatpush1.bf16.msra.mxu0 %v1223
      %1244 = vmatprep.subr.bf16.mxu0 0
      %1245 = vmatpush1.bf16.msra.mxu0 %v1224
      %1246 = vmatprep.subr.bf16.mxu0 0
      %1247 = vmatpush1.bf16.msra.mxu0 %v1225
      %1248 = vmatprep.subr.bf16.mxu0 0
      %1249 = vmatpush1.bf16.msra.mxu0 %v1226
      %1250 = vmatprep.subr.bf16.mxu0 0
      %1251 = vmatpush1.bf16.msra.mxu0 %v1227
      %1252 = vmatprep.subr.bf16.mxu0 0
      %1253 = vmatpush1.bf16.msra.mxu0 0
      %1254 = vmatprep.subr.bf16.mxu0 0
      %1255 = vmatpush1.bf16.msra.mxu0 0
      %1256 = vmatprep.subr.bf16.mxu0 0
      %1257 = vmatpush1.bf16.msra.mxu0 0
      %1258 = vmatprep.subr.bf16.mxu0 0
      %1259 = vmatpush1.bf16.msra.mxu0 0
      %1260 = vmatprep.subr.bf16.mxu0 0
      %1261 = vmatpush1.bf16.msra.mxu0 0
      %1262 = vmatprep.subr.bf16.mxu0 0
      %1263 = vmatpush1.bf16.msra.mxu0 0
      %1264 = vmatprep.subr.bf16.mxu0 0
      %1265 = vmatpush1.bf16.msra.mxu0 0
      %1266 = vmatprep.subr.bf16.mxu0 0
      %1267 = vmatpush1.bf16.msra.mxu0 0
      %1268 = vmatprep.mubr.bf16.mxu0 0
      %1269 = vmatmul.mubr.bf16.gmra.mrb[0].mxu0 %v1167
      %v1270 = vpop.f32.mrb[0].mxu0
      %v1271 = vadd.f32 0.0, %v1270
      %v1272 = vpop.f32.mrb[0].mxu0
      %v1273 = vpop.f32.mrb[0].mxu0
      %v1274 = vadd.f32 0.0, %v1273
      %v1275 = vpop.f32.mrb[0].mxu0
      %1276 = vmatprep.mubr.bf16.mxu0 0
      %1277 = vmatmul.mubr.bf16.gmra.mrb[0].mxu0 %v1168
      %v1278 = vpop.f32.mrb[0].mxu0
      %v1279 = vadd.f32 0.0, %v1278
      %v1280 = vpop.f32.mrb[0].mxu0
      %v1281 = vpop.f32.mrb[0].mxu0
      %v1282 = vadd.f32 0.0, %v1281
      %v1283 = vpop.f32.mrb[0].mxu0
      %1284 = vmatprep.mubr.bf16.mxu0 0
      %1285 = vmatmul.mubr.bf16.gmra.mrb[0].mxu0 %v1169
      %v1286 = vpop.f32.mrb[0].mxu0
      %v1287 = vadd.f32 0.0, %v1286
      %v1288 = vpop.f32.mrb[0].mxu0
      %v1289 = vpop.f32.mrb[0].mxu0
      %v1290 = vadd.f32 0.0, %v1289
      %v1291 = vpop.f32.mrb[0].mxu0
      %1292 = vmatprep.mubr.bf16.mxu0 0
      %1293 = vmatmul.mubr.bf16.gmra.mrb[0].mxu0 %v1170
      %v1294 = vpop.f32.mrb[0].mxu0
      %v1295 = vadd.f32 0.0, %v1294
      %v1296 = vpop.f32.mrb[0].mxu0
      %v1297 = vpop.f32.mrb[0].mxu0
      %v1298 = vadd.f32 0.0, %v1297
      %v1299 = vpop.f32.mrb[0].mxu0
      %1300 = vdwg.mxu0
      %v1301 = vadd.f32 %v1103, %v1271
      %v1302 = vadd.f32 %v1104, %v1274
      %v1303 = vadd.f32 %v1105, %v1279
      %v1304 = vadd.f32 %v1106, %v1282
      %v1305 = vadd.f32 %v1107, %v1287
      %v1306 = vadd.f32 %v1108, %v1290
      %v1307 = vadd.f32 %v1109, %v1295
      %v1308 = vadd.f32 %v1110, %v1298
      %s1309 = scalar_lea.vmem %s172, 16
      %v1310 = vld [vmem:[%s1309] sm:$0xf]
      %v1311 = vld [vmem:[%s1309 + $0x8] sm:$0xf]
      %v1312 = vld [vmem:[%s1309 + $0x10] sm:$0xf]
      %v1313 = vld [vmem:[%s1309 + $0x18] sm:$0xf]
      %v1314 = vld [vmem:[%s1309 + $0x20] sm:$0xf]
      %v1315 = vld [vmem:[%s1309 + $0x28] sm:$0xf]
      %v1316 = vld [vmem:[%s1309 + $0x30] sm:$0xf]
      %v1317 = vld [vmem:[%s1309 + $0x38] sm:$0xf]
      %v1318 = vunpack.c.l.bf16 %v1310
      %v1319 = vunpack.c.l.bf16 %v1311
      %v1320 = vunpack.c.l.bf16 %v1312
      %v1321 = vunpack.c.l.bf16 %v1313
      %v1322 = vunpack.c.l.bf16 %v1314
      %v1323 = vunpack.c.l.bf16 %v1315
      %v1324 = vunpack.c.l.bf16 %v1316
      %v1325 = vunpack.c.l.bf16 %v1317
      %v1326 = vpack.c.bf16 %v1319, %v1318
      %v1327 = vpack.c.bf16 %v1321, %v1320
      %v1328 = vpack.c.bf16 %v1323, %v1322
      %v1329 = vpack.c.bf16 %v1325, %v1324
      %s1330 = scalar_lea.vmem %s1, 384
      %v1331 = vld [vmem:[%s1330] sm:$0xf]
      %v1332 = vld [vmem:[%s1330 + $0x4] sm:$0xf]
      %v1333 = vld [vmem:[%s1330 + $0x8] sm:$0xf]
      %v1334 = vld [vmem:[%s1330 + $0xc] sm:$0xf]
      %v1335 = vld [vmem:[%s1330 + $0x10] sm:$0xf]
      %v1336 = vld [vmem:[%s1330 + $0x14] sm:$0xf]
      %v1337 = vld [vmem:[%s1330 + $0x18] sm:$0xf]
      %v1338 = vld [vmem:[%s1330 + $0x1c] sm:$0xf]
      %v1339 = vld [vmem:[%s1330 + $0x20] sm:$0xf]
      %v1340 = vld [vmem:[%s1330 + $0x24] sm:$0xf]
      %v1341 = vld [vmem:[%s1330 + $0x28] sm:$0xf]
      %v1342 = vld [vmem:[%s1330 + $0x2c] sm:$0xf]
      %v1343 = vld [vmem:[%s1330 + $0x30] sm:$0xf]
      %v1344 = vld [vmem:[%s1330 + $0x34] sm:$0xf]
      %v1345 = vld [vmem:[%s1330 + $0x38] sm:$0xf]
      %v1346 = vld [vmem:[%s1330 + $0x3c] sm:$0xf]
      %v1363 = vunpack.c.l.b16 %v1331
      %v1364 = vunpack.c.l.b16 %v1332
      %v1365 = vunpack.c.l.b16 %v1333
      %v1366 = vunpack.c.l.b16 %v1334
      %v1367 = vunpack.c.l.b16 %v1335
      %v1368 = vunpack.c.l.b16 %v1336
      %v1369 = vunpack.c.l.b16 %v1337
      %v1370 = vunpack.c.l.b16 %v1338
      %v1371 = vunpack.c.l.b16 %v1339
      %v1372 = vunpack.c.l.b16 %v1340
      %v1373 = vunpack.c.l.b16 %v1341
      %v1374 = vunpack.c.l.b16 %v1342
      %v1375 = vunpack.c.l.b16 %v1343
      %v1376 = vunpack.c.l.b16 %v1344
      %v1377 = vunpack.c.l.b16 %v1345
      %v1378 = vunpack.c.l.b16 %v1346
      %v1379 = vpack.c.b16 %v1364, %v1363
      %v1380 = vpack.c.b16 %v1366, %v1365
      %v1381 = vpack.c.b16 %v1368, %v1367
      %v1382 = vpack.c.b16 %v1370, %v1369
      %v1383 = vpack.c.b16 %v1372, %v1371
      %v1384 = vpack.c.b16 %v1374, %v1373
      %v1385 = vpack.c.b16 %v1376, %v1375
      %v1386 = vpack.c.b16 %v1378, %v1377
      %1395 = vmatprep.subr.bf16.mxu0 0
      %1396 = vmatpush1.bf16.msra.mxu0 %v1379
      %1397 = vmatprep.subr.bf16.mxu0 0
      %1398 = vmatpush1.bf16.msra.mxu0 %v1380
      %1399 = vmatprep.subr.bf16.mxu0 0
      %1400 = vmatpush1.bf16.msra.mxu0 %v1381
      %1401 = vmatprep.subr.bf16.mxu0 0
      %1402 = vmatpush1.bf16.msra.mxu0 %v1382
      %1403 = vmatprep.subr.bf16.mxu0 0
      %1404 = vmatpush1.bf16.msra.mxu0 %v1383
      %1405 = vmatprep.subr.bf16.mxu0 0
      %1406 = vmatpush1.bf16.msra.mxu0 %v1384
      %1407 = vmatprep.subr.bf16.mxu0 0
      %1408 = vmatpush1.bf16.msra.mxu0 %v1385
      %1409 = vmatprep.subr.bf16.mxu0 0
      %1410 = vmatpush1.bf16.msra.mxu0 %v1386
      %1411 = vmatprep.subr.bf16.mxu0 0
      %1412 = vmatpush1.bf16.msra.mxu0 0
      %1413 = vmatprep.subr.bf16.mxu0 0
      %1414 = vmatpush1.bf16.msra.mxu0 0
      %1415 = vmatprep.subr.bf16.mxu0 0
      %1416 = vmatpush1.bf16.msra.mxu0 0
      %1417 = vmatprep.subr.bf16.mxu0 0
      %1418 = vmatpush1.bf16.msra.mxu0 0
      %1419 = vmatprep.subr.bf16.mxu0 0
      %1420 = vmatpush1.bf16.msra.mxu0 0
      %1421 = vmatprep.subr.bf16.mxu0 0
      %1422 = vmatpush1.bf16.msra.mxu0 0
      %1423 = vmatprep.subr.bf16.mxu0 0
      %1424 = vmatpush1.bf16.msra.mxu0 0
      %1425 = vmatprep.subr.bf16.mxu0 0
      %1426 = vmatpush1.bf16.msra.mxu0 0
      %1427 = vmatprep.mubr.bf16.mxu0 0
      %1428 = vmatmul.mubr.bf16.gmra.mrb[0].mxu0 %v1326
      %v1429 = vpop.f32.mrb[0].mxu0
      %v1430 = vadd.f32 0.0, %v1429
      %v1431 = vpop.f32.mrb[0].mxu0
      %v1432 = vpop.f32.mrb[0].mxu0
      %v1433 = vadd.f32 0.0, %v1432
      %v1434 = vpop.f32.mrb[0].mxu0
      %1435 = vmatprep.mubr.bf16.mxu0 0
      %1436 = vmatmul.mubr.bf16.gmra.mrb[0].mxu0 %v1327
      %v1437 = vpop.f32.mrb[0].mxu0
      %v1438 = vadd.f32 0.0, %v1437
      %v1439 = vpop.f32.mrb[0].mxu0
      %v1440 = vpop.f32.mrb[0].mxu0
      %v1441 = vadd.f32 0.0, %v1440
      %v1442 = vpop.f32.mrb[0].mxu0
      %1443 = vmatprep.mubr.bf16.mxu0 0
      %1444 = vmatmul.mubr.bf16.gmra.mrb[0].mxu0 %v1328
      %v1445 = vpop.f32.mrb[0].mxu0
      %v1446 = vadd.f32 0.0, %v1445
      %v1447 = vpop.f32.mrb[0].mxu0
      %v1448 = vpop.f32.mrb[0].mxu0
      %v1449 = vadd.f32 0.0, %v1448
      %v1450 = vpop.f32.mrb[0].mxu0
      %1451 = vmatprep.mubr.bf16.mxu0 0
      %1452 = vmatmul.mubr.bf16.gmra.mrb[0].mxu0 %v1329
      %v1453 = vpop.f32.mrb[0].mxu0
      %v1454 = vadd.f32 0.0, %v1453
      %v1455 = vpop.f32.mrb[0].mxu0
      %v1456 = vpop.f32.mrb[0].mxu0
      %v1457 = vadd.f32 0.0, %v1456
      %v1458 = vpop.f32.mrb[0].mxu0
      %1459 = vdwg.mxu0
      %v1460 = vadd.f32 %v1301, %v1430
      %v1461 = vadd.f32 %v1302, %v1433
      %v1462 = vadd.f32 %v1303, %v1438
      %v1463 = vadd.f32 %v1304, %v1441
      %v1464 = vadd.f32 %v1305, %v1446
      %v1465 = vadd.f32 %v1306, %v1449
      %v1466 = vadd.f32 %v1307, %v1454
      %v1467 = vadd.f32 %v1308, %v1457
      %v1468 = vld [vmem:[%s1309] sm:$0xf]
      %v1469 = vld [vmem:[%s1309 + $0x4] sm:$0x1]
      %v1470 = vld [vmem:[%s1309 + $0x8] sm:$0xf]
      %v1471 = vld [vmem:[%s1309 + $0xc] sm:$0x1]
      %v1472 = vld [vmem:[%s1309 + $0x10] sm:$0xf]
      %v1473 = vld [vmem:[%s1309 + $0x14] sm:$0x1]
      %v1474 = vld [vmem:[%s1309 + $0x18] sm:$0xf]
      %v1475 = vld [vmem:[%s1309 + $0x1c] sm:$0x1]
      %v1476 = vld [vmem:[%s1309 + $0x20] sm:$0xf]
      %v1477 = vld [vmem:[%s1309 + $0x24] sm:$0x1]
      %v1478 = vld [vmem:[%s1309 + $0x28] sm:$0xf]
      %v1479 = vld [vmem:[%s1309 + $0x2c] sm:$0x1]
      %v1480 = vld [vmem:[%s1309 + $0x30] sm:$0xf]
      %v1481 = vld [vmem:[%s1309 + $0x34] sm:$0x1]
      %v1482 = vld [vmem:[%s1309 + $0x38] sm:$0xf]
      %v1483 = vld [vmem:[%s1309 + $0x3c] sm:$0x1]
      %v1484 = vunpack.c.l.bf16 %v1468
      %v1485 = vunpack.c.l.bf16 %v1469
      %v1486 = vunpack.c.l.bf16 %v1470
      %v1487 = vunpack.c.l.bf16 %v1471
      %v1488 = vunpack.c.l.bf16 %v1472
      %v1489 = vunpack.c.l.bf16 %v1473
      %v1490 = vunpack.c.l.bf16 %v1474
      %v1491 = vunpack.c.l.bf16 %v1475
      %v1492 = vunpack.c.l.bf16 %v1476
      %v1493 = vunpack.c.l.bf16 %v1477
      %v1494 = vunpack.c.l.bf16 %v1478
      %v1495 = vunpack.c.l.bf16 %v1479
      %v1496 = vunpack.c.l.bf16 %v1480
      %v1497 = vunpack.c.l.bf16 %v1481
      %v1498 = vunpack.c.l.bf16 %v1482
      %v1499 = vunpack.c.l.bf16 %v1483
      %v1516 = vrot.slane %v1484, 1
      %v1517 = vrot.slane %v1485, 1
      %v1518 = vsel %vm251, %v1516, %v1517
      %v1519 = vrot.slane %v1486, 1
      %v1520 = vrot.slane %v1487, 1
      %v1521 = vsel %vm251, %v1519, %v1520
      %v1522 = vrot.slane %v1488, 1
      %v1523 = vrot.slane %v1489, 1
      %v1524 = vsel %vm251, %v1522, %v1523
      %v1525 = vrot.slane %v1490, 1
      %v1526 = vrot.slane %v1491, 1
      %v1527 = vsel %vm251, %v1525, %v1526
      %v1528 = vrot.slane %v1492, 1
      %v1529 = vrot.slane %v1493, 1
      %v1530 = vsel %vm251, %v1528, %v1529
      %v1531 = vrot.slane %v1494, 1
      %v1532 = vrot.slane %v1495, 1
      %v1533 = vsel %vm251, %v1531, %v1532
      %v1534 = vrot.slane %v1496, 1
      %v1535 = vrot.slane %v1497, 1
      %v1536 = vsel %vm251, %v1534, %v1535
      %v1537 = vrot.slane %v1498, 1
      %v1538 = vrot.slane %v1499, 1
      %v1539 = vsel %vm251, %v1537, %v1538
      %v1548 = vpack.c.bf16 %v1521, %v1518
      %v1549 = vpack.c.bf16 %v1527, %v1524
      %v1550 = vpack.c.bf16 %v1533, %v1530
      %v1551 = vpack.c.bf16 %v1539, %v1536
      %s1552 = scalar_lea.vmem %s1, 448
      %v1553 = vld [vmem:[%s1552] sm:$0xf]
      %v1554 = vld [vmem:[%s1552 + $0x4] sm:$0xf]
      %v1555 = vld [vmem:[%s1552 + $0x8] sm:$0xf]
      %v1556 = vld [vmem:[%s1552 + $0xc] sm:$0xf]
      %v1557 = vld [vmem:[%s1552 + $0x10] sm:$0xf]
      %v1558 = vld [vmem:[%s1552 + $0x14] sm:$0xf]
      %v1559 = vld [vmem:[%s1552 + $0x18] sm:$0xf]
      %v1560 = vld [vmem:[%s1552 + $0x1c] sm:$0xf]
      %v1561 = vld [vmem:[%s1552 + $0x20] sm:$0xf]
      %v1562 = vld [vmem:[%s1552 + $0x24] sm:$0xf]
      %v1563 = vld [vmem:[%s1552 + $0x28] sm:$0xf]
      %v1564 = vld [vmem:[%s1552 + $0x2c] sm:$0xf]
      %v1565 = vld [vmem:[%s1552 + $0x30] sm:$0xf]
      %v1566 = vld [vmem:[%s1552 + $0x34] sm:$0xf]
      %v1567 = vld [vmem:[%s1552 + $0x38] sm:$0xf]
      %v1568 = vld [vmem:[%s1552 + $0x3c] sm:$0xf]
      %v1585 = vunpack.c.l.b16 %v1553
      %v1586 = vunpack.c.l.b16 %v1554
      %v1587 = vunpack.c.l.b16 %v1555
      %v1588 = vunpack.c.l.b16 %v1556
      %v1589 = vunpack.c.l.b16 %v1557
      %v1590 = vunpack.c.l.b16 %v1558
      %v1591 = vunpack.c.l.b16 %v1559
      %v1592 = vunpack.c.l.b16 %v1560
      %v1593 = vunpack.c.l.b16 %v1561
      %v1594 = vunpack.c.l.b16 %v1562
      %v1595 = vunpack.c.l.b16 %v1563
      %v1596 = vunpack.c.l.b16 %v1564
      %v1597 = vunpack.c.l.b16 %v1565
      %v1598 = vunpack.c.l.b16 %v1566
      %v1599 = vunpack.c.l.b16 %v1567
      %v1600 = vunpack.c.l.b16 %v1568
      %v1601 = vpack.c.b16 %v1586, %v1585
      %v1602 = vpack.c.b16 %v1588, %v1587
      %v1603 = vpack.c.b16 %v1590, %v1589
      %v1604 = vpack.c.b16 %v1592, %v1591
      %v1605 = vpack.c.b16 %v1594, %v1593
      %v1606 = vpack.c.b16 %v1596, %v1595
      %v1607 = vpack.c.b16 %v1598, %v1597
      %v1608 = vpack.c.b16 %v1600, %v1599
      %1617 = vmatprep.subr.bf16.mxu0 0
      %1618 = vmatpush1.bf16.msra.mxu0 %v1601
      %1619 = vmatprep.subr.bf16.mxu0 0
      %1620 = vmatpush1.bf16.msra.mxu0 %v1602
      %1621 = vmatprep.subr.bf16.mxu0 0
      %1622 = vmatpush1.bf16.msra.mxu0 %v1603
      %1623 = vmatprep.subr.bf16.mxu0 0
      %1624 = vmatpush1.bf16.msra.mxu0 %v1604
      %1625 = vmatprep.subr.bf16.mxu0 0
      %1626 = vmatpush1.bf16.msra.mxu0 %v1605
      %1627 = vmatprep.subr.bf16.mxu0 0
      %1628 = vmatpush1.bf16.msra.mxu0 %v1606
      %1629 = vmatprep.subr.bf16.mxu0 0
      %1630 = vmatpush1.bf16.msra.mxu0 %v1607
      %1631 = vmatprep.subr.bf16.mxu0 0
      %1632 = vmatpush1.bf16.msra.mxu0 %v1608
      %1633 = vmatprep.subr.bf16.mxu0 0
      %1634 = vmatpush1.bf16.msra.mxu0 0
      %1635 = vmatprep.subr.bf16.mxu0 0
      %1636 = vmatpush1.bf16.msra.mxu0 0
      %1637 = vmatprep.subr.bf16.mxu0 0
      %1638 = vmatpush1.bf16.msra.mxu0 0
      %1639 = vmatprep.subr.bf16.mxu0 0
      %1640 = vmatpush1.bf16.msra.mxu0 0
      %1641 = vmatprep.subr.bf16.mxu0 0
      %1642 = vmatpush1.bf16.msra.mxu0 0
      %1643 = vmatprep.subr.bf16.mxu0 0
      %1644 = vmatpush1.bf16.msra.mxu0 0
      %1645 = vmatprep.subr.bf16.mxu0 0
      %1646 = vmatpush1.bf16.msra.mxu0 0
      %1647 = vmatprep.subr.bf16.mxu0 0
      %1648 = vmatpush1.bf16.msra.mxu0 0
      %1649 = vmatprep.mubr.bf16.mxu0 0
      %1650 = vmatmul.mubr.bf16.gmra.mrb[0].mxu0 %v1548
      %v1651 = vpop.f32.mrb[0].mxu0
      %v1652 = vadd.f32 0.0, %v1651
      %v1653 = vpop.f32.mrb[0].mxu0
      %v1654 = vpop.f32.mrb[0].mxu0
      %v1655 = vadd.f32 0.0, %v1654
      %v1656 = vpop.f32.mrb[0].mxu0
      %1657 = vmatprep.mubr.bf16.mxu0 0
      %1658 = vmatmul.mubr.bf16.gmra.mrb[0].mxu0 %v1549
      %v1659 = vpop.f32.mrb[0].mxu0
      %v1660 = vadd.f32 0.0, %v1659
      %v1661 = vpop.f32.mrb[0].mxu0
      %v1662 = vpop.f32.mrb[0].mxu0
      %v1663 = vadd.f32 0.0, %v1662
      %v1664 = vpop.f32.mrb[0].mxu0
      %1665 = vmatprep.mubr.bf16.mxu0 0
      %1666 = vmatmul.mubr.bf16.gmra.mrb[0].mxu0 %v1550
      %v1667 = vpop.f32.mrb[0].mxu0
      %v1668 = vadd.f32 0.0, %v1667
      %v1669 = vpop.f32.mrb[0].mxu0
      %v1670 = vpop.f32.mrb[0].mxu0
      %v1671 = vadd.f32 0.0, %v1670
      %v1672 = vpop.f32.mrb[0].mxu0
      %1673 = vmatprep.mubr.bf16.mxu0 0
      %1674 = vmatmul.mubr.bf16.gmra.mrb[0].mxu0 %v1551
      %v1675 = vpop.f32.mrb[0].mxu0
      %v1676 = vadd.f32 0.0, %v1675
      %v1677 = vpop.f32.mrb[0].mxu0
      %v1678 = vpop.f32.mrb[0].mxu0
      %v1679 = vadd.f32 0.0, %v1678
      %v1680 = vpop.f32.mrb[0].mxu0
      %1681 = vdwg.mxu0
      %v1682 = vadd.f32 %v1460, %v1652
      %v1683 = vadd.f32 %v1461, %v1655
      %v1684 = vadd.f32 %v1462, %v1660
      %v1685 = vadd.f32 %v1463, %v1663
      %v1686 = vadd.f32 %v1464, %v1668
      %v1687 = vadd.f32 %v1465, %v1671
      %v1688 = vadd.f32 %v1466, %v1676
      %v1689 = vadd.f32 %v1467, %v1679
      %v1690 = vld [vmem:[%s1309] sm:$0xe]
      %v1691 = vld [vmem:[%s1309 + $0x8] sm:$0xe]
      %v1692 = vld [vmem:[%s1309 + $0x10] sm:$0xe]
      %v1693 = vld [vmem:[%s1309 + $0x18] sm:$0xe]
      %v1694 = vld [vmem:[%s1309 + $0x20] sm:$0xe]
      %v1695 = vld [vmem:[%s1309 + $0x28] sm:$0xe]
      %v1696 = vld [vmem:[%s1309 + $0x30] sm:$0xe]
      %v1697 = vld [vmem:[%s1309 + $0x38] sm:$0xe]
      %v1698 = vunpack.c.l.bf16 %v1690
      %v1699 = vunpack.c.l.bf16 %v1691
      %v1700 = vunpack.c.l.bf16 %v1692
      %v1701 = vunpack.c.l.bf16 %v1693
      %v1702 = vunpack.c.l.bf16 %v1694
      %v1703 = vunpack.c.l.bf16 %v1695
      %v1704 = vunpack.c.l.bf16 %v1696
      %v1705 = vunpack.c.l.bf16 %v1697
      %v1714 = vrot.slane %v1698, 2
      %v1715 = vrot.slane %v1485, 2
      %v1716 = vsel %vm555, %v1714, %v1715
      %v1717 = vrot.slane %v1699, 2
      %v1718 = vrot.slane %v1487, 2
      %v1719 = vsel %vm555, %v1717, %v1718
      %v1720 = vrot.slane %v1700, 2
      %v1721 = vrot.slane %v1489, 2
      %v1722 = vsel %vm555, %v1720, %v1721
      %v1723 = vrot.slane %v1701, 2
      %v1724 = vrot.slane %v1491, 2
      %v1725 = vsel %vm555, %v1723, %v1724
      %v1726 = vrot.slane %v1702, 2
      %v1727 = vrot.slane %v1493, 2
      %v1728 = vsel %vm555, %v1726, %v1727
      %v1729 = vrot.slane %v1703, 2
      %v1730 = vrot.slane %v1495, 2
      %v1731 = vsel %vm555, %v1729, %v1730
      %v1732 = vrot.slane %v1704, 2
      %v1733 = vrot.slane %v1497, 2
      %v1734 = vsel %vm555, %v1732, %v1733
      %v1735 = vrot.slane %v1705, 2
      %v1736 = vrot.slane %v1499, 2
      %v1737 = vsel %vm555, %v1735, %v1736
      %v1746 = vpack.c.bf16 %v1719, %v1716
      %v1747 = vpack.c.bf16 %v1725, %v1722
      %v1748 = vpack.c.bf16 %v1731, %v1728
      %v1749 = vpack.c.bf16 %v1737, %v1734
      %s1750 = scalar_lea.vmem %s1, 512
      %v1751 = vld [vmem:[%s1750] sm:$0xf]
      %v1752 = vld [vmem:[%s1750 + $0x4] sm:$0xf]
      %v1753 = vld [vmem:[%s1750 + $0x8] sm:$0xf]
      %v1754 = vld [vmem:[%s1750 + $0xc] sm:$0xf]
      %v1755 = vld [vmem:[%s1750 + $0x10] sm:$0xf]
      %v1756 = vld [vmem:[%s1750 + $0x14] sm:$0xf]
      %v1757 = vld [vmem:[%s1750 + $0x18] sm:$0xf]
      %v1758 = vld [vmem:[%s1750 + $0x1c] sm:$0xf]
      %v1759 = vld [vmem:[%s1750 + $0x20] sm:$0xf]
      %v1760 = vld [vmem:[%s1750 + $0x24] sm:$0xf]
      %v1761 = vld [vmem:[%s1750 + $0x28] sm:$0xf]
      %v1762 = vld [vmem:[%s1750 + $0x2c] sm:$0xf]
      %v1763 = vld [vmem:[%s1750 + $0x30] sm:$0xf]
      %v1764 = vld [vmem:[%s1750 + $0x34] sm:$0xf]
      %v1765 = vld [vmem:[%s1750 + $0x38] sm:$0xf]
      %v1766 = vld [vmem:[%s1750 + $0x3c] sm:$0xf]
      %v1783 = vunpack.c.l.b16 %v1751
      %v1784 = vunpack.c.l.b16 %v1752
      %v1785 = vunpack.c.l.b16 %v1753
      %v1786 = vunpack.c.l.b16 %v1754
      %v1787 = vunpack.c.l.b16 %v1755
      %v1788 = vunpack.c.l.b16 %v1756
      %v1789 = vunpack.c.l.b16 %v1757
      %v1790 = vunpack.c.l.b16 %v1758
      %v1791 = vunpack.c.l.b16 %v1759
      %v1792 = vunpack.c.l.b16 %v1760
      %v1793 = vunpack.c.l.b16 %v1761
      %v1794 = vunpack.c.l.b16 %v1762
      %v1795 = vunpack.c.l.b16 %v1763
      %v1796 = vunpack.c.l.b16 %v1764
      %v1797 = vunpack.c.l.b16 %v1765
      %v1798 = vunpack.c.l.b16 %v1766
      %v1799 = vpack.c.b16 %v1784, %v1783
      %v1800 = vpack.c.b16 %v1786, %v1785
      %v1801 = vpack.c.b16 %v1788, %v1787
      %v1802 = vpack.c.b16 %v1790, %v1789
      %v1803 = vpack.c.b16 %v1792, %v1791
      %v1804 = vpack.c.b16 %v1794, %v1793
      %v1805 = vpack.c.b16 %v1796, %v1795
      %v1806 = vpack.c.b16 %v1798, %v1797
      %1815 = vmatprep.subr.bf16.mxu0 0
      %1816 = vmatpush1.bf16.msra.mxu0 %v1799
      %1817 = vmatprep.subr.bf16.mxu0 0
      %1818 = vmatpush1.bf16.msra.mxu0 %v1800
      %1819 = vmatprep.subr.bf16.mxu0 0
      %1820 = vmatpush1.bf16.msra.mxu0 %v1801
      %1821 = vmatprep.subr.bf16.mxu0 0
      %1822 = vmatpush1.bf16.msra.mxu0 %v1802
      %1823 = vmatprep.subr.bf16.mxu0 0
      %1824 = vmatpush1.bf16.msra.mxu0 %v1803
      %1825 = vmatprep.subr.bf16.mxu0 0
      %1826 = vmatpush1.bf16.msra.mxu0 %v1804
      %1827 = vmatprep.subr.bf16.mxu0 0
      %1828 = vmatpush1.bf16.msra.mxu0 %v1805
      %1829 = vmatprep.subr.bf16.mxu0 0
      %1830 = vmatpush1.bf16.msra.mxu0 %v1806
      %1831 = vmatprep.subr.bf16.mxu0 0
      %1832 = vmatpush1.bf16.msra.mxu0 0
      %1833 = vmatprep.subr.bf16.mxu0 0
      %1834 = vmatpush1.bf16.msra.mxu0 0
      %1835 = vmatprep.subr.bf16.mxu0 0
      %1836 = vmatpush1.bf16.msra.mxu0 0
      %1837 = vmatprep.subr.bf16.mxu0 0
      %1838 = vmatpush1.bf16.msra.mxu0 0
      %1839 = vmatprep.subr.bf16.mxu0 0
      %1840 = vmatpush1.bf16.msra.mxu0 0
      %1841 = vmatprep.subr.bf16.mxu0 0
      %1842 = vmatpush1.bf16.msra.mxu0 0
      %1843 = vmatprep.subr.bf16.mxu0 0
      %1844 = vmatpush1.bf16.msra.mxu0 0
      %1845 = vmatprep.subr.bf16.mxu0 0
      %1846 = vmatpush1.bf16.msra.mxu0 0
      %1847 = vmatprep.mubr.bf16.mxu0 0
      %1848 = vmatmul.mubr.bf16.gmra.mrb[0].mxu0 %v1746
      %v1849 = vpop.f32.mrb[0].mxu0
      %v1850 = vadd.f32 0.0, %v1849
      %v1851 = vpop.f32.mrb[0].mxu0
      %v1852 = vpop.f32.mrb[0].mxu0
      %v1853 = vadd.f32 0.0, %v1852
      %v1854 = vpop.f32.mrb[0].mxu0
      %1855 = vmatprep.mubr.bf16.mxu0 0
      %1856 = vmatmul.mubr.bf16.gmra.mrb[0].mxu0 %v1747
      %v1857 = vpop.f32.mrb[0].mxu0
      %v1858 = vadd.f32 0.0, %v1857
      %v1859 = vpop.f32.mrb[0].mxu0
      %v1860 = vpop.f32.mrb[0].mxu0
      %v1861 = vadd.f32 0.0, %v1860
      %v1862 = vpop.f32.mrb[0].mxu0
      %1863 = vmatprep.mubr.bf16.mxu0 0
      %1864 = vmatmul.mubr.bf16.gmra.mrb[0].mxu0 %v1748
      %v1865 = vpop.f32.mrb[0].mxu0
      %v1866 = vadd.f32 0.0, %v1865
      %v1867 = vpop.f32.mrb[0].mxu0
      %v1868 = vpop.f32.mrb[0].mxu0
      %v1869 = vadd.f32 0.0, %v1868
      %v1870 = vpop.f32.mrb[0].mxu0
      %1871 = vmatprep.mubr.bf16.mxu0 0
      %1872 = vmatmul.mubr.bf16.gmra.mrb[0].mxu0 %v1749
      %v1873 = vpop.f32.mrb[0].mxu0
      %v1874 = vadd.f32 0.0, %v1873
      %v1875 = vpop.f32.mrb[0].mxu0
      %v1876 = vpop.f32.mrb[0].mxu0
      %v1877 = vadd.f32 0.0, %v1876
      %v1878 = vpop.f32.mrb[0].mxu0
      %1879 = vdwg.mxu0
      %v1880 = vadd.f32 %v1682, %v1850
      %v1881 = vadd.f32 %v1683, %v1853
      %v1882 = vadd.f32 %v1684, %v1858
      %v1883 = vadd.f32 %v1685, %v1861
      %v1884 = vadd.f32 %v1686, %v1866
      %v1885 = vadd.f32 %v1687, %v1869
      %v1886 = vadd.f32 %v1688, %v1874
      %v1887 = vadd.f32 %v1689, %v1877
      %v1888 = vpack.c.bf16 %v1881, %v1880
      %v1889 = vpack.c.bf16 %v1883, %v1882
      %v1890 = vpack.c.bf16 %v1885, %v1884
      %v1891 = vpack.c.bf16 %v1887, %v1886
      %v1896 = vunpack.c.l.b16 %v1888
      %v1897 = vunpack.c.h.b16 %v1888
      %v1898 = vunpack.c.l.b16 %v1889
      %v1899 = vunpack.c.h.b16 %v1889
      %v1900 = vunpack.c.l.b16 %v1890
      %v1901 = vunpack.c.h.b16 %v1890
      %v1902 = vunpack.c.l.b16 %v1891
      %v1903 = vunpack.c.h.b16 %v1891
      %v1904 = vpack.c.b16 %v1896, %v1896
      %v1905 = vpack.c.b16 %v1897, %v1897
      %v1906 = vpack.c.b16 %v1898, %v1898
      %v1907 = vpack.c.b16 %v1899, %v1899
      %v1908 = vpack.c.b16 %v1900, %v1900
      %v1909 = vpack.c.b16 %v1901, %v1901
      %v1910 = vpack.c.b16 %v1902, %v1902
      %v1911 = vpack.c.b16 %v1903, %v1903
      %1920 = vst [vmem:[%s177] sm:$0xf] %v1904
      %1921 = vst [vmem:[%s177 + $0x4] sm:$0xf] %v1905
      %1922 = vst [vmem:[%s177 + $0x8] sm:$0xf] %v1906
      %1923 = vst [vmem:[%s177 + $0xc] sm:$0xf] %v1907
      %1924 = vst [vmem:[%s177 + $0x10] sm:$0xf] %v1908
      %1925 = vst [vmem:[%s177 + $0x14] sm:$0xf] %v1909
      %1926 = vst [vmem:[%s177 + $0x18] sm:$0xf] %v1910
      %1927 = vst [vmem:[%s177 + $0x1c] sm:$0xf] %v1911
      %v1928 = vadd.f32 %v1880, %v1881
      %v1929 = vadd.f32 %v1928, %v1882
      %v1930 = vadd.f32 %v1929, %v1883
      %v1931 = vadd.f32 %v1930, %v1884
      %v1932 = vadd.f32 %v1931, %v1885
      %v1933 = vadd.f32 %v1932, %v1886
      %v1934 = vadd.f32 %v1933, %v1887
      %v1935 = vrot.slane %v1934, 4
      %v1936 = vadd.f32 %v1934, %v1935
      %v1937 = vrot.slane %v1936, 2
      %v1938 = vadd.f32 %v1936, %v1937
      %v1939 = vrot.slane %v1938, 1
      %v1940 = vadd.f32 %v1938, %v1939
      %1941 = vst [vmem:[%s181] sm:$0x1] %v1940
      %v1942 = vmul.f32 %v1880, %v1880
      %v1943 = vmul.f32 %v1881, %v1881
      %v1944 = vmul.f32 %v1882, %v1882
      %v1945 = vmul.f32 %v1883, %v1883
      %v1946 = vmul.f32 %v1884, %v1884
      %v1947 = vmul.f32 %v1885, %v1885
      %v1948 = vmul.f32 %v1886, %v1886
      %v1949 = vmul.f32 %v1887, %v1887
      %v1950 = vadd.f32 %v1942, %v1943
      %v1951 = vadd.f32 %v1950, %v1944
      %v1952 = vadd.f32 %v1951, %v1945
      %v1953 = vadd.f32 %v1952, %v1946
      %v1954 = vadd.f32 %v1953, %v1947
      %v1955 = vadd.f32 %v1954, %v1948
      %v1956 = vadd.f32 %v1955, %v1949
      %v1957 = vrot.slane %v1956, 4
      %v1958 = vadd.f32 %v1956, %v1957
      %v1959 = vrot.slane %v1958, 2
      %v1960 = vadd.f32 %v1958, %v1959
      %v1961 = vrot.slane %v1960, 1
      %v1962 = vadd.f32 %v1960, %v1961
      %1963 = vst [vmem:[%s181 + $0x1] sm:$0x1] %v1962
      %p1964 = scmp.lt.s32.totalorder %s15, 1
      %s1965 = scalar_select %p1964, %s15, 1
      %s1966 = smul.addr %s1965, 8
      %s1967 = smul.addr %s1966, 4
      %s1968 = scalar_lea.vmem %s2, %s1967
      %p1969 = scmp.lt.s32.totalorder %s15, 1
      %s1970 = scalar_select %p1969, %s15, 1
      %s1971 = smul.addr %s1970, 2
      %s1972 = scalar_lea.vmem %s3, %s1971
      // Predicated region
      $region29: #{encoder2d_block.6} parent=27 // pred_check
        %p1973 = pneg %p80
      $region30: #{encoder2d_block.6} parent=27 // pred_check_branch
        %1975 = sbr.rel (%p1973) target = $region32
      $region31: #{encoder2d_block.6} parent=27 // pred_region
        _
      $region32: #{encoder2d_block.6} parent=27 // pred_fallthru
        _
      // Predicated region
      $region33: #{encoder2d_block.6} parent=27 // pred_check
        %p1976 = pneg %p106
      $region34: #{encoder2d_block.6} parent=27 // pred_check_branch
        %1978 = sbr.rel (%p1976) target = $region36
      $region35: #{encoder2d_block.6} parent=27 // pred_region
        _
      $region36: #{encoder2d_block.6} parent=27 // pred_fallthru
        _
    $region28: #{encoder2d_block.6} parent=5 // pred_fallthru
      _
    %p1979 = scmp.le.s32.totalorder 2, %s10
    // Predicated region
    $region37: #{encoder2d_block.6} parent=5 // pred_check
      %p1980 = pneg %p1979
    $region38: #{encoder2d_block.6} parent=5 // pred_check_branch
      %1982 = sbr.rel (%p1980) target = $region40
    $region39: #{encoder2d_block.6} parent=5 // pred_region
      %s1983 = ssub.s32 %s10, 2
      // Predicated region
      $region41: #{encoder2d_block.6} parent=39 // pred_check
        %p1984 = pneg %p86
      $region42: #{encoder2d_block.6} parent=39 // pred_check_branch
        %1986 = sbr.rel (%p1984) target = $region44
      $region43: #{encoder2d_block.6} parent=39 // pred_region
        %p1987 = scmp.lt.s32.totalorder %s16, 1
        %s1988 = scalar_select %p1987, %s16, 1
        %s1989 = smul.addr %s1988, 8
        %s1990 = smul.addr %s1989, 4
        %s1991 = scalar_lea.vmem %s2, %s1990
      $region44: #{encoder2d_block.6} parent=39 // pred_fallthru
        _
      // Predicated region
      $region45: #{encoder2d_block.6} parent=39 // pred_check
        %p1992 = pneg %p112
      $region46: #{encoder2d_block.6} parent=39 // pred_check_branch
        %1994 = sbr.rel (%p1992) target = $region48
      $region47: #{encoder2d_block.6} parent=39 // pred_region
        %p1995 = scmp.lt.s32.totalorder %s16, 1
        %s1996 = scalar_select %p1995, %s16, 1
        %s1997 = smul.addr %s1996, 2
        %s1998 = scalar_lea.vmem %s3, %s1997
      $region48: #{encoder2d_block.6} parent=39 // pred_fallthru
        _
    $region40: #{encoder2d_block.6} parent=5 // pred_fallthru
      _
  $region6: #{encoder2d_block.6} parent=0 // loop_footer
    %s14 = sadd.s32 1, %s10
  $region7: #{encoder2d_block.6} parent=0 // loop_footer_branch
    %9 = sbr.rel target = $region3
  $region8: #{encoder2d_block.6} parent=0 // loop_exit
    _

</llo_original>
